<compile_context>
chip_gen: v7x
topology: tpu7x:2x2x1
jax: 0.10.0
libtpu: 0.0.40
codegen_flags: <defaults>
</compile_context>

<pallas_src>
import functools

import jax
import jax.numpy as jnp
from jax.experimental import pallas as pl
from jax.experimental.pallas import tpu as pltpu

_VMEM_LIMIT_BYTES = 48 * 1024 * 1024     # fits v7x (64 MiB phys), fine on v5e/v6e
_FUSED_VMEM_BUDGET = 40 * 1024 * 1024    # resident-slab budget for the fused path


# ------------------------------- helpers ----------------------------------- #
def _round_up(x, m):
    return (x + m - 1) // m * m


def _pick_tile(dim_padded, pref, align=128):
    """Largest multiple of `align` that divides `dim_padded` and is <= pref."""
    best = align
    t = align
    lim = min(pref, dim_padded)
    while t <= lim:
        if dim_padded % t == 0:
            best = t
        t += align
    return best


# ----------------------- fused conv kernel (stride == 1) ------------------- #
def _fused_conv_kernel(x_ref, w_ref, b_ref, o_ref, *, kh, kw, dil, Wp):
    # x_ref: (L, C)        bf16  one image's padded input, flattened Hp*Wp + tail
    # w_ref: (kh*kw, C, O) bf16  weights per kernel offset
    # b_ref: (1, O)        f32
    # o_ref: (Q, O)        f32   Q = H_out * Wp; row q = ho*Wp + wo (columns
    #                            wo >= W_out are garbage, sliced off outside)
    o_ref[...] = jnp.broadcast_to(b_ref[...], o_ref.shape)
    q_rows = o_ref.shape[0]
    for t in range(kh * kw):
        i, j = t // kw, t % kw
        off = i * dil * Wp + j * dil                 # static offset per (i, j)
        patch = x_ref[pl.ds(off, q_rows), :]         # (Q, C) contiguous rows
        o_ref[...] += jnp.dot(patch, w_ref[t],
                              preferred_element_type=jnp.float32)


# --------------------- im2col fallback matmul kernels ---------------------- #
def _matmul_bias_kernel(p_ref, w_ref, b_ref, o_ref):
    # Degenerate K (single tile): one dot + bias, no accumulator, no pl.when.
    o_ref[...] = jnp.dot(p_ref[...], w_ref[...],
                         preferred_element_type=jnp.float32) + b_ref[...]


def _matmul_bias_acc_kernel(p_ref, w_ref, b_ref, o_ref):
    # o_ref is resident across the last ("arbitrary") K grid axis; partial
    # sums accumulate directly into it (no VMEM scratch accumulator).
    k = pl.program_id(2)

    @pl.when(k == 0)
    def _():
        o_ref[...] = jnp.broadcast_to(b_ref[...], o_ref.shape)

    o_ref[...] += jnp.dot(p_ref[...], w_ref[...],
                          preferred_element_type=jnp.float32)


def _conv_matmul(patches, w_t, bias2d, tm, tn, tk):
    """out[Mp, Np] = patches[Mp, Kp] @ w_t[Kp, Np] + bias2d[1, Np] (f32 acc)."""
    Mp, Kp = patches.shape
    _, Np = w_t.shape
    kt = Kp // tk
    flops = 2 * Mp * Kp * Np
    bytes_accessed = (patches.size * 2 * (Np // tn) + w_t.size * 2 * (Mp // tm)
                      + Mp * Np * 4 + Np * 4)
    cost = pl.CostEstimate(flops=flops, transcendentals=0,
                           bytes_accessed=bytes_accessed)

    if kt == 1:
        return pl.pallas_call(
            _matmul_bias_kernel,
            out_shape=jax.ShapeDtypeStruct((Mp, Np), jnp.float32),
            grid=(Mp // tm, Np // tn),
            in_specs=[
                pl.BlockSpec((tm, tk), lambda i, j: (i, 0)),
                pl.BlockSpec((tk, tn), lambda i, j: (0, j)),
                pl.BlockSpec((1, tn), lambda i, j: (0, j)),
            ],
            out_specs=pl.BlockSpec((tm, tn), lambda i, j: (i, j)),
            compiler_params=pltpu.CompilerParams(
                dimension_semantics=("parallel", "parallel"),
                vmem_limit_bytes=_VMEM_LIMIT_BYTES),
            cost_estimate=cost,
        )(patches, w_t, bias2d)

    return pl.pallas_call(
        _matmul_bias_acc_kernel,
        out_shape=jax.ShapeDtypeStruct((Mp, Np), jnp.float32),
        grid=(Mp // tm, Np // tn, kt),
        in_specs=[
            pl.BlockSpec((tm, tk), lambda i, j, k: (i, k)),
            pl.BlockSpec((tk, tn), lambda i, j, k: (k, j)),
            pl.BlockSpec((1, tn), lambda i, j, k: (0, j)),
        ],
        out_specs=pl.BlockSpec((tm, tn), lambda i, j, k: (i, j)),
        compiler_params=pltpu.CompilerParams(
            dimension_semantics=("parallel", "parallel", "arbitrary"),
            vmem_limit_bytes=_VMEM_LIMIT_BYTES),
        cost_estimate=cost,
    )(patches, w_t, bias2d)


# ------------------------------- Conv2d module ----------------------------- #
class Conv2d:
    """JAX/Pallas re-implementation of the PyTorch Conv2d module's forward."""

    def __init__(self, in_channels, out_channels, kernel_size,
                 stride=1, padding=0, dilation=1, key=None):
        self.in_ch = in_channels
        self.out_ch = out_channels
        if isinstance(kernel_size, tuple):
            self.k_size = kernel_size
        elif isinstance(kernel_size, int):
            self.k_size = (kernel_size, kernel_size)
        else:
            raise TypeError("The kernel_size should be either tuple or int type")
        self.stride = stride
        self.padding = padding
        self.dilation = dilation

        if key is None:
            key = jax.random.PRNGKey(0)
        kw_key, kb_key = jax.random.split(key)
        bound = 1.0 / (self.in_ch * self.k_size[0] * self.k_size[1]) ** 0.5
        self.weight = jax.random.uniform(
            kw_key, (self.out_ch, self.in_ch, self.k_size[0], self.k_size[1]),
            minval=-bound, maxval=bound, dtype=jnp.float32)
        self.bias = jax.random.uniform(
            kb_key, (self.out_ch,), minval=-bound, maxval=bound, dtype=jnp.float32)

    # ----------------------------- dispatch --------------------------------- #
    def forward(self, x):
        if x.shape[1] != self.in_ch:
            raise ValueError(
                "The channel for input data does not match with the "
                "in_channels of Conv2d module")
        N, C, H, W = x.shape
        kh, kw = self.k_size
        s, p, d = self.stride, self.padding, self.dilation
        H_out = (H + 2 * p - d * (kh - 1) - 1) // s + 1
        W_out = (W + 2 * p - d * (kw - 1) - 1) // s + 1
        if s == 1 and self._fused_fits(C, H, W, H_out):
            return self._forward_fused(x, H_out, W_out)
        # TODO(synk): strided convs use XLA im2col + a tiled Pallas matmul; a
        # fully fused strided path would need strided in-kernel row gathers.
        return self._forward_im2col(x, H_out, W_out)

    def __call__(self, x):
        return self.forward(x)

    # ----------------------------- fused path ------------------------------- #
    def _fused_fits(self, C, H, W, H_out):
        kh, kw = self.k_size
        p, d = self.padding, self.dilation
        Hp, Wp = H + 2 * p, W + 2 * p
        L = Hp * Wp + (kw - 1) * d
        Q = H_out * Wp
        # double-buffered input slab + weights + bias + resident f32 out block
        need = 2 * (L * C * 2 + kh * kw * C * self.out_ch * 2
                    + 4 * self.out_ch + Q * self.out_ch * 4)
        return need <= _FUSED_VMEM_BUDGET

    def _forward_fused(self, x, H_out, W_out):
        N, C, H, W = x.shape
        kh, kw = self.k_size
        p, d = self.padding, self.dilation
        O = self.out_ch
        Hp, Wp = H + 2 * p, W + 2 * p
        T = kh * kw
        Q = H_out * Wp                 # "wide" flat output rows per image
        L = Hp * Wp + (kw - 1) * d     # flat slab rows (+ tail so every static
                                       #  in-kernel slice stays in bounds)

        # Input-sized XLA glue only: NCHW -> NHWC, zero-pad, flatten, bf16.
        x_nhwc = jnp.transpose(x, (0, 2, 3, 1))
        xp = jnp.pad(x_nhwc, ((0, 0), (p, p), (p, p), (0, 0)))
        xf = jnp.pad(xp.reshape(N, Hp * Wp, C),
                     ((0, 0), (0, L - Hp * Wp), (0, 0))).astype(jnp.bfloat16)

        # (O, C, kh, kw) -> (kh*kw, C, O)
        wmat = jnp.transpose(self.weight, (2, 3, 1, 0)).reshape(T, C, O)
        wmat = wmat.astype(jnp.bfloat16)
        bias2d = self.bias.reshape(1, O).astype(jnp.float32)

        kernel = functools.partial(_fused_conv_kernel, kh=kh, kw=kw, dil=d, Wp=Wp)
        cost = pl.CostEstimate(
            flops=2 * N * Q * C * O * T, transcendentals=0,
            bytes_accessed=N * L * C * 2 + T * C * O * 2 + N * Q * O * 4 + O * 4)

        out3 = pl.pallas_call(
            kernel,
            out_shape=jax.ShapeDtypeStruct((N, Q, O), jnp.float32),
            grid=(N,),
            in_specs=[
                pl.BlockSpec((None, L, C), lambda n: (n, 0, 0)),
                pl.BlockSpec((T, C, O), lambda n: (0, 0, 0)),
                pl.BlockSpec((1, O), lambda n: (0, 0)),
            ],
            out_specs=pl.BlockSpec((None, Q, O), lambda n: (n, 0, 0)),
            compiler_params=pltpu.CompilerParams(
                dimension_semantics=("parallel",),
                vmem_limit_bytes=_VMEM_LIMIT_BYTES),
            cost_estimate=cost,
        )(xf, wmat, bias2d)

        out = out3.reshape(N, H_out, Wp, O)[:, :, :W_out, :]
        return jnp.transpose(out, (0, 3, 1, 2))

    # --------------------------- im2col fallback ---------------------------- #
    def _unfold_rows(self, x, H_out, W_out):
        # torch.nn.functional.unfold ordering (c-major, then kh, kw), emitted
        # directly in (N*L, K) row-major layout (no big-tensor transpose).
        N, C, H, W = x.shape
        kh, kw = self.k_size
        s, p, d = self.stride, self.padding, self.dilation
        x_nhwc = jnp.transpose(x, (0, 2, 3, 1))
        xp = jnp.pad(x_nhwc, ((0, 0), (p, p), (p, p), (0, 0)))
        cols = []
        for i in range(kh):
            for j in range(kw):
                r0, c0 = i * d, j * d
                cols.append(xp[:, r0:r0 + s * (H_out - 1) + 1:s,
                               c0:c0 + s * (W_out - 1) + 1:s, :])
        cols = jnp.stack(cols, axis=-1)          # (N, H_out, W_out, C, kh*kw)
        return cols.reshape(N * H_out * W_out, C * kh * kw)

    def _forward_im2col(self, x, H_out, W_out):
        N = x.shape[0]
        O = self.out_ch
        patches = self._unfold_rows(x, H_out, W_out)          # (M, K) f32
        M, K = patches.shape

        Mp = _round_up(M, 128)
        Kp = _round_up(K, 128)
        Np = _round_up(O, 128)
        tm = _pick_tile(Mp, 1024)
        tn = _pick_tile(Np, 512)   # whole out-channel dim when <= 512:
                                   #   the big patch operand streams exactly once
        tk = _pick_tile(Kp, 512)
        # v7x megacore: expose >= 2 parallel output tiles when possible.
        while (Mp // tm) * (Np // tn) < 2 and tm > 128:
            tm = _pick_tile(Mp, tm // 2)

        patches_p = jnp.pad(patches, ((0, Mp - M), (0, Kp - K))).astype(jnp.bfloat16)
        w_t = self.weight.reshape(O, K).T                      # (K, O), small
        w_t_p = jnp.pad(w_t, ((0, Kp - K), (0, Np - O))).astype(jnp.bfloat16)
        bias_p = jnp.pad(self.bias, (0, Np - O)).reshape(1, Np).astype(jnp.float32)

        out2d = _conv_matmul(patches_p, w_t_p, bias_p, tm, tn, tk)   # (Mp, Np)
        out = out2d[:M, :O].reshape(N, H_out, W_out, O)
        return jnp.transpose(out, (0, 3, 1, 2))


# ------------------------------ verification -------------------------------- #
def _reference_conv(x, weight, bias, stride, padding, dilation, bf16_inputs=False):
    if bf16_inputs:
        x = x.astype(jnp.bfloat16).astype(jnp.float32)
        weight = weight.astype(jnp.bfloat16).astype(jnp.float32)
    out = jax.lax.conv_general_dilated(
        x, weight,
        window_strides=(stride, stride),
        padding=[(padding, padding), (padding, padding)],
        rhs_dilation=(dilation, dilation),
        dimension_numbers=("NCHW", "OIHW", "NCHW"))
    return out + bias.reshape(1, -1, 1, 1)


def _check(out, x, conv, stride, padding, dilation):
    # Exact-f32 conv (loose: kernel uses bf16 operands, f32 accumulation).
    ref32 = _reference_conv(x, conv.weight, conv.bias, stride, padding, dilation)
    assert jnp.allclose(out, ref32, atol=5e-2, rtol=5e-2)
    # Conv on bf16-rounded inputs (tight: isolates matmul from input rounding).
    refbf = _reference_conv(x, conv.weight, conv.bias, stride, padding, dilation,
                            bf16_inputs=True)
    assert jnp.allclose(out, refbf, atol=2e-3, rtol=2e-3)


# ---------------------------------- main ------------------------------------ #
if __name__ == "__main__":
    key = jax.random.PRNGKey(0)
    k_x1, k_x2, k_m1, k_m2, k_m3 = jax.random.split(key, 5)

    # Small shapes consistent with the module: NCHW input.
    N, C_in, H, W = 2, 4, 16, 16
    C_out = 8

    x = jax.random.normal(k_x1, (N, C_in, H, W), dtype=jnp.float32)

    # 1) Fused im2col+matmul path (stride=1, 3x3, padding=1).
    conv = Conv2d(C_in, C_out, 3, stride=1, padding=1, dilation=1, key=k_m1)
    out = jax.block_until_ready(conv(x))
    assert out.shape == (N, C_out, H, W)
    _check(out, x, conv, stride=1, padding=1, dilation=1)

    # 2) im2col fallback, degenerate-K kernel (stride=2, K fits a single tile).
    conv2 = Conv2d(C_in, C_out, 3, stride=2, padding=1, dilation=1, key=k_m2)
    out2 = jax.block_until_ready(conv2(x))
    assert out2.shape == (N, C_out, 8, 8)
    _check(out2, x, conv2, stride=2, padding=1, dilation=1)

    # 3) im2col fallback, K-accumulation kernel (stride=2, C_in=64 -> K=576).
    C_big = 64
    x3 = jax.random.normal(k_x2, (N, C_big, H, W), dtype=jnp.float32)
    conv3 = Conv2d(C_big, C_out, 3, stride=2, padding=1, dilation=1, key=k_m3)
    out3 = jax.block_until_ready(conv3(x3))
    assert out3.shape == (N, C_out, 8, 8)
    _check(out3, x3, conv3, stride=2, padding=1, dilation=1)

    print("KERNEL_OK")
</pallas_src>

<mosaic_0001>
module attributes {stable_mosaic.version = 11 : i64} {
  func.func @_fused_conv_kernel(%arg0: i32, %arg1: memref<1x326x4xbf16, #tpu.memory_space<vmem>>, %arg2: memref<9x4x8xbf16, #tpu.memory_space<vmem>>, %arg3: memref<1x8xf32, #tpu.memory_space<vmem>>, %arg4: memref<1x288x8xf32, #tpu.memory_space<vmem>>) attributes {dimension_semantics = [#tpu.dimension_semantics<parallel>], iteration_bounds = array<i64: 2>, scalar_prefetch = 0 : i64, scratch_operands = 0 : i64, tpu.core_type = #tpu.core_type<tc>, window_params = [{transform_indices = @transform_0, window_bounds = array<i64: 1, 326, 4>}, {pipeline_mode = #tpu.pipeline_mode<synchronous>, transform_indices = @transform_1, window_bounds = array<i64: 9, 4, 8>}, {pipeline_mode = #tpu.pipeline_mode<synchronous>, transform_indices = @transform_2, window_bounds = array<i64: 1, 8>}, {transform_indices = @transform_3, window_bounds = array<i64: 1, 288, 8>}]} {
    %c0 = arith.constant 0 : index
    %c0_0 = arith.constant 0 : index
    %0 = vector.load %arg3[%c0, %c0_0] : memref<1x8xf32, #tpu.memory_space<vmem>>, vector<1x8xf32>
    %1 = vector.shape_cast %0 : vector<1x8xf32> to vector<1x8xf32>
    %2 = vector.broadcast %1 : vector<1x8xf32> to vector<288x8xf32>
    %c0_1 = arith.constant 0 : index
    %c0_2 = arith.constant 0 : index
    %c0_3 = arith.constant 0 : index
    %3 = vector.load %arg4[%c0_1, %c0_2, %c0_3] : memref<1x288x8xf32, #tpu.memory_space<vmem>>, vector<1x288x8xf32>
    %4 = vector.shape_cast %3 : vector<1x288x8xf32> to vector<288x8xf32>
    %5 = vector.shape_cast %2 : vector<288x8xf32> to vector<1x288x8xf32>
    tpu.vector_store %arg4[%c0_1, %c0_2, %c0_3], %5 {strides = array<i32>} : memref<1x288x8xf32, #tpu.memory_space<vmem>>, vector<1x288x8xf32>,
    %c0_4 = arith.constant 0 : index
    %c0_5 = arith.constant 0 : index
    %c0_6 = arith.constant 0 : index
    %6 = vector.load %arg1[%c0_4, %c0_5, %c0_6] : memref<1x326x4xbf16, #tpu.memory_space<vmem>>, vector<1x288x4xbf16>
    %7 = vector.shape_cast %6 : vector<1x288x4xbf16> to vector<288x4xbf16>
    %c0_7 = arith.constant 0 : index
    %c0_8 = arith.constant 0 : index
    %c0_9 = arith.constant 0 : index
    %8 = vector.load %arg4[%c0_7, %c0_8, %c0_9] : memref<1x288x8xf32, #tpu.memory_space<vmem>>, vector<1x288x8xf32>
    %9 = vector.shape_cast %8 : vector<1x288x8xf32> to vector<288x8xf32>
    %c0_10 = arith.constant 0 : index
    %c0_11 = arith.constant 0 : index
    %c0_12 = arith.constant 0 : index
    %10 = vector.load %arg2[%c0_10, %c0_11, %c0_12] : memref<9x4x8xbf16, #tpu.memory_space<vmem>>, vector<1x4x8xbf16>
    %11 = vector.shape_cast %10 : vector<1x4x8xbf16> to vector<4x8xbf16>
    %cst = arith.constant dense<0.000000e+00> : vector<288x8xf32>
    %12 = tpu.matmul %7, %11, %cst {dimension_numbers = #tpu.dot_dimension_numbers<[1], [0], [0], [1], [0, 0, 1, 1], [], []>} : vector<288x4xbf16>, vector<4x8xbf16>, vector<288x8xf32> -> vector<288x8xf32>
    %13 = arith.addf %9, %12 : vector<288x8xf32>
    %c0_13 = arith.constant 0 : index
    %c0_14 = arith.constant 0 : index
    %c0_15 = arith.constant 0 : index
    %14 = vector.load %arg4[%c0_13, %c0_14, %c0_15] : memref<1x288x8xf32, #tpu.memory_space<vmem>>, vector<1x288x8xf32>
    %15 = vector.shape_cast %14 : vector<1x288x8xf32> to vector<288x8xf32>
    %16 = vector.shape_cast %13 : vector<288x8xf32> to vector<1x288x8xf32>
    tpu.vector_store %arg4[%c0_13, %c0_14, %c0_15], %16 {strides = array<i32>} : memref<1x288x8xf32, #tpu.memory_space<vmem>>, vector<1x288x8xf32>,
    %c0_16 = arith.constant 0 : index
    %c1 = arith.constant 1 : index
    %c0_17 = arith.constant 0 : index
    %17 = vector.load %arg1[%c0_16, %c1, %c0_17] : memref<1x326x4xbf16, #tpu.memory_space<vmem>>, vector<1x288x4xbf16>
    %18 = vector.shape_cast %17 : vector<1x288x4xbf16> to vector<288x4xbf16>
    %c0_18 = arith.constant 0 : index
    %c0_19 = arith.constant 0 : index
    %c0_20 = arith.constant 0 : index
    %19 = vector.load %arg4[%c0_18, %c0_19, %c0_20] : memref<1x288x8xf32, #tpu.memory_space<vmem>>, vector<1x288x8xf32>
    %20 = vector.shape_cast %19 : vector<1x288x8xf32> to vector<288x8xf32>
    %c1_21 = arith.constant 1 : index
    %c0_22 = arith.constant 0 : index
    %c0_23 = arith.constant 0 : index
    %21 = vector.load %arg2[%c1_21, %c0_22, %c0_23] : memref<9x4x8xbf16, #tpu.memory_space<vmem>>, vector<1x4x8xbf16>
    %22 = vector.shape_cast %21 : vector<1x4x8xbf16> to vector<4x8xbf16>
    %cst_24 = arith.constant dense<0.000000e+00> : vector<288x8xf32>
    %23 = tpu.matmul %18, %22, %cst_24 {dimension_numbers = #tpu.dot_dimension_numbers<[1], [0], [0], [1], [0, 0, 1, 1], [], []>} : vector<288x4xbf16>, vector<4x8xbf16>, vector<288x8xf32> -> vector<288x8xf32>
    %24 = arith.addf %20, %23 : vector<288x8xf32>
    %c0_25 = arith.constant 0 : index
    %c0_26 = arith.constant 0 : index
    %c0_27 = arith.constant 0 : index
    %25 = vector.load %arg4[%c0_25, %c0_26, %c0_27] : memref<1x288x8xf32, #tpu.memory_space<vmem>>, vector<1x288x8xf32>
    %26 = vector.shape_cast %25 : vector<1x288x8xf32> to vector<288x8xf32>
    %27 = vector.shape_cast %24 : vector<288x8xf32> to vector<1x288x8xf32>
    tpu.vector_store %arg4[%c0_25, %c0_26, %c0_27], %27 {strides = array<i32>} : memref<1x288x8xf32, #tpu.memory_space<vmem>>, vector<1x288x8xf32>,
    %c0_28 = arith.constant 0 : index
    %c2 = arith.constant 2 : index
    %c0_29 = arith.constant 0 : index
    %28 = vector.load %arg1[%c0_28, %c2, %c0_29] : memref<1x326x4xbf16, #tpu.memory_space<vmem>>, vector<1x288x4xbf16>
    %29 = vector.shape_cast %28 : vector<1x288x4xbf16> to vector<288x4xbf16>
    %c0_30 = arith.constant 0 : index
    %c0_31 = arith.constant 0 : index
    %c0_32 = arith.constant 0 : index
    %30 = vector.load %arg4[%c0_30, %c0_31, %c0_32] : memref<1x288x8xf32, #tpu.memory_space<vmem>>, vector<1x288x8xf32>
    %31 = vector.shape_cast %30 : vector<1x288x8xf32> to vector<288x8xf32>
    %c2_33 = arith.constant 2 : index
    %c0_34 = arith.constant 0 : index
    %c0_35 = arith.constant 0 : index
    %32 = vector.load %arg2[%c2_33, %c0_34, %c0_35] : memref<9x4x8xbf16, #tpu.memory_space<vmem>>, vector<1x4x8xbf16>
    %33 = vector.shape_cast %32 : vector<1x4x8xbf16> to vector<4x8xbf16>
    %cst_36 = arith.constant dense<0.000000e+00> : vector<288x8xf32>
    %34 = tpu.matmul %29, %33, %cst_36 {dimension_numbers = #tpu.dot_dimension_numbers<[1], [0], [0], [1], [0, 0, 1, 1], [], []>} : vector<288x4xbf16>, vector<4x8xbf16>, vector<288x8xf32> -> vector<288x8xf32>
    %35 = arith.addf %31, %34 : vector<288x8xf32>
    %c0_37 = arith.constant 0 : index
    %c0_38 = arith.constant 0 : index
    %c0_39 = arith.constant 0 : index
    %36 = vector.load %arg4[%c0_37, %c0_38, %c0_39] : memref<1x288x8xf32, #tpu.memory_space<vmem>>, vector<1x288x8xf32>
    %37 = vector.shape_cast %36 : vector<1x288x8xf32> to vector<288x8xf32>
    %38 = vector.shape_cast %35 : vector<288x8xf32> to vector<1x288x8xf32>
    tpu.vector_store %arg4[%c0_37, %c0_38, %c0_39], %38 {strides = array<i32>} : memref<1x288x8xf32, #tpu.memory_space<vmem>>, vector<1x288x8xf32>,
    %c0_40 = arith.constant 0 : index
    %c18 = arith.constant 18 : index
    %c0_41 = arith.constant 0 : index
    %39 = vector.load %arg1[%c0_40, %c18, %c0_41] : memref<1x326x4xbf16, #tpu.memory_space<vmem>>, vector<1x288x4xbf16>
    %40 = vector.shape_cast %39 : vector<1x288x4xbf16> to vector<288x4xbf16>
    %c0_42 = arith.constant 0 : index
    %c0_43 = arith.constant 0 : index
    %c0_44 = arith.constant 0 : index
    %41 = vector.load %arg4[%c0_42, %c0_43, %c0_44] : memref<1x288x8xf32, #tpu.memory_space<vmem>>, vector<1x288x8xf32>
    %42 = vector.shape_cast %41 : vector<1x288x8xf32> to vector<288x8xf32>
    %c3 = arith.constant 3 : index
    %c0_45 = arith.constant 0 : index
    %c0_46 = arith.constant 0 : index
    %43 = vector.load %arg2[%c3, %c0_45, %c0_46] : memref<9x4x8xbf16, #tpu.memory_space<vmem>>, vector<1x4x8xbf16>
    %44 = vector.shape_cast %43 : vector<1x4x8xbf16> to vector<4x8xbf16>
    %cst_47 = arith.constant dense<0.000000e+00> : vector<288x8xf32>
    %45 = tpu.matmul %40, %44, %cst_47 {dimension_numbers = #tpu.dot_dimension_numbers<[1], [0], [0], [1], [0, 0, 1, 1], [], []>} : vector<288x4xbf16>, vector<4x8xbf16>, vector<288x8xf32> -> vector<288x8xf32>
    %46 = arith.addf %42, %45 : vector<288x8xf32>
    %c0_48 = arith.constant 0 : index
    %c0_49 = arith.constant 0 : index
    %c0_50 = arith.constant 0 : index
    %47 = vector.load %arg4[%c0_48, %c0_49, %c0_50] : memref<1x288x8xf32, #tpu.memory_space<vmem>>, vector<1x288x8xf32>
    %48 = vector.shape_cast %47 : vector<1x288x8xf32> to vector<288x8xf32>
    %49 = vector.shape_cast %46 : vector<288x8xf32> to vector<1x288x8xf32>
    tpu.vector_store %arg4[%c0_48, %c0_49, %c0_50], %49 {strides = array<i32>} : memref<1x288x8xf32, #tpu.memory_space<vmem>>, vector<1x288x8xf32>,
    %c0_51 = arith.constant 0 : index
    %c19 = arith.constant 19 : index
    %c0_52 = arith.constant 0 : index
    %50 = vector.load %arg1[%c0_51, %c19, %c0_52] : memref<1x326x4xbf16, #tpu.memory_space<vmem>>, vector<1x288x4xbf16>
    %51 = vector.shape_cast %50 : vector<1x288x4xbf16> to vector<288x4xbf16>
    %c0_53 = arith.constant 0 : index
    %c0_54 = arith.constant 0 : index
    %c0_55 = arith.constant 0 : index
    %52 = vector.load %arg4[%c0_53, %c0_54, %c0_55] : memref<1x288x8xf32, #tpu.memory_space<vmem>>, vector<1x288x8xf32>
    %53 = vector.shape_cast %52 : vector<1x288x8xf32> to vector<288x8xf32>
    %c4 = arith.constant 4 : index
    %c0_56 = arith.constant 0 : index
    %c0_57 = arith.constant 0 : index
    %54 = vector.load %arg2[%c4, %c0_56, %c0_57] : memref<9x4x8xbf16, #tpu.memory_space<vmem>>, vector<1x4x8xbf16>
    %55 = vector.shape_cast %54 : vector<1x4x8xbf16> to vector<4x8xbf16>
    %cst_58 = arith.constant dense<0.000000e+00> : vector<288x8xf32>
    %56 = tpu.matmul %51, %55, %cst_58 {dimension_numbers = #tpu.dot_dimension_numbers<[1], [0], [0], [1], [0, 0, 1, 1], [], []>} : vector<288x4xbf16>, vector<4x8xbf16>, vector<288x8xf32> -> vector<288x8xf32>
    %57 = arith.addf %53, %56 : vector<288x8xf32>
    %c0_59 = arith.constant 0 : index
    %c0_60 = arith.constant 0 : index
    %c0_61 = arith.constant 0 : index
    %58 = vector.load %arg4[%c0_59, %c0_60, %c0_61] : memref<1x288x8xf32, #tpu.memory_space<vmem>>, vector<1x288x8xf32>
    %59 = vector.shape_cast %58 : vector<1x288x8xf32> to vector<288x8xf32>
    %60 = vector.shape_cast %57 : vector<288x8xf32> to vector<1x288x8xf32>
    tpu.vector_store %arg4[%c0_59, %c0_60, %c0_61], %60 {strides = array<i32>} : memref<1x288x8xf32, #tpu.memory_space<vmem>>, vector<1x288x8xf32>,
    %c0_62 = arith.constant 0 : index
    %c20 = arith.constant 20 : index
    %c0_63 = arith.constant 0 : index
    %61 = vector.load %arg1[%c0_62, %c20, %c0_63] : memref<1x326x4xbf16, #tpu.memory_space<vmem>>, vector<1x288x4xbf16>
    %62 = vector.shape_cast %61 : vector<1x288x4xbf16> to vector<288x4xbf16>
    %c0_64 = arith.constant 0 : index
    %c0_65 = arith.constant 0 : index
    %c0_66 = arith.constant 0 : index
    %63 = vector.load %arg4[%c0_64, %c0_65, %c0_66] : memref<1x288x8xf32, #tpu.memory_space<vmem>>, vector<1x288x8xf32>
    %64 = vector.shape_cast %63 : vector<1x288x8xf32> to vector<288x8xf32>
    %c5 = arith.constant 5 : index
    %c0_67 = arith.constant 0 : index
    %c0_68 = arith.constant 0 : index
    %65 = vector.load %arg2[%c5, %c0_67, %c0_68] : memref<9x4x8xbf16, #tpu.memory_space<vmem>>, vector<1x4x8xbf16>
    %66 = vector.shape_cast %65 : vector<1x4x8xbf16> to vector<4x8xbf16>
    %cst_69 = arith.constant dense<0.000000e+00> : vector<288x8xf32>
    %67 = tpu.matmul %62, %66, %cst_69 {dimension_numbers = #tpu.dot_dimension_numbers<[1], [0], [0], [1], [0, 0, 1, 1], [], []>} : vector<288x4xbf16>, vector<4x8xbf16>, vector<288x8xf32> -> vector<288x8xf32>
    %68 = arith.addf %64, %67 : vector<288x8xf32>
    %c0_70 = arith.constant 0 : index
    %c0_71 = arith.constant 0 : index
    %c0_72 = arith.constant 0 : index
    %69 = vector.load %arg4[%c0_70, %c0_71, %c0_72] : memref<1x288x8xf32, #tpu.memory_space<vmem>>, vector<1x288x8xf32>
    %70 = vector.shape_cast %69 : vector<1x288x8xf32> to vector<288x8xf32>
    %71 = vector.shape_cast %68 : vector<288x8xf32> to vector<1x288x8xf32>
    tpu.vector_store %arg4[%c0_70, %c0_71, %c0_72], %71 {strides = array<i32>} : memref<1x288x8xf32, #tpu.memory_space<vmem>>, vector<1x288x8xf32>,
    %c0_73 = arith.constant 0 : index
    %c36 = arith.constant 36 : index
    %c0_74 = arith.constant 0 : index
    %72 = vector.load %arg1[%c0_73, %c36, %c0_74] : memref<1x326x4xbf16, #tpu.memory_space<vmem>>, vector<1x288x4xbf16>
    %73 = vector.shape_cast %72 : vector<1x288x4xbf16> to vector<288x4xbf16>
    %c0_75 = arith.constant 0 : index
    %c0_76 = arith.constant 0 : index
    %c0_77 = arith.constant 0 : index
    %74 = vector.load %arg4[%c0_75, %c0_76, %c0_77] : memref<1x288x8xf32, #tpu.memory_space<vmem>>, vector<1x288x8xf32>
    %75 = vector.shape_cast %74 : vector<1x288x8xf32> to vector<288x8xf32>
    %c6 = arith.constant 6 : index
    %c0_78 = arith.constant 0 : index
    %c0_79 = arith.constant 0 : index
    %76 = vector.load %arg2[%c6, %c0_78, %c0_79] : memref<9x4x8xbf16, #tpu.memory_space<vmem>>, vector<1x4x8xbf16>
    %77 = vector.shape_cast %76 : vector<1x4x8xbf16> to vector<4x8xbf16>
    %cst_80 = arith.constant dense<0.000000e+00> : vector<288x8xf32>
    %78 = tpu.matmul %73, %77, %cst_80 {dimension_numbers = #tpu.dot_dimension_numbers<[1], [0], [0], [1], [0, 0, 1, 1], [], []>} : vector<288x4xbf16>, vector<4x8xbf16>, vector<288x8xf32> -> vector<288x8xf32>
    %79 = arith.addf %75, %78 : vector<288x8xf32>
    %c0_81 = arith.constant 0 : index
    %c0_82 = arith.constant 0 : index
    %c0_83 = arith.constant 0 : index
    %80 = vector.load %arg4[%c0_81, %c0_82, %c0_83] : memref<1x288x8xf32, #tpu.memory_space<vmem>>, vector<1x288x8xf32>
    %81 = vector.shape_cast %80 : vector<1x288x8xf32> to vector<288x8xf32>
    %82 = vector.shape_cast %79 : vector<288x8xf32> to vector<1x288x8xf32>
    tpu.vector_store %arg4[%c0_81, %c0_82, %c0_83], %82 {strides = array<i32>} : memref<1x288x8xf32, #tpu.memory_space<vmem>>, vector<1x288x8xf32>,
    %c0_84 = arith.constant 0 : index
    %c37 = arith.constant 37 : index
    %c0_85 = arith.constant 0 : index
    %83 = vector.load %arg1[%c0_84, %c37, %c0_85] : memref<1x326x4xbf16, #tpu.memory_space<vmem>>, vector<1x288x4xbf16>
    %84 = vector.shape_cast %83 : vector<1x288x4xbf16> to vector<288x4xbf16>
    %c0_86 = arith.constant 0 : index
    %c0_87 = arith.constant 0 : index
    %c0_88 = arith.constant 0 : index
    %85 = vector.load %arg4[%c0_86, %c0_87, %c0_88] : memref<1x288x8xf32, #tpu.memory_space<vmem>>, vector<1x288x8xf32>
    %86 = vector.shape_cast %85 : vector<1x288x8xf32> to vector<288x8xf32>
    %c7 = arith.constant 7 : index
    %c0_89 = arith.constant 0 : index
    %c0_90 = arith.constant 0 : index
    %87 = vector.load %arg2[%c7, %c0_89, %c0_90] : memref<9x4x8xbf16, #tpu.memory_space<vmem>>, vector<1x4x8xbf16>
    %88 = vector.shape_cast %87 : vector<1x4x8xbf16> to vector<4x8xbf16>
    %cst_91 = arith.constant dense<0.000000e+00> : vector<288x8xf32>
    %89 = tpu.matmul %84, %88, %cst_91 {dimension_numbers = #tpu.dot_dimension_numbers<[1], [0], [0], [1], [0, 0, 1, 1], [], []>} : vector<288x4xbf16>, vector<4x8xbf16>, vector<288x8xf32> -> vector<288x8xf32>
    %90 = arith.addf %86, %89 : vector<288x8xf32>
    %c0_92 = arith.constant 0 : index
    %c0_93 = arith.constant 0 : index
    %c0_94 = arith.constant 0 : index
    %91 = vector.load %arg4[%c0_92, %c0_93, %c0_94] : memref<1x288x8xf32, #tpu.memory_space<vmem>>, vector<1x288x8xf32>
    %92 = vector.shape_cast %91 : vector<1x288x8xf32> to vector<288x8xf32>
    %93 = vector.shape_cast %90 : vector<288x8xf32> to vector<1x288x8xf32>
    tpu.vector_store %arg4[%c0_92, %c0_93, %c0_94], %93 {strides = array<i32>} : memref<1x288x8xf32, #tpu.memory_space<vmem>>, vector<1x288x8xf32>,
    %c0_95 = arith.constant 0 : index
    %c38 = arith.constant 38 : index
    %c0_96 = arith.constant 0 : index
    %94 = vector.load %arg1[%c0_95, %c38, %c0_96] : memref<1x326x4xbf16, #tpu.memory_space<vmem>>, vector<1x288x4xbf16>
    %95 = vector.shape_cast %94 : vector<1x288x4xbf16> to vector<288x4xbf16>
    %c0_97 = arith.constant 0 : index
    %c0_98 = arith.constant 0 : index
    %c0_99 = arith.constant 0 : index
    %96 = vector.load %arg4[%c0_97, %c0_98, %c0_99] : memref<1x288x8xf32, #tpu.memory_space<vmem>>, vector<1x288x8xf32>
    %97 = vector.shape_cast %96 : vector<1x288x8xf32> to vector<288x8xf32>
    %c8 = arith.constant 8 : index
    %c0_100 = arith.constant 0 : index
    %c0_101 = arith.constant 0 : index
    %98 = vector.load %arg2[%c8, %c0_100, %c0_101] : memref<9x4x8xbf16, #tpu.memory_space<vmem>>, vector<1x4x8xbf16>
    %99 = vector.shape_cast %98 : vector<1x4x8xbf16> to vector<4x8xbf16>
    %cst_102 = arith.constant dense<0.000000e+00> : vector<288x8xf32>
    %100 = tpu.matmul %95, %99, %cst_102 {dimension_numbers = #tpu.dot_dimension_numbers<[1], [0], [0], [1], [0, 0, 1, 1], [], []>} : vector<288x4xbf16>, vector<4x8xbf16>, vector<288x8xf32> -> vector<288x8xf32>
    %101 = arith.addf %97, %100 : vector<288x8xf32>
    %c0_103 = arith.constant 0 : index
    %c0_104 = arith.constant 0 : index
    %c0_105 = arith.constant 0 : index
    %102 = vector.load %arg4[%c0_103, %c0_104, %c0_105] : memref<1x288x8xf32, #tpu.memory_space<vmem>>, vector<1x288x8xf32>
    %103 = vector.shape_cast %102 : vector<1x288x8xf32> to vector<288x8xf32>
    %104 = vector.shape_cast %101 : vector<288x8xf32> to vector<1x288x8xf32>
    tpu.vector_store %arg4[%c0_103, %c0_104, %c0_105], %104 {strides = array<i32>} : memref<1x288x8xf32, #tpu.memory_space<vmem>>, vector<1x288x8xf32>,
    return
  }
  func.func @transform_0(%arg0: i32) -> (i32, i32, i32) {
    %c0_i32 = arith.constant 0 : i32
    %c0_i32_0 = arith.constant 0 : i32
    %c0_i32_1 = arith.constant 0 : i32
    return %arg0, %c0_i32, %c0_i32_0 : i32, i32, i32
  }
  func.func @transform_1(%arg0: i32) -> (i32, i32, i32) {
    %c0_i32 = arith.constant 0 : i32
    %c0_i32_0 = arith.constant 0 : i32
    %c0_i32_1 = arith.constant 0 : i32
    %c0_i32_2 = arith.constant 0 : i32
    return %c0_i32, %c0_i32_0, %c0_i32_1 : i32, i32, i32
  }
  func.func @transform_2(%arg0: i32) -> (i32, i32) {
    %c0_i32 = arith.constant 0 : i32
    %c0_i32_0 = arith.constant 0 : i32
    %c0_i32_1 = arith.constant 0 : i32
    return %c0_i32, %c0_i32_0 : i32, i32
  }
  func.func @transform_3(%arg0: i32) -> (i32, i32, i32) {
    %c0_i32 = arith.constant 0 : i32
    %c0_i32_0 = arith.constant 0 : i32
    %c0_i32_1 = arith.constant 0 : i32
    return %arg0, %c0_i32, %c0_i32_0 : i32, i32, i32
  }
}

</mosaic_0001>

<llo_original>
// kernel: tpu_custom_call.1
$region0: #{tpu_custom_call.1}
  #allocation0 [shape = 'u32[]', space=smem, size = 0x4, offset = 0x4, fixed_abs, tag = 'smem constant byte address 0x4 - core index']
  #allocation1 [shape = 'u32[144,128]{1,0:T(1,128)}', space=vmem, size = 0x12000, scoped, tag = 'internal scratch']
  %s0 = inlined_call_operand.vmem [shape: bf16[2,326,4], index: 0, kind: input, shape index: {}]
  %s1 = inlined_call_operand.vmem [shape: bf16[9,4,8], index: 1, kind: input, shape index: {}]
  %s2 = inlined_call_operand.vmem [shape: f32[1,8], index: 2, kind: input, shape index: {}]
  %s3 = inlined_call_operand.vmem [shape: f32[2,288,8], index: 3, kind: output, shape index: {}]
  %s4 = sld [smem:[#allocation0]]
  $region45: #{tpu_custom_call.1} parent=0
    _
  %s6 = ssub.s32 1, %s4
  %s7 = scalar_select 0, %s6, %s4
  loop: start=0, step=1, limit=4
  $region2: #{tpu_custom_call.1} parent=0 // loop_pre_header
    _
  $region3: #{tpu_custom_call.1} parent=0 // loop_header
    %s9 = sphi 0, %s13
    %p10 = scmp.ge.s32.totalorder %s9, 4
    %s19 = sphi 0, %s21
    %s22 = sphi 0, %s19
    %s23 = sphi 0, %s22
    %s39 = sphi 0, %s23
    %s43 = sphi 0, %s43
    %s45 = sphi 0, %s43
    %s46 = sphi 0, %s45
    %s60 = sphi 0, %s46
    %s64 = sphi 0, %s64
    %s66 = sphi 0, %s64
    %s67 = sphi 0, %s66
    %s81 = sphi 0, %s67
    %s87 = sphi 0, %s89
    %s90 = sphi 0, %s87
    %s91 = sphi 0, %s90
    %s107 = sphi 0, %s91
  $region4: #{tpu_custom_call.1} parent=0 // loop_header_branch
    %12 = sbr.rel (%p10) target = $region8
  $region5: #{tpu_custom_call.1} parent=0 // loop_body
    %s14 = ssub.s32 %s9, 1
    %s15 = ssub.s32 %s9, 2
    %s16 = sadd.s32 %s9, 1
    %s17 = ssub.s32 %s9, %s16
    %p18 = scmp.eq.s32.totalorder %s17, 0
    %s20 = sadd.s32 %s19, 1
    %s21 = scalar_select %p18, %s19, %s20
    %p24 = pneg %p18
    %p25 = scmp.eq.s32.totalorder %s9, 1
    %p26 = por %p24, %p25
    %p27 = scmp.ne.s32.totalorder %s19, %s22
    %p28 = scmp.eq.s32.totalorder %s9, 0
    %p29 = por %p27, %p28
    %p30 = scmp.ne.s32.totalorder %s19, %s22
    %p31 = scmp.eq.s32.totalorder %s14, 1
    %p32 = por %p30, %p31
    %p33 = scmp.ne.s32.totalorder %s22, %s23
    %p34 = scmp.eq.s32.totalorder %s14, 0
    %p35 = por %p33, %p34
    %p36 = scmp.ne.s32.totalorder %s22, %s23
    %p37 = scmp.eq.s32.totalorder %s15, 1
    %p38 = por %p36, %p37
    %p40 = scmp.ne.s32.totalorder %s23, %s39
    %p41 = scmp.eq.s32.totalorder %s15, 0
    %p42 = por %p40, %p41
    %s44 = sadd.s32 %s43, 1
    %p47 = scmp.eq.s32.totalorder %s9, 1
    %p48 = scmp.ne.s32.totalorder %s43, %s45
    %p49 = scmp.eq.s32.totalorder %s9, 0
    %p50 = por %p48, %p49
    %p51 = scmp.ne.s32.totalorder %s43, %s45
    %p52 = scmp.eq.s32.totalorder %s14, 1
    %p53 = por %p51, %p52
    %p54 = scmp.ne.s32.totalorder %s45, %s46
    %p55 = scmp.eq.s32.totalorder %s14, 0
    %p56 = por %p54, %p55
    %p57 = scmp.ne.s32.totalorder %s45, %s46
    %p58 = scmp.eq.s32.totalorder %s15, 1
    %p59 = por %p57, %p58
    %p61 = scmp.ne.s32.totalorder %s46, %s60
    %p62 = scmp.eq.s32.totalorder %s15, 0
    %p63 = por %p61, %p62
    %s65 = sadd.s32 %s64, 1
    %p68 = scmp.eq.s32.totalorder %s9, 1
    %p69 = scmp.ne.s32.totalorder %s64, %s66
    %p70 = scmp.eq.s32.totalorder %s9, 0
    %p71 = por %p69, %p70
    %p72 = scmp.ne.s32.totalorder %s64, %s66
    %p73 = scmp.eq.s32.totalorder %s14, 1
    %p74 = por %p72, %p73
    %p75 = scmp.ne.s32.totalorder %s66, %s67
    %p76 = scmp.eq.s32.totalorder %s14, 0
    %p77 = por %p75, %p76
    %p78 = scmp.ne.s32.totalorder %s66, %s67
    %p79 = scmp.eq.s32.totalorder %s15, 1
    %p80 = por %p78, %p79
    %p82 = scmp.ne.s32.totalorder %s67, %s81
    %p83 = scmp.eq.s32.totalorder %s15, 0
    %p84 = por %p82, %p83
    %s85 = ssub.s32 %s9, %s16
    %p86 = scmp.eq.s32.totalorder %s85, 0
    %s88 = sadd.s32 %s87, 1
    %s89 = scalar_select %p86, %s87, %s88
    %p92 = pneg %p86
    %p93 = scmp.eq.s32.totalorder %s9, 1
    %p94 = por %p92, %p93
    %p95 = scmp.ne.s32.totalorder %s87, %s90
    %p96 = scmp.eq.s32.totalorder %s9, 0
    %p97 = por %p95, %p96
    %p98 = scmp.ne.s32.totalorder %s87, %s90
    %p99 = scmp.eq.s32.totalorder %s14, 1
    %p100 = por %p98, %p99
    %p101 = scmp.ne.s32.totalorder %s90, %s91
    %p102 = scmp.eq.s32.totalorder %s14, 0
    %p103 = por %p101, %p102
    %p104 = scmp.ne.s32.totalorder %s90, %s91
    %p105 = scmp.eq.s32.totalorder %s15, 1
    %p106 = por %p104, %p105
    %p108 = scmp.ne.s32.totalorder %s91, %s107
    %p109 = scmp.eq.s32.totalorder %s15, 0
    %p110 = por %p108, %p109
    %p111 = scmp.le.s32.totalorder 1, %s9
    %p112 = scmp.lt.s32.totalorder %s9, 3
    %p113 = pnand %p111, %p112
    %p114 = pneg %p113
    // Predicated region
    $region9: #{tpu_custom_call.1} parent=5 // pred_check
      _
    $region10: #{tpu_custom_call.1} parent=5 // pred_check_branch
      %116 = sbr.rel (%p113) target = $region12
    $region11: #{tpu_custom_call.1} parent=5 // pred_region
      %s117 = ssub.s32 %s9, 1
      // Predicated region
      $region13: #{tpu_custom_call.1} parent=11 // pred_check
        %p118 = pneg %p56
      $region14: #{tpu_custom_call.1} parent=11 // pred_check_branch
        %120 = sbr.rel (%p118) target = $region16
      $region15: #{tpu_custom_call.1} parent=11 // pred_region
        _
      $region16: #{tpu_custom_call.1} parent=11 // pred_fallthru
        _
      // Predicated region
      $region17: #{tpu_custom_call.1} parent=11 // pred_check
        %p121 = pneg %p77
      $region18: #{tpu_custom_call.1} parent=11 // pred_check_branch
        %123 = sbr.rel (%p121) target = $region20
      $region19: #{tpu_custom_call.1} parent=11 // pred_region
        _
      $region20: #{tpu_custom_call.1} parent=11 // pred_fallthru
        _
    $region12: #{tpu_custom_call.1} parent=5 // pred_fallthru
      _
    %p124 = scmp.lt.s32.totalorder %s9, 2
    // Predicated region
    $region21: #{tpu_custom_call.1} parent=5 // pred_check
      %p125 = pneg %p124
    $region22: #{tpu_custom_call.1} parent=5 // pred_check_branch
      %127 = sbr.rel (%p125) target = $region24
    $region23: #{tpu_custom_call.1} parent=5 // pred_region
      // Predicated region
      $region25: #{tpu_custom_call.1} parent=23 // pred_check
        %p128 = pneg %p29
      $region26: #{tpu_custom_call.1} parent=23 // pred_check_branch
        %130 = sbr.rel (%p128) target = $region28
      $region27: #{tpu_custom_call.1} parent=23 // pred_region
        %p131 = scmp.lt.s32.totalorder %s9, 1
        %s132 = scalar_select %p131, %s9, 1
        %s133 = smul.addr %s132, 41
        %s134 = smul.addr %s133, 4
        %s135 = scalar_lea.vmem %s0, %s134
      $region28: #{tpu_custom_call.1} parent=23 // pred_fallthru
        _
    $region24: #{tpu_custom_call.1} parent=5 // pred_fallthru
      _
    %p136 = scmp.le.s32.totalorder 1, %s9
    %p137 = scmp.lt.s32.totalorder %s9, 3
    %p138 = pnand %p136, %p137
    %p139 = pneg %p138
    // Predicated region
    $region29: #{tpu_custom_call.1} parent=5 // pred_check
      _
    $region30: #{tpu_custom_call.1} parent=5 // pred_check_branch
      %141 = sbr.rel (%p138) target = $region32
    $region31: #{tpu_custom_call.1} parent=5 // pred_region
      %s142 = ssub.s32 %s9, 1
      %p143 = scmp.lt.s32.totalorder %s14, 1
      %s144 = scalar_select %p143, %s14, 1
      %s145 = smul.addr %s144, 41
      %s146 = smul.addr %s145, 4
      %s147 = scalar_lea.vmem %s0, %s146
      %p148 = pneg %p35
      %p149 = pneg %p32
      %p150 = pneg %p56
      %p151 = pneg %p53
      %p152 = pneg %p77
      %p153 = pneg %p74
      %p154 = pneg %p103
      %p155 = pneg %p100
      %p156 = scmp.lt.s32.totalorder %s14, 1
      %s157 = scalar_select %p156, %s14, 1
      %s158 = smul.addr %s157, 36
      %s159 = smul.addr %s158, 8
      %s160 = scalar_lea.vmem %s3, %s159
      %p161 = scmp.lt.s32.totalorder %s14, 1
      %s162 = scalar_select %p161, %s14, 1
      %s163 = smul.addr %s162, 41
      %s164 = smul.addr %s163, 4
      %s165 = scalar_lea.vmem %s0, %s164
      %p166 = scmp.lt.s32.totalorder %s14, 1
      %s167 = scalar_select %p166, %s14, 1
      %s168 = smul.addr %s167, 36
      %s169 = smul.addr %s168, 8
      %s170 = scalar_lea.vmem %s3, %s169
      %v172 = vld [vmem:[%s2] sm:$0x1]
      %v174 = vlaneseq
      %v175 = vshrl.u32 %v174, 7
      %v176 = vsub.s32 0, %v175
      %v177 = vrot.slane %v172, %v176
      %vm179 = vcmask 64512
      %180 = vst.msk [vmem:[%s170] sm:$0xff] %vm179, %v177
      %181 = vst.msk [vmem:[%s170 + $0x8] sm:$0xff] %vm179, %v177
      %182 = vst.msk [vmem:[%s170 + $0x10] sm:$0xff] %vm179, %v177
      %183 = vst.msk [vmem:[%s170 + $0x18] sm:$0xff] %vm179, %v177
      %184 = vst.msk [vmem:[%s170 + $0x20] sm:$0xff] %vm179, %v177
      %185 = vst.msk [vmem:[%s170 + $0x28] sm:$0xff] %vm179, %v177
      %186 = vst.msk [vmem:[%s170 + $0x30] sm:$0xff] %vm179, %v177
      %187 = vst.msk [vmem:[%s170 + $0x38] sm:$0xff] %vm179, %v177
      %188 = vst.msk [vmem:[%s170 + $0x40] sm:$0xff] %vm179, %v177
      %189 = vst.msk [vmem:[%s170 + $0x48] sm:$0xff] %vm179, %v177
      %190 = vst.msk [vmem:[%s170 + $0x50] sm:$0xff] %vm179, %v177
      %191 = vst.msk [vmem:[%s170 + $0x58] sm:$0xff] %vm179, %v177
      %192 = vst.msk [vmem:[%s170 + $0x60] sm:$0xff] %vm179, %v177
      %193 = vst.msk [vmem:[%s170 + $0x68] sm:$0xff] %vm179, %v177
      %194 = vst.msk [vmem:[%s170 + $0x70] sm:$0xff] %vm179, %v177
      %195 = vst.msk [vmem:[%s170 + $0x78] sm:$0xff] %vm179, %v177
      %196 = vst.msk [vmem:[%s170 + $0x80] sm:$0xff] %vm179, %v177
      %197 = vst.msk [vmem:[%s170 + $0x88] sm:$0xff] %vm179, %v177
      %198 = vst.msk [vmem:[%s170 + $0x90] sm:$0xff] %vm179, %v177
      %199 = vst.msk [vmem:[%s170 + $0x98] sm:$0xff] %vm179, %v177
      %200 = vst.msk [vmem:[%s170 + $0xa0] sm:$0xff] %vm179, %v177
      %201 = vst.msk [vmem:[%s170 + $0xa8] sm:$0xff] %vm179, %v177
      %202 = vst.msk [vmem:[%s170 + $0xb0] sm:$0xff] %vm179, %v177
      %203 = vst.msk [vmem:[%s170 + $0xb8] sm:$0xff] %vm179, %v177
      %204 = vst.msk [vmem:[%s170 + $0xc0] sm:$0xff] %vm179, %v177
      %205 = vst.msk [vmem:[%s170 + $0xc8] sm:$0xff] %vm179, %v177
      %206 = vst.msk [vmem:[%s170 + $0xd0] sm:$0xff] %vm179, %v177
      %207 = vst.msk [vmem:[%s170 + $0xd8] sm:$0xff] %vm179, %v177
      %208 = vst.msk [vmem:[%s170 + $0xe0] sm:$0xff] %vm179, %v177
      %209 = vst.msk [vmem:[%s170 + $0xe8] sm:$0xff] %vm179, %v177
      %210 = vst.msk [vmem:[%s170 + $0xf0] sm:$0xff] %vm179, %v177
      %211 = vst.msk [vmem:[%s170 + $0xf8] sm:$0xff] %vm179, %v177
      %212 = vst.msk [vmem:[%s170 + $0x100] sm:$0xff] %vm179, %v177
      %213 = vst.msk [vmem:[%s170 + $0x108] sm:$0xff] %vm179, %v177
      %214 = vst.msk [vmem:[%s170 + $0x110] sm:$0xff] %vm179, %v177
      %215 = vst.msk [vmem:[%s170 + $0x118] sm:$0xff] %vm179, %v177
      %v216 = vld [vmem:[%s165] sm:$0xf]
      %v217 = vld [vmem:[%s165 + $0x4] sm:$0xf]
      %v218 = vld [vmem:[%s165 + $0x8] sm:$0xf]
      %v219 = vld [vmem:[%s165 + $0xc] sm:$0xf]
      %v220 = vld [vmem:[%s165 + $0x10] sm:$0xf]
      %v221 = vld [vmem:[%s165 + $0x14] sm:$0xf]
      %v222 = vld [vmem:[%s165 + $0x18] sm:$0xf]
      %v223 = vld [vmem:[%s165 + $0x1c] sm:$0xf]
      %v224 = vld [vmem:[%s165 + $0x20] sm:$0xf]
      %v225 = vld [vmem:[%s165 + $0x24] sm:$0xf]
      %v226 = vld [vmem:[%s165 + $0x28] sm:$0xf]
      %v227 = vld [vmem:[%s165 + $0x2c] sm:$0xf]
      %v228 = vld [vmem:[%s165 + $0x30] sm:$0xf]
      %v229 = vld [vmem:[%s165 + $0x34] sm:$0xf]
      %v230 = vld [vmem:[%s165 + $0x38] sm:$0xf]
      %v231 = vld [vmem:[%s165 + $0x3c] sm:$0xf]
      %v232 = vld [vmem:[%s165 + $0x40] sm:$0xf]
      %v233 = vld [vmem:[%s165 + $0x44] sm:$0xf]
      %v234 = vld [vmem:[%s165 + $0x48] sm:$0xf]
      %v235 = vld [vmem:[%s165 + $0x4c] sm:$0xf]
      %v236 = vld [vmem:[%s165 + $0x50] sm:$0xf]
      %v237 = vld [vmem:[%s165 + $0x54] sm:$0xf]
      %v238 = vld [vmem:[%s165 + $0x58] sm:$0xf]
      %v239 = vld [vmem:[%s165 + $0x5c] sm:$0xf]
      %v240 = vld [vmem:[%s165 + $0x60] sm:$0xf]
      %v241 = vld [vmem:[%s165 + $0x64] sm:$0xf]
      %v242 = vld [vmem:[%s165 + $0x68] sm:$0xf]
      %v243 = vld [vmem:[%s165 + $0x6c] sm:$0xf]
      %v244 = vld [vmem:[%s165 + $0x70] sm:$0xf]
      %v245 = vld [vmem:[%s165 + $0x74] sm:$0xf]
      %v246 = vld [vmem:[%s165 + $0x78] sm:$0xf]
      %v247 = vld [vmem:[%s165 + $0x7c] sm:$0xf]
      %v248 = vld [vmem:[%s165 + $0x80] sm:$0xf]
      %v249 = vld [vmem:[%s165 + $0x84] sm:$0xf]
      %v250 = vld [vmem:[%s165 + $0x88] sm:$0xf]
      %v251 = vld [vmem:[%s165 + $0x8c] sm:$0xf]
      %v252 = vld [vmem:[%s170] sm:$0xff]
      %v253 = vld [vmem:[%s170 + $0x8] sm:$0xff]
      %v254 = vld [vmem:[%s170 + $0x10] sm:$0xff]
      %v255 = vld [vmem:[%s170 + $0x18] sm:$0xff]
      %v256 = vld [vmem:[%s170 + $0x20] sm:$0xff]
      %v257 = vld [vmem:[%s170 + $0x28] sm:$0xff]
      %v258 = vld [vmem:[%s170 + $0x30] sm:$0xff]
      %v259 = vld [vmem:[%s170 + $0x38] sm:$0xff]
      %v260 = vld [vmem:[%s170 + $0x40] sm:$0xff]
      %v261 = vld [vmem:[%s170 + $0x48] sm:$0xff]
      %v262 = vld [vmem:[%s170 + $0x50] sm:$0xff]
      %v263 = vld [vmem:[%s170 + $0x58] sm:$0xff]
      %v264 = vld [vmem:[%s170 + $0x60] sm:$0xff]
      %v265 = vld [vmem:[%s170 + $0x68] sm:$0xff]
      %v266 = vld [vmem:[%s170 + $0x70] sm:$0xff]
      %v267 = vld [vmem:[%s170 + $0x78] sm:$0xff]
      %v268 = vld [vmem:[%s170 + $0x80] sm:$0xff]
      %v269 = vld [vmem:[%s170 + $0x88] sm:$0xff]
      %v270 = vld [vmem:[%s170 + $0x90] sm:$0xff]
      %v271 = vld [vmem:[%s170 + $0x98] sm:$0xff]
      %v272 = vld [vmem:[%s170 + $0xa0] sm:$0xff]
      %v273 = vld [vmem:[%s170 + $0xa8] sm:$0xff]
      %v274 = vld [vmem:[%s170 + $0xb0] sm:$0xff]
      %v275 = vld [vmem:[%s170 + $0xb8] sm:$0xff]
      %v276 = vld [vmem:[%s170 + $0xc0] sm:$0xff]
      %v277 = vld [vmem:[%s170 + $0xc8] sm:$0xff]
      %v278 = vld [vmem:[%s170 + $0xd0] sm:$0xff]
      %v279 = vld [vmem:[%s170 + $0xd8] sm:$0xff]
      %v280 = vld [vmem:[%s170 + $0xe0] sm:$0xff]
      %v281 = vld [vmem:[%s170 + $0xe8] sm:$0xff]
      %v282 = vld [vmem:[%s170 + $0xf0] sm:$0xff]
      %v283 = vld [vmem:[%s170 + $0xf8] sm:$0xff]
      %v284 = vld [vmem:[%s170 + $0x100] sm:$0xff]
      %v285 = vld [vmem:[%s170 + $0x108] sm:$0xff]
      %v286 = vld [vmem:[%s170 + $0x110] sm:$0xff]
      %v287 = vld [vmem:[%s170 + $0x118] sm:$0xff]
      %v288 = vld [vmem:[%s1] sm:$0x3]
      %v325 = vunpack.c.l.b16 %v216
      %v326 = vunpack.c.l.b16 %v217
      %v327 = vunpack.c.l.b16 %v218
      %v328 = vunpack.c.l.b16 %v219
      %v329 = vunpack.c.l.b16 %v220
      %v330 = vunpack.c.l.b16 %v221
      %v331 = vunpack.c.l.b16 %v222
      %v332 = vunpack.c.l.b16 %v223
      %v333 = vunpack.c.l.b16 %v224
      %v334 = vunpack.c.l.b16 %v225
      %v335 = vunpack.c.l.b16 %v226
      %v336 = vunpack.c.l.b16 %v227
      %v337 = vunpack.c.l.b16 %v228
      %v338 = vunpack.c.l.b16 %v229
      %v339 = vunpack.c.l.b16 %v230
      %v340 = vunpack.c.l.b16 %v231
      %v341 = vunpack.c.l.b16 %v232
      %v342 = vunpack.c.l.b16 %v233
      %v343 = vunpack.c.l.b16 %v234
      %v344 = vunpack.c.l.b16 %v235
      %v345 = vunpack.c.l.b16 %v236
      %v346 = vunpack.c.l.b16 %v237
      %v347 = vunpack.c.l.b16 %v238
      %v348 = vunpack.c.l.b16 %v239
      %v349 = vunpack.c.l.b16 %v240
      %v350 = vunpack.c.l.b16 %v241
      %v351 = vunpack.c.l.b16 %v242
      %v352 = vunpack.c.l.b16 %v243
      %v353 = vunpack.c.l.b16 %v244
      %v354 = vunpack.c.l.b16 %v245
      %v355 = vunpack.c.l.b16 %v246
      %v356 = vunpack.c.l.b16 %v247
      %v357 = vunpack.c.l.b16 %v248
      %v358 = vunpack.c.l.b16 %v249
      %v359 = vunpack.c.l.b16 %v250
      %v360 = vunpack.c.l.b16 %v251
      %v361 = vpack.c.b16 %v326, %v325
      %v362 = vpack.c.b16 %v328, %v327
      %v363 = vpack.c.b16 %v330, %v329
      %v364 = vpack.c.b16 %v332, %v331
      %v365 = vpack.c.b16 %v334, %v333
      %v366 = vpack.c.b16 %v336, %v335
      %v367 = vpack.c.b16 %v338, %v337
      %v368 = vpack.c.b16 %v340, %v339
      %v369 = vpack.c.b16 %v342, %v341
      %v370 = vpack.c.b16 %v344, %v343
      %v371 = vpack.c.b16 %v346, %v345
      %v372 = vpack.c.b16 %v348, %v347
      %v373 = vpack.c.b16 %v350, %v349
      %v374 = vpack.c.b16 %v352, %v351
      %v375 = vpack.c.b16 %v354, %v353
      %v376 = vpack.c.b16 %v356, %v355
      %v377 = vpack.c.b16 %v358, %v357
      %v378 = vpack.c.b16 %v360, %v359
      %vm379 = vcmask 31744
      %v381 = vsel %vm379, %v361, 0
      %v384 = vsel %vm379, %v362, 0
      %v387 = vsel %vm379, %v363, 0
      %v390 = vsel %vm379, %v364, 0
      %v393 = vsel %vm379, %v365, 0
      %v396 = vsel %vm379, %v366, 0
      %v399 = vsel %vm379, %v367, 0
      %v402 = vsel %vm379, %v368, 0
      %v405 = vsel %vm379, %v369, 0
      %v408 = vsel %vm379, %v370, 0
      %v411 = vsel %vm379, %v371, 0
      %v414 = vsel %vm379, %v372, 0
      %v417 = vsel %vm379, %v373, 0
      %v420 = vsel %vm379, %v374, 0
      %v423 = vsel %vm379, %v375, 0
      %v426 = vsel %vm379, %v376, 0
      %v429 = vsel %vm379, %v377, 0
      %v432 = vsel %vm379, %v378, 0
      %vm434 = vcmask 1041408
      %v436 = vsel %vm434, %v288, 0
      %438 = vmatprep.subr.bf16.mxu0 0
      %439 = vmatpush1.bf16.msra.mxu0 %v436
      %440 = vmatprep.subr.bf16.mxu0 0
      %441 = vmatpush1.bf16.msra.mxu0 0
      %442 = vmatprep.subr.bf16.mxu0 0
      %443 = vmatpush1.bf16.msra.mxu0 0
      %444 = vmatprep.subr.bf16.mxu0 0
      %445 = vmatpush1.bf16.msra.mxu0 0
      %446 = vmatprep.subr.bf16.mxu0 0
      %447 = vmatpush1.bf16.msra.mxu0 0
      %448 = vmatprep.subr.bf16.mxu0 0
      %449 = vmatpush1.bf16.msra.mxu0 0
      %450 = vmatprep.subr.bf16.mxu0 0
      %451 = vmatpush1.bf16.msra.mxu0 0
      %452 = vmatprep.subr.bf16.mxu0 0
      %453 = vmatpush1.bf16.msra.mxu0 0
      %454 = vmatprep.subr.bf16.mxu0 0
      %455 = vmatpush1.bf16.msra.mxu0 0
      %456 = vmatprep.subr.bf16.mxu0 0
      %457 = vmatpush1.bf16.msra.mxu0 0
      %458 = vmatprep.subr.bf16.mxu0 0
      %459 = vmatpush1.bf16.msra.mxu0 0
      %460 = vmatprep.subr.bf16.mxu0 0
      %461 = vmatpush1.bf16.msra.mxu0 0
      %462 = vmatprep.subr.bf16.mxu0 0
      %463 = vmatpush1.bf16.msra.mxu0 0
      %464 = vmatprep.subr.bf16.mxu0 0
      %465 = vmatpush1.bf16.msra.mxu0 0
      %466 = vmatprep.subr.bf16.mxu0 0
      %467 = vmatpush1.bf16.msra.mxu0 0
      %468 = vmatprep.subr.bf16.mxu0 0
      %469 = vmatpush1.bf16.msra.mxu0 0
      %470 = vmatprep.mubr.bf16.mxu0 0
      %471 = vmatmul.mubr.bf16.gmra.mrb[0].mxu0 %v381
      %v472 = vpop.f32.mrb[0].mxu0
      %v473 = vadd.f32 0.0, %v472
      %v474 = vpop.f32.mrb[0].mxu0
      %v475 = vpop.f32.mrb[0].mxu0
      %v476 = vadd.f32 0.0, %v475
      %v477 = vpop.f32.mrb[0].mxu0
      %478 = vmatprep.mubr.bf16.mxu0 0
      %479 = vmatmul.mubr.bf16.gmra.mrb[0].mxu0 %v384
      %v480 = vpop.f32.mrb[0].mxu0
      %v481 = vadd.f32 0.0, %v480
      %v482 = vpop.f32.mrb[0].mxu0
      %v483 = vpop.f32.mrb[0].mxu0
      %v484 = vadd.f32 0.0, %v483
      %v485 = vpop.f32.mrb[0].mxu0
      %486 = vmatprep.mubr.bf16.mxu0 0
      %487 = vmatmul.mubr.bf16.gmra.mrb[0].mxu0 %v387
      %v488 = vpop.f32.mrb[0].mxu0
      %v489 = vadd.f32 0.0, %v488
      %v490 = vpop.f32.mrb[0].mxu0
      %v491 = vpop.f32.mrb[0].mxu0
      %v492 = vadd.f32 0.0, %v491
      %v493 = vpop.f32.mrb[0].mxu0
      %494 = vmatprep.mubr.bf16.mxu0 0
      %495 = vmatmul.mubr.bf16.gmra.mrb[0].mxu0 %v390
      %v496 = vpop.f32.mrb[0].mxu0
      %v497 = vadd.f32 0.0, %v496
      %v498 = vpop.f32.mrb[0].mxu0
      %v499 = vpop.f32.mrb[0].mxu0
      %v500 = vadd.f32 0.0, %v499
      %v501 = vpop.f32.mrb[0].mxu0
      %502 = vmatprep.mubr.bf16.mxu0 0
      %503 = vmatmul.mubr.bf16.gmra.mrb[0].mxu0 %v393
      %v504 = vpop.f32.mrb[0].mxu0
      %v505 = vadd.f32 0.0, %v504
      %v506 = vpop.f32.mrb[0].mxu0
      %v507 = vpop.f32.mrb[0].mxu0
      %v508 = vadd.f32 0.0, %v507
      %v509 = vpop.f32.mrb[0].mxu0
      %510 = vmatprep.mubr.bf16.mxu0 0
      %511 = vmatmul.mubr.bf16.gmra.mrb[0].mxu0 %v396
      %v512 = vpop.f32.mrb[0].mxu0
      %v513 = vadd.f32 0.0, %v512
      %v514 = vpop.f32.mrb[0].mxu0
      %v515 = vpop.f32.mrb[0].mxu0
      %v516 = vadd.f32 0.0, %v515
      %v517 = vpop.f32.mrb[0].mxu0
      %518 = vmatprep.mubr.bf16.mxu0 0
      %519 = vmatmul.mubr.bf16.gmra.mrb[0].mxu0 %v399
      %v520 = vpop.f32.mrb[0].mxu0
      %v521 = vadd.f32 0.0, %v520
      %v522 = vpop.f32.mrb[0].mxu0
      %v523 = vpop.f32.mrb[0].mxu0
      %v524 = vadd.f32 0.0, %v523
      %v525 = vpop.f32.mrb[0].mxu0
      %526 = vmatprep.mubr.bf16.mxu0 0
      %527 = vmatmul.mubr.bf16.gmra.mrb[0].mxu0 %v402
      %v528 = vpop.f32.mrb[0].mxu0
      %v529 = vadd.f32 0.0, %v528
      %v530 = vpop.f32.mrb[0].mxu0
      %v531 = vpop.f32.mrb[0].mxu0
      %v532 = vadd.f32 0.0, %v531
      %v533 = vpop.f32.mrb[0].mxu0
      %534 = vmatprep.mubr.bf16.mxu0 0
      %535 = vmatmul.mubr.bf16.gmra.mrb[0].mxu0 %v405
      %v536 = vpop.f32.mrb[0].mxu0
      %v537 = vadd.f32 0.0, %v536
      %v538 = vpop.f32.mrb[0].mxu0
      %v539 = vpop.f32.mrb[0].mxu0
      %v540 = vadd.f32 0.0, %v539
      %v541 = vpop.f32.mrb[0].mxu0
      %542 = vmatprep.mubr.bf16.mxu0 0
      %543 = vmatmul.mubr.bf16.gmra.mrb[0].mxu0 %v408
      %v544 = vpop.f32.mrb[0].mxu0
      %v545 = vadd.f32 0.0, %v544
      %v546 = vpop.f32.mrb[0].mxu0
      %v547 = vpop.f32.mrb[0].mxu0
      %v548 = vadd.f32 0.0, %v547
      %v549 = vpop.f32.mrb[0].mxu0
      %550 = vmatprep.mubr.bf16.mxu0 0
      %551 = vmatmul.mubr.bf16.gmra.mrb[0].mxu0 %v411
      %v552 = vpop.f32.mrb[0].mxu0
      %v553 = vadd.f32 0.0, %v552
      %v554 = vpop.f32.mrb[0].mxu0
      %v555 = vpop.f32.mrb[0].mxu0
      %v556 = vadd.f32 0.0, %v555
      %v557 = vpop.f32.mrb[0].mxu0
      %558 = vmatprep.mubr.bf16.mxu0 0
      %559 = vmatmul.mubr.bf16.gmra.mrb[0].mxu0 %v414
      %v560 = vpop.f32.mrb[0].mxu0
      %v561 = vadd.f32 0.0, %v560
      %v562 = vpop.f32.mrb[0].mxu0
      %v563 = vpop.f32.mrb[0].mxu0
      %v564 = vadd.f32 0.0, %v563
      %v565 = vpop.f32.mrb[0].mxu0
      %566 = vmatprep.mubr.bf16.mxu0 0
      %567 = vmatmul.mubr.bf16.gmra.mrb[0].mxu0 %v417
      %v568 = vpop.f32.mrb[0].mxu0
      %v569 = vadd.f32 0.0, %v568
      %v570 = vpop.f32.mrb[0].mxu0
      %v571 = vpop.f32.mrb[0].mxu0
      %v572 = vadd.f32 0.0, %v571
      %v573 = vpop.f32.mrb[0].mxu0
      %574 = vmatprep.mubr.bf16.mxu0 0
      %575 = vmatmul.mubr.bf16.gmra.mrb[0].mxu0 %v420
      %v576 = vpop.f32.mrb[0].mxu0
      %v577 = vadd.f32 0.0, %v576
      %v578 = vpop.f32.mrb[0].mxu0
      %v579 = vpop.f32.mrb[0].mxu0
      %v580 = vadd.f32 0.0, %v579
      %v581 = vpop.f32.mrb[0].mxu0
      %582 = vmatprep.mubr.bf16.mxu0 0
      %583 = vmatmul.mubr.bf16.gmra.mrb[0].mxu0 %v423
      %v584 = vpop.f32.mrb[0].mxu0
      %v585 = vadd.f32 0.0, %v584
      %v586 = vpop.f32.mrb[0].mxu0
      %v587 = vpop.f32.mrb[0].mxu0
      %v588 = vadd.f32 0.0, %v587
      %v589 = vpop.f32.mrb[0].mxu0
      %590 = vmatprep.mubr.bf16.mxu0 0
      %591 = vmatmul.mubr.bf16.gmra.mrb[0].mxu0 %v426
      %v592 = vpop.f32.mrb[0].mxu0
      %v593 = vadd.f32 0.0, %v592
      %v594 = vpop.f32.mrb[0].mxu0
      %v595 = vpop.f32.mrb[0].mxu0
      %v596 = vadd.f32 0.0, %v595
      %v597 = vpop.f32.mrb[0].mxu0
      %598 = vmatprep.mubr.bf16.mxu0 0
      %599 = vmatmul.mubr.bf16.gmra.mrb[0].mxu0 %v429
      %v600 = vpop.f32.mrb[0].mxu0
      %v601 = vadd.f32 0.0, %v600
      %v602 = vpop.f32.mrb[0].mxu0
      %v603 = vpop.f32.mrb[0].mxu0
      %v604 = vadd.f32 0.0, %v603
      %v605 = vpop.f32.mrb[0].mxu0
      %606 = vmatprep.mubr.bf16.mxu0 0
      %607 = vmatmul.mubr.bf16.gmra.mrb[0].mxu0 %v432
      %v608 = vpop.f32.mrb[0].mxu0
      %v609 = vadd.f32 0.0, %v608
      %v610 = vpop.f32.mrb[0].mxu0
      %v611 = vpop.f32.mrb[0].mxu0
      %v612 = vadd.f32 0.0, %v611
      %v613 = vpop.f32.mrb[0].mxu0
      %614 = vdwg.mxu0
      %v615 = vadd.f32 %v252, %v473
      %v616 = vadd.f32 %v253, %v476
      %v617 = vadd.f32 %v254, %v481
      %v618 = vadd.f32 %v255, %v484
      %v619 = vadd.f32 %v256, %v489
      %v620 = vadd.f32 %v257, %v492
      %v621 = vadd.f32 %v258, %v497
      %v622 = vadd.f32 %v259, %v500
      %v623 = vadd.f32 %v260, %v505
      %v624 = vadd.f32 %v261, %v508
      %v625 = vadd.f32 %v262, %v513
      %v626 = vadd.f32 %v263, %v516
      %v627 = vadd.f32 %v264, %v521
      %v628 = vadd.f32 %v265, %v524
      %v629 = vadd.f32 %v266, %v529
      %v630 = vadd.f32 %v267, %v532
      %v631 = vadd.f32 %v268, %v537
      %v632 = vadd.f32 %v269, %v540
      %v633 = vadd.f32 %v270, %v545
      %v634 = vadd.f32 %v271, %v548
      %v635 = vadd.f32 %v272, %v553
      %v636 = vadd.f32 %v273, %v556
      %v637 = vadd.f32 %v274, %v561
      %v638 = vadd.f32 %v275, %v564
      %v639 = vadd.f32 %v276, %v569
      %v640 = vadd.f32 %v277, %v572
      %v641 = vadd.f32 %v278, %v577
      %v642 = vadd.f32 %v279, %v580
      %v643 = vadd.f32 %v280, %v585
      %v644 = vadd.f32 %v281, %v588
      %v645 = vadd.f32 %v282, %v593
      %v646 = vadd.f32 %v283, %v596
      %v647 = vadd.f32 %v284, %v601
      %v648 = vadd.f32 %v285, %v604
      %v649 = vadd.f32 %v286, %v609
      %v650 = vadd.f32 %v287, %v612
      %651 = vst.msk [vmem:[%s170] sm:$0xff] %vm179, %v615
      %652 = vst.msk [vmem:[%s170 + $0x8] sm:$0xff] %vm179, %v616
      %653 = vst.msk [vmem:[%s170 + $0x10] sm:$0xff] %vm179, %v617
      %654 = vst.msk [vmem:[%s170 + $0x18] sm:$0xff] %vm179, %v618
      %655 = vst.msk [vmem:[%s170 + $0x20] sm:$0xff] %vm179, %v619
      %656 = vst.msk [vmem:[%s170 + $0x28] sm:$0xff] %vm179, %v620
      %657 = vst.msk [vmem:[%s170 + $0x30] sm:$0xff] %vm179, %v621
      %658 = vst.msk [vmem:[%s170 + $0x38] sm:$0xff] %vm179, %v622
      %659 = vst.msk [vmem:[%s170 + $0x40] sm:$0xff] %vm179, %v623
      %660 = vst.msk [vmem:[%s170 + $0x48] sm:$0xff] %vm179, %v624
      %661 = vst.msk [vmem:[%s170 + $0x50] sm:$0xff] %vm179, %v625
      %662 = vst.msk [vmem:[%s170 + $0x58] sm:$0xff] %vm179, %v626
      %663 = vst.msk [vmem:[%s170 + $0x60] sm:$0xff] %vm179, %v627
      %664 = vst.msk [vmem:[%s170 + $0x68] sm:$0xff] %vm179, %v628
      %665 = vst.msk [vmem:[%s170 + $0x70] sm:$0xff] %vm179, %v629
      %666 = vst.msk [vmem:[%s170 + $0x78] sm:$0xff] %vm179, %v630
      %667 = vst.msk [vmem:[%s170 + $0x80] sm:$0xff] %vm179, %v631
      %668 = vst.msk [vmem:[%s170 + $0x88] sm:$0xff] %vm179, %v632
      %669 = vst.msk [vmem:[%s170 + $0x90] sm:$0xff] %vm179, %v633
      %670 = vst.msk [vmem:[%s170 + $0x98] sm:$0xff] %vm179, %v634
      %671 = vst.msk [vmem:[%s170 + $0xa0] sm:$0xff] %vm179, %v635
      %672 = vst.msk [vmem:[%s170 + $0xa8] sm:$0xff] %vm179, %v636
      %673 = vst.msk [vmem:[%s170 + $0xb0] sm:$0xff] %vm179, %v637
      %674 = vst.msk [vmem:[%s170 + $0xb8] sm:$0xff] %vm179, %v638
      %675 = vst.msk [vmem:[%s170 + $0xc0] sm:$0xff] %vm179, %v639
      %676 = vst.msk [vmem:[%s170 + $0xc8] sm:$0xff] %vm179, %v640
      %677 = vst.msk [vmem:[%s170 + $0xd0] sm:$0xff] %vm179, %v641
      %678 = vst.msk [vmem:[%s170 + $0xd8] sm:$0xff] %vm179, %v642
      %679 = vst.msk [vmem:[%s170 + $0xe0] sm:$0xff] %vm179, %v643
      %680 = vst.msk [vmem:[%s170 + $0xe8] sm:$0xff] %vm179, %v644
      %681 = vst.msk [vmem:[%s170 + $0xf0] sm:$0xff] %vm179, %v645
      %682 = vst.msk [vmem:[%s170 + $0xf8] sm:$0xff] %vm179, %v646
      %683 = vst.msk [vmem:[%s170 + $0x100] sm:$0xff] %vm179, %v647
      %684 = vst.msk [vmem:[%s170 + $0x108] sm:$0xff] %vm179, %v648
      %685 = vst.msk [vmem:[%s170 + $0x110] sm:$0xff] %vm179, %v649
      %686 = vst.msk [vmem:[%s170 + $0x118] sm:$0xff] %vm179, %v650
      %v687 = vld [vmem:[%s165] sm:$0xf]
      %v688 = vld [vmem:[%s165 + $0x4] sm:$0xf]
      %v689 = vld [vmem:[%s165 + $0x8] sm:$0xf]
      %v690 = vld [vmem:[%s165 + $0xc] sm:$0xf]
      %v691 = vld [vmem:[%s165 + $0x10] sm:$0xf]
      %v692 = vld [vmem:[%s165 + $0x14] sm:$0xf]
      %v693 = vld [vmem:[%s165 + $0x18] sm:$0xf]
      %v694 = vld [vmem:[%s165 + $0x1c] sm:$0xf]
      %v695 = vld [vmem:[%s165 + $0x20] sm:$0xf]
      %v696 = vld [vmem:[%s165 + $0x24] sm:$0xf]
      %v697 = vld [vmem:[%s165 + $0x28] sm:$0xf]
      %v698 = vld [vmem:[%s165 + $0x2c] sm:$0xf]
      %v699 = vld [vmem:[%s165 + $0x30] sm:$0xf]
      %v700 = vld [vmem:[%s165 + $0x34] sm:$0xf]
      %v701 = vld [vmem:[%s165 + $0x38] sm:$0xf]
      %v702 = vld [vmem:[%s165 + $0x3c] sm:$0xf]
      %v703 = vld [vmem:[%s165 + $0x40] sm:$0xf]
      %v704 = vld [vmem:[%s165 + $0x44] sm:$0xf]
      %v705 = vld [vmem:[%s165 + $0x48] sm:$0xf]
      %v706 = vld [vmem:[%s165 + $0x4c] sm:$0xf]
      %v707 = vld [vmem:[%s165 + $0x50] sm:$0xf]
      %v708 = vld [vmem:[%s165 + $0x54] sm:$0xf]
      %v709 = vld [vmem:[%s165 + $0x58] sm:$0xf]
      %v710 = vld [vmem:[%s165 + $0x5c] sm:$0xf]
      %v711 = vld [vmem:[%s165 + $0x60] sm:$0xf]
      %v712 = vld [vmem:[%s165 + $0x64] sm:$0xf]
      %v713 = vld [vmem:[%s165 + $0x68] sm:$0xf]
      %v714 = vld [vmem:[%s165 + $0x6c] sm:$0xf]
      %v715 = vld [vmem:[%s165 + $0x70] sm:$0xf]
      %v716 = vld [vmem:[%s165 + $0x74] sm:$0xf]
      %v717 = vld [vmem:[%s165 + $0x78] sm:$0xf]
      %v718 = vld [vmem:[%s165 + $0x7c] sm:$0xf]
      %v719 = vld [vmem:[%s165 + $0x80] sm:$0xf]
      %v720 = vld [vmem:[%s165 + $0x84] sm:$0xf]
      %v721 = vld [vmem:[%s165 + $0x88] sm:$0xf]
      %v722 = vld [vmem:[%s165 + $0x8c] sm:$0xf]
      %v723 = vld [vmem:[%s165 + $0x90] sm:$0x1]
      %v724 = vld [vmem:[%s170] sm:$0xff]
      %v725 = vld [vmem:[%s170 + $0x8] sm:$0xff]
      %v726 = vld [vmem:[%s170 + $0x10] sm:$0xff]
      %v727 = vld [vmem:[%s170 + $0x18] sm:$0xff]
      %v728 = vld [vmem:[%s170 + $0x20] sm:$0xff]
      %v729 = vld [vmem:[%s170 + $0x28] sm:$0xff]
      %v730 = vld [vmem:[%s170 + $0x30] sm:$0xff]
      %v731 = vld [vmem:[%s170 + $0x38] sm:$0xff]
      %v732 = vld [vmem:[%s170 + $0x40] sm:$0xff]
      %v733 = vld [vmem:[%s170 + $0x48] sm:$0xff]
      %v734 = vld [vmem:[%s170 + $0x50] sm:$0xff]
      %v735 = vld [vmem:[%s170 + $0x58] sm:$0xff]
      %v736 = vld [vmem:[%s170 + $0x60] sm:$0xff]
      %v737 = vld [vmem:[%s170 + $0x68] sm:$0xff]
      %v738 = vld [vmem:[%s170 + $0x70] sm:$0xff]
      %v739 = vld [vmem:[%s170 + $0x78] sm:$0xff]
      %v740 = vld [vmem:[%s170 + $0x80] sm:$0xff]
      %v741 = vld [vmem:[%s170 + $0x88] sm:$0xff]
      %v742 = vld [vmem:[%s170 + $0x90] sm:$0xff]
      %v743 = vld [vmem:[%s170 + $0x98] sm:$0xff]
      %v744 = vld [vmem:[%s170 + $0xa0] sm:$0xff]
      %v745 = vld [vmem:[%s170 + $0xa8] sm:$0xff]
      %v746 = vld [vmem:[%s170 + $0xb0] sm:$0xff]
      %v747 = vld [vmem:[%s170 + $0xb8] sm:$0xff]
      %v748 = vld [vmem:[%s170 + $0xc0] sm:$0xff]
      %v749 = vld [vmem:[%s170 + $0xc8] sm:$0xff]
      %v750 = vld [vmem:[%s170 + $0xd0] sm:$0xff]
      %v751 = vld [vmem:[%s170 + $0xd8] sm:$0xff]
      %v752 = vld [vmem:[%s170 + $0xe0] sm:$0xff]
      %v753 = vld [vmem:[%s170 + $0xe8] sm:$0xff]
      %v754 = vld [vmem:[%s170 + $0xf0] sm:$0xff]
      %v755 = vld [vmem:[%s170 + $0xf8] sm:$0xff]
      %v756 = vld [vmem:[%s170 + $0x100] sm:$0xff]
      %v757 = vld [vmem:[%s170 + $0x108] sm:$0xff]
      %v758 = vld [vmem:[%s170 + $0x110] sm:$0xff]
      %v759 = vld [vmem:[%s170 + $0x118] sm:$0xff]
      %s760 = scalar_lea.vmem %s1, 2
      %v761 = vld [vmem:[%s760] sm:$0x3]
      %v799 = vunpack.c.l.b16 %v687
      %v800 = vunpack.c.l.b16 %v688
      %v801 = vunpack.c.l.b16 %v689
      %v802 = vunpack.c.l.b16 %v690
      %v803 = vunpack.c.l.b16 %v691
      %v804 = vunpack.c.l.b16 %v692
      %v805 = vunpack.c.l.b16 %v693
      %v806 = vunpack.c.l.b16 %v694
      %v807 = vunpack.c.l.b16 %v695
      %v808 = vunpack.c.l.b16 %v696
      %v809 = vunpack.c.l.b16 %v697
      %v810 = vunpack.c.l.b16 %v698
      %v811 = vunpack.c.l.b16 %v699
      %v812 = vunpack.c.l.b16 %v700
      %v813 = vunpack.c.l.b16 %v701
      %v814 = vunpack.c.l.b16 %v702
      %v815 = vunpack.c.l.b16 %v703
      %v816 = vunpack.c.l.b16 %v704
      %v817 = vunpack.c.l.b16 %v705
      %v818 = vunpack.c.l.b16 %v706
      %v819 = vunpack.c.l.b16 %v707
      %v820 = vunpack.c.l.b16 %v708
      %v821 = vunpack.c.l.b16 %v709
      %v822 = vunpack.c.l.b16 %v710
      %v823 = vunpack.c.l.b16 %v711
      %v824 = vunpack.c.l.b16 %v712
      %v825 = vunpack.c.l.b16 %v713
      %v826 = vunpack.c.l.b16 %v714
      %v827 = vunpack.c.l.b16 %v715
      %v828 = vunpack.c.l.b16 %v716
      %v829 = vunpack.c.l.b16 %v717
      %v830 = vunpack.c.l.b16 %v718
      %v831 = vunpack.c.l.b16 %v719
      %v832 = vunpack.c.l.b16 %v720
      %v833 = vunpack.c.l.b16 %v721
      %v834 = vunpack.c.l.b16 %v722
      %v835 = vunpack.c.l.b16 %v723
      %v836 = vpack.c.b16 %v800, %v799
      %v837 = vpack.c.b16 %v802, %v801
      %v838 = vpack.c.b16 %v804, %v803
      %v839 = vpack.c.b16 %v806, %v805
      %v840 = vpack.c.b16 %v808, %v807
      %v841 = vpack.c.b16 %v810, %v809
      %v842 = vpack.c.b16 %v812, %v811
      %v843 = vpack.c.b16 %v814, %v813
      %v844 = vpack.c.b16 %v816, %v815
      %v845 = vpack.c.b16 %v818, %v817
      %v846 = vpack.c.b16 %v820, %v819
      %v847 = vpack.c.b16 %v822, %v821
      %v848 = vpack.c.b16 %v824, %v823
      %v849 = vpack.c.b16 %v826, %v825
      %v850 = vpack.c.b16 %v828, %v827
      %v851 = vpack.c.b16 %v830, %v829
      %v852 = vpack.c.b16 %v832, %v831
      %v853 = vpack.c.b16 %v834, %v833
      %v854 = vpack.c.b16 %v835, %v835
      %vm855 = vsmask.f32 7424
      %v857 = vshrl.u32 %v836, 16
      %v859 = vshll.u32 %v836, 16
      %v861 = vrot.slane %v859, 1
      %v862 = vor.u32 %v857, %v861
      %v864 = vshll.u32 %v837, 16
      %v866 = vrot.slane %v864, 1
      %v867 = vsel %vm855, %v862, %v866
      %v868 = vshrl.u32 %v837, 16
      %v870 = vor.u32 %v868, %v866
      %v872 = vshll.u32 %v838, 16
      %v874 = vrot.slane %v872, 1
      %v875 = vsel %vm855, %v870, %v874
      %v876 = vshrl.u32 %v838, 16
      %v878 = vor.u32 %v876, %v874
      %v880 = vshll.u32 %v839, 16
      %v882 = vrot.slane %v880, 1
      %v883 = vsel %vm855, %v878, %v882
      %v884 = vshrl.u32 %v839, 16
      %v886 = vor.u32 %v884, %v882
      %v888 = vshll.u32 %v840, 16
      %v890 = vrot.slane %v888, 1
      %v891 = vsel %vm855, %v886, %v890
      %v892 = vshrl.u32 %v840, 16
      %v894 = vor.u32 %v892, %v890
      %v896 = vshll.u32 %v841, 16
      %v898 = vrot.slane %v896, 1
      %v899 = vsel %vm855, %v894, %v898
      %v900 = vshrl.u32 %v841, 16
      %v902 = vor.u32 %v900, %v898
      %v904 = vshll.u32 %v842, 16
      %v906 = vrot.slane %v904, 1
      %v907 = vsel %vm855, %v902, %v906
      %v908 = vshrl.u32 %v842, 16
      %v910 = vor.u32 %v908, %v906
      %v912 = vshll.u32 %v843, 16
      %v914 = vrot.slane %v912, 1
      %v915 = vsel %vm855, %v910, %v914
      %v916 = vshrl.u32 %v843, 16
      %v918 = vor.u32 %v916, %v914
      %v920 = vshll.u32 %v844, 16
      %v922 = vrot.slane %v920, 1
      %v923 = vsel %vm855, %v918, %v922
      %v924 = vshrl.u32 %v844, 16
      %v926 = vor.u32 %v924, %v922
      %v928 = vshll.u32 %v845, 16
      %v930 = vrot.slane %v928, 1
      %v931 = vsel %vm855, %v926, %v930
      %v932 = vshrl.u32 %v845, 16
      %v934 = vor.u32 %v932, %v930
      %v936 = vshll.u32 %v846, 16
      %v938 = vrot.slane %v936, 1
      %v939 = vsel %vm855, %v934, %v938
      %v940 = vshrl.u32 %v846, 16
      %v942 = vor.u32 %v940, %v938
      %v944 = vshll.u32 %v847, 16
      %v946 = vrot.slane %v944, 1
      %v947 = vsel %vm855, %v942, %v946
      %v948 = vshrl.u32 %v847, 16
      %v950 = vor.u32 %v948, %v946
      %v952 = vshll.u32 %v848, 16
      %v954 = vrot.slane %v952, 1
      %v955 = vsel %vm855, %v950, %v954
      %v956 = vshrl.u32 %v848, 16
      %v958 = vor.u32 %v956, %v954
      %v960 = vshll.u32 %v849, 16
      %v962 = vrot.slane %v960, 1
      %v963 = vsel %vm855, %v958, %v962
      %v964 = vshrl.u32 %v849, 16
      %v966 = vor.u32 %v964, %v962
      %v968 = vshll.u32 %v850, 16
      %v970 = vrot.slane %v968, 1
      %v971 = vsel %vm855, %v966, %v970
      %v972 = vshrl.u32 %v850, 16
      %v974 = vor.u32 %v972, %v970
      %v976 = vshll.u32 %v851, 16
      %v978 = vrot.slane %v976, 1
      %v979 = vsel %vm855, %v974, %v978
      %v980 = vshrl.u32 %v851, 16
      %v982 = vor.u32 %v980, %v978
      %v984 = vshll.u32 %v852, 16
      %v986 = vrot.slane %v984, 1
      %v987 = vsel %vm855, %v982, %v986
      %v988 = vshrl.u32 %v852, 16
      %v990 = vor.u32 %v988, %v986
      %v992 = vshll.u32 %v853, 16
      %v994 = vrot.slane %v992, 1
      %v995 = vsel %vm855, %v990, %v994
      %v996 = vshrl.u32 %v853, 16
      %v998 = vor.u32 %v996, %v994
      %v1000 = vshll.u32 %v854, 16
      %v1002 = vrot.slane %v1000, 1
      %v1003 = vsel %vm855, %v998, %v1002
      %v1005 = vsel %vm379, %v867, 0
      %v1008 = vsel %vm379, %v875, 0
      %v1011 = vsel %vm379, %v883, 0
      %v1014 = vsel %vm379, %v891, 0
      %v1017 = vsel %vm379, %v899, 0
      %v1020 = vsel %vm379, %v907, 0
      %v1023 = vsel %vm379, %v915, 0
      %v1026 = vsel %vm379, %v923, 0
      %v1029 = vsel %vm379, %v931, 0
      %v1032 = vsel %vm379, %v939, 0
      %v1035 = vsel %vm379, %v947, 0
      %v1038 = vsel %vm379, %v955, 0
      %v1041 = vsel %vm379, %v963, 0
      %v1044 = vsel %vm379, %v971, 0
      %v1047 = vsel %vm379, %v979, 0
      %v1050 = vsel %vm379, %v987, 0
      %v1053 = vsel %vm379, %v995, 0
      %v1056 = vsel %vm379, %v1003, 0
      %v1059 = vsel %vm434, %v761, 0
      %1061 = vmatprep.subr.bf16.mxu0 0
      %1062 = vmatpush1.bf16.msra.mxu0 %v1059
      %1063 = vmatprep.subr.bf16.mxu0 0
      %1064 = vmatpush1.bf16.msra.mxu0 0
      %1065 = vmatprep.subr.bf16.mxu0 0
      %1066 = vmatpush1.bf16.msra.mxu0 0
      %1067 = vmatprep.subr.bf16.mxu0 0
      %1068 = vmatpush1.bf16.msra.mxu0 0
      %1069 = vmatprep.subr.bf16.mxu0 0
      %1070 = vmatpush1.bf16.msra.mxu0 0
      %1071 = vmatprep.subr.bf16.mxu0 0
      %1072 = vmatpush1.bf16.msra.mxu0 0
      %1073 = vmatprep.subr.bf16.mxu0 0
      %1074 = vmatpush1.bf16.msra.mxu0 0
      %1075 = vmatprep.subr.bf16.mxu0 0
      %1076 = vmatpush1.bf16.msra.mxu0 0
      %1077 = vmatprep.subr.bf16.mxu0 0
      %1078 = vmatpush1.bf16.msra.mxu0 0
      %1079 = vmatprep.subr.bf16.mxu0 0
      %1080 = vmatpush1.bf16.msra.mxu0 0
      %1081 = vmatprep.subr.bf16.mxu0 0
      %1082 = vmatpush1.bf16.msra.mxu0 0
      %1083 = vmatprep.subr.bf16.mxu0 0
      %1084 = vmatpush1.bf16.msra.mxu0 0
      %1085 = vmatprep.subr.bf16.mxu0 0
      %1086 = vmatpush1.bf16.msra.mxu0 0
      %1087 = vmatprep.subr.bf16.mxu0 0
      %1088 = vmatpush1.bf16.msra.mxu0 0
      %1089 = vmatprep.subr.bf16.mxu0 0
      %1090 = vmatpush1.bf16.msra.mxu0 0
      %1091 = vmatprep.subr.bf16.mxu0 0
      %1092 = vmatpush1.bf16.msra.mxu0 0
      %1093 = vmatprep.mubr.bf16.mxu0 0
      %1094 = vmatmul.mubr.bf16.gmra.mrb[0].mxu0 %v1005
      %v1095 = vpop.f32.mrb[0].mxu0
      %v1096 = vadd.f32 0.0, %v1095
      %v1097 = vpop.f32.mrb[0].mxu0
      %v1098 = vpop.f32.mrb[0].mxu0
      %v1099 = vadd.f32 0.0, %v1098
      %v1100 = vpop.f32.mrb[0].mxu0
      %1101 = vmatprep.mubr.bf16.mxu0 0
      %1102 = vmatmul.mubr.bf16.gmra.mrb[0].mxu0 %v1008
      %v1103 = vpop.f32.mrb[0].mxu0
      %v1104 = vadd.f32 0.0, %v1103
      %v1105 = vpop.f32.mrb[0].mxu0
      %v1106 = vpop.f32.mrb[0].mxu0
      %v1107 = vadd.f32 0.0, %v1106
      %v1108 = vpop.f32.mrb[0].mxu0
      %1109 = vmatprep.mubr.bf16.mxu0 0
      %1110 = vmatmul.mubr.bf16.gmra.mrb[0].mxu0 %v1011
      %v1111 = vpop.f32.mrb[0].mxu0
      %v1112 = vadd.f32 0.0, %v1111
      %v1113 = vpop.f32.mrb[0].mxu0
      %v1114 = vpop.f32.mrb[0].mxu0
      %v1115 = vadd.f32 0.0, %v1114
      %v1116 = vpop.f32.mrb[0].mxu0
      %1117 = vmatprep.mubr.bf16.mxu0 0
      %1118 = vmatmul.mubr.bf16.gmra.mrb[0].mxu0 %v1014
      %v1119 = vpop.f32.mrb[0].mxu0
      %v1120 = vadd.f32 0.0, %v1119
      %v1121 = vpop.f32.mrb[0].mxu0
      %v1122 = vpop.f32.mrb[0].mxu0
      %v1123 = vadd.f32 0.0, %v1122
      %v1124 = vpop.f32.mrb[0].mxu0
      %1125 = vmatprep.mubr.bf16.mxu0 0
      %1126 = vmatmul.mubr.bf16.gmra.mrb[0].mxu0 %v1017
      %v1127 = vpop.f32.mrb[0].mxu0
      %v1128 = vadd.f32 0.0, %v1127
      %v1129 = vpop.f32.mrb[0].mxu0
      %v1130 = vpop.f32.mrb[0].mxu0
      %v1131 = vadd.f32 0.0, %v1130
      %v1132 = vpop.f32.mrb[0].mxu0
      %1133 = vmatprep.mubr.bf16.mxu0 0
      %1134 = vmatmul.mubr.bf16.gmra.mrb[0].mxu0 %v1020
      %v1135 = vpop.f32.mrb[0].mxu0
      %v1136 = vadd.f32 0.0, %v1135
      %v1137 = vpop.f32.mrb[0].mxu0
      %v1138 = vpop.f32.mrb[0].mxu0
      %v1139 = vadd.f32 0.0, %v1138
      %v1140 = vpop.f32.mrb[0].mxu0
      %1141 = vmatprep.mubr.bf16.mxu0 0
      %1142 = vmatmul.mubr.bf16.gmra.mrb[0].mxu0 %v1023
      %v1143 = vpop.f32.mrb[0].mxu0
      %v1144 = vadd.f32 0.0, %v1143
      %v1145 = vpop.f32.mrb[0].mxu0
      %v1146 = vpop.f32.mrb[0].mxu0
      %v1147 = vadd.f32 0.0, %v1146
      %v1148 = vpop.f32.mrb[0].mxu0
      %1149 = vmatprep.mubr.bf16.mxu0 0
      %1150 = vmatmul.mubr.bf16.gmra.mrb[0].mxu0 %v1026
      %v1151 = vpop.f32.mrb[0].mxu0
      %v1152 = vadd.f32 0.0, %v1151
      %v1153 = vpop.f32.mrb[0].mxu0
      %v1154 = vpop.f32.mrb[0].mxu0
      %v1155 = vadd.f32 0.0, %v1154
      %v1156 = vpop.f32.mrb[0].mxu0
      %1157 = vmatprep.mubr.bf16.mxu0 0
      %1158 = vmatmul.mubr.bf16.gmra.mrb[0].mxu0 %v1029
      %v1159 = vpop.f32.mrb[0].mxu0
      %v1160 = vadd.f32 0.0, %v1159
      %v1161 = vpop.f32.mrb[0].mxu0
      %v1162 = vpop.f32.mrb[0].mxu0
      %v1163 = vadd.f32 0.0, %v1162
      %v1164 = vpop.f32.mrb[0].mxu0
      %1165 = vmatprep.mubr.bf16.mxu0 0
      %1166 = vmatmul.mubr.bf16.gmra.mrb[0].mxu0 %v1032
      %v1167 = vpop.f32.mrb[0].mxu0
      %v1168 = vadd.f32 0.0, %v1167
      %v1169 = vpop.f32.mrb[0].mxu0
      %v1170 = vpop.f32.mrb[0].mxu0
      %v1171 = vadd.f32 0.0, %v1170
      %v1172 = vpop.f32.mrb[0].mxu0
      %1173 = vmatprep.mubr.bf16.mxu0 0
      %1174 = vmatmul.mubr.bf16.gmra.mrb[0].mxu0 %v1035
      %v1175 = vpop.f32.mrb[0].mxu0
      %v1176 = vadd.f32 0.0, %v1175
      %v1177 = vpop.f32.mrb[0].mxu0
      %v1178 = vpop.f32.mrb[0].mxu0
      %v1179 = vadd.f32 0.0, %v1178
      %v1180 = vpop.f32.mrb[0].mxu0
      %1181 = vmatprep.mubr.bf16.mxu0 0
      %1182 = vmatmul.mubr.bf16.gmra.mrb[0].mxu0 %v1038
      %v1183 = vpop.f32.mrb[0].mxu0
      %v1184 = vadd.f32 0.0, %v1183
      %v1185 = vpop.f32.mrb[0].mxu0
      %v1186 = vpop.f32.mrb[0].mxu0
      %v1187 = vadd.f32 0.0, %v1186
      %v1188 = vpop.f32.mrb[0].mxu0
      %1189 = vmatprep.mubr.bf16.mxu0 0
      %1190 = vmatmul.mubr.bf16.gmra.mrb[0].mxu0 %v1041
      %v1191 = vpop.f32.mrb[0].mxu0
      %v1192 = vadd.f32 0.0, %v1191
      %v1193 = vpop.f32.mrb[0].mxu0
      %v1194 = vpop.f32.mrb[0].mxu0
      %v1195 = vadd.f32 0.0, %v1194
      %v1196 = vpop.f32.mrb[0].mxu0
      %1197 = vmatprep.mubr.bf16.mxu0 0
      %1198 = vmatmul.mubr.bf16.gmra.mrb[0].mxu0 %v1044
      %v1199 = vpop.f32.mrb[0].mxu0
      %v1200 = vadd.f32 0.0, %v1199
      %v1201 = vpop.f32.mrb[0].mxu0
      %v1202 = vpop.f32.mrb[0].mxu0
      %v1203 = vadd.f32 0.0, %v1202
      %v1204 = vpop.f32.mrb[0].mxu0
      %1205 = vmatprep.mubr.bf16.mxu0 0
      %1206 = vmatmul.mubr.bf16.gmra.mrb[0].mxu0 %v1047
      %v1207 = vpop.f32.mrb[0].mxu0
      %v1208 = vadd.f32 0.0, %v1207
      %v1209 = vpop.f32.mrb[0].mxu0
      %v1210 = vpop.f32.mrb[0].mxu0
      %v1211 = vadd.f32 0.0, %v1210
      %v1212 = vpop.f32.mrb[0].mxu0
      %1213 = vmatprep.mubr.bf16.mxu0 0
      %1214 = vmatmul.mubr.bf16.gmra.mrb[0].mxu0 %v1050
      %v1215 = vpop.f32.mrb[0].mxu0
      %v1216 = vadd.f32 0.0, %v1215
      %v1217 = vpop.f32.mrb[0].mxu0
      %v1218 = vpop.f32.mrb[0].mxu0
      %v1219 = vadd.f32 0.0, %v1218
      %v1220 = vpop.f32.mrb[0].mxu0
      %1221 = vmatprep.mubr.bf16.mxu0 0
      %1222 = vmatmul.mubr.bf16.gmra.mrb[0].mxu0 %v1053
      %v1223 = vpop.f32.mrb[0].mxu0
      %v1224 = vadd.f32 0.0, %v1223
      %v1225 = vpop.f32.mrb[0].mxu0
      %v1226 = vpop.f32.mrb[0].mxu0
      %v1227 = vadd.f32 0.0, %v1226
      %v1228 = vpop.f32.mrb[0].mxu0
      %1229 = vmatprep.mubr.bf16.mxu0 0
      %1230 = vmatmul.mubr.bf16.gmra.mrb[0].mxu0 %v1056
      %v1231 = vpop.f32.mrb[0].mxu0
      %v1232 = vadd.f32 0.0, %v1231
      %v1233 = vpop.f32.mrb[0].mxu0
      %v1234 = vpop.f32.mrb[0].mxu0
      %v1235 = vadd.f32 0.0, %v1234
      %v1236 = vpop.f32.mrb[0].mxu0
      %1237 = vdwg.mxu0
      %v1238 = vadd.f32 %v724, %v1096
      %v1239 = vadd.f32 %v725, %v1099
      %v1240 = vadd.f32 %v726, %v1104
      %v1241 = vadd.f32 %v727, %v1107
      %v1242 = vadd.f32 %v728, %v1112
      %v1243 = vadd.f32 %v729, %v1115
      %v1244 = vadd.f32 %v730, %v1120
      %v1245 = vadd.f32 %v731, %v1123
      %v1246 = vadd.f32 %v732, %v1128
      %v1247 = vadd.f32 %v733, %v1131
      %v1248 = vadd.f32 %v734, %v1136
      %v1249 = vadd.f32 %v735, %v1139
      %v1250 = vadd.f32 %v736, %v1144
      %v1251 = vadd.f32 %v737, %v1147
      %v1252 = vadd.f32 %v738, %v1152
      %v1253 = vadd.f32 %v739, %v1155
      %v1254 = vadd.f32 %v740, %v1160
      %v1255 = vadd.f32 %v741, %v1163
      %v1256 = vadd.f32 %v742, %v1168
      %v1257 = vadd.f32 %v743, %v1171
      %v1258 = vadd.f32 %v744, %v1176
      %v1259 = vadd.f32 %v745, %v1179
      %v1260 = vadd.f32 %v746, %v1184
      %v1261 = vadd.f32 %v747, %v1187
      %v1262 = vadd.f32 %v748, %v1192
      %v1263 = vadd.f32 %v749, %v1195
      %v1264 = vadd.f32 %v750, %v1200
      %v1265 = vadd.f32 %v751, %v1203
      %v1266 = vadd.f32 %v752, %v1208
      %v1267 = vadd.f32 %v753, %v1211
      %v1268 = vadd.f32 %v754, %v1216
      %v1269 = vadd.f32 %v755, %v1219
      %v1270 = vadd.f32 %v756, %v1224
      %v1271 = vadd.f32 %v757, %v1227
      %v1272 = vadd.f32 %v758, %v1232
      %v1273 = vadd.f32 %v759, %v1235
      %1274 = vst.msk [vmem:[%s170] sm:$0xff] %vm179, %v1238
      %1275 = vst.msk [vmem:[%s170 + $0x8] sm:$0xff] %vm179, %v1239
      %1276 = vst.msk [vmem:[%s170 + $0x10] sm:$0xff] %vm179, %v1240
      %1277 = vst.msk [vmem:[%s170 + $0x18] sm:$0xff] %vm179, %v1241
      %1278 = vst.msk [vmem:[%s170 + $0x20] sm:$0xff] %vm179, %v1242
      %1279 = vst.msk [vmem:[%s170 + $0x28] sm:$0xff] %vm179, %v1243
      %1280 = vst.msk [vmem:[%s170 + $0x30] sm:$0xff] %vm179, %v1244
      %1281 = vst.msk [vmem:[%s170 + $0x38] sm:$0xff] %vm179, %v1245
      %1282 = vst.msk [vmem:[%s170 + $0x40] sm:$0xff] %vm179, %v1246
      %1283 = vst.msk [vmem:[%s170 + $0x48] sm:$0xff] %vm179, %v1247
      %1284 = vst.msk [vmem:[%s170 + $0x50] sm:$0xff] %vm179, %v1248
      %1285 = vst.msk [vmem:[%s170 + $0x58] sm:$0xff] %vm179, %v1249
      %1286 = vst.msk [vmem:[%s170 + $0x60] sm:$0xff] %vm179, %v1250
      %1287 = vst.msk [vmem:[%s170 + $0x68] sm:$0xff] %vm179, %v1251
      %1288 = vst.msk [vmem:[%s170 + $0x70] sm:$0xff] %vm179, %v1252
      %1289 = vst.msk [vmem:[%s170 + $0x78] sm:$0xff] %vm179, %v1253
      %1290 = vst.msk [vmem:[%s170 + $0x80] sm:$0xff] %vm179, %v1254
      %1291 = vst.msk [vmem:[%s170 + $0x88] sm:$0xff] %vm179, %v1255
      %1292 = vst.msk [vmem:[%s170 + $0x90] sm:$0xff] %vm179, %v1256
      %1293 = vst.msk [vmem:[%s170 + $0x98] sm:$0xff] %vm179, %v1257
      %1294 = vst.msk [vmem:[%s170 + $0xa0] sm:$0xff] %vm179, %v1258
      %1295 = vst.msk [vmem:[%s170 + $0xa8] sm:$0xff] %vm179, %v1259
      %1296 = vst.msk [vmem:[%s170 + $0xb0] sm:$0xff] %vm179, %v1260
      %1297 = vst.msk [vmem:[%s170 + $0xb8] sm:$0xff] %vm179, %v1261
      %1298 = vst.msk [vmem:[%s170 + $0xc0] sm:$0xff] %vm179, %v1262
      %1299 = vst.msk [vmem:[%s170 + $0xc8] sm:$0xff] %vm179, %v1263
      %1300 = vst.msk [vmem:[%s170 + $0xd0] sm:$0xff] %vm179, %v1264
      %1301 = vst.msk [vmem:[%s170 + $0xd8] sm:$0xff] %vm179, %v1265
      %1302 = vst.msk [vmem:[%s170 + $0xe0] sm:$0xff] %vm179, %v1266
      %1303 = vst.msk [vmem:[%s170 + $0xe8] sm:$0xff] %vm179, %v1267
      %1304 = vst.msk [vmem:[%s170 + $0xf0] sm:$0xff] %vm179, %v1268
      %1305 = vst.msk [vmem:[%s170 + $0xf8] sm:$0xff] %vm179, %v1269
      %1306 = vst.msk [vmem:[%s170 + $0x100] sm:$0xff] %vm179, %v1270
      %1307 = vst.msk [vmem:[%s170 + $0x108] sm:$0xff] %vm179, %v1271
      %1308 = vst.msk [vmem:[%s170 + $0x110] sm:$0xff] %vm179, %v1272
      %1309 = vst.msk [vmem:[%s170 + $0x118] sm:$0xff] %vm179, %v1273
      %v1310 = vld [vmem:[%s165] sm:$0xe]
      %v1311 = vld [vmem:[%s165 + $0x4] sm:$0xf]
      %v1312 = vld [vmem:[%s165 + $0x8] sm:$0xf]
      %v1313 = vld [vmem:[%s165 + $0xc] sm:$0xf]
      %v1314 = vld [vmem:[%s165 + $0x10] sm:$0xf]
      %v1315 = vld [vmem:[%s165 + $0x14] sm:$0xf]
      %v1316 = vld [vmem:[%s165 + $0x18] sm:$0xf]
      %v1317 = vld [vmem:[%s165 + $0x1c] sm:$0xf]
      %v1318 = vld [vmem:[%s165 + $0x20] sm:$0xf]
      %v1319 = vld [vmem:[%s165 + $0x24] sm:$0xf]
      %v1320 = vld [vmem:[%s165 + $0x28] sm:$0xf]
      %v1321 = vld [vmem:[%s165 + $0x2c] sm:$0xf]
      %v1322 = vld [vmem:[%s165 + $0x30] sm:$0xf]
      %v1323 = vld [vmem:[%s165 + $0x34] sm:$0xf]
      %v1324 = vld [vmem:[%s165 + $0x38] sm:$0xf]
      %v1325 = vld [vmem:[%s165 + $0x3c] sm:$0xf]
      %v1326 = vld [vmem:[%s165 + $0x40] sm:$0xf]
      %v1327 = vld [vmem:[%s165 + $0x44] sm:$0xf]
      %v1328 = vld [vmem:[%s165 + $0x48] sm:$0xf]
      %v1329 = vld [vmem:[%s165 + $0x4c] sm:$0xf]
      %v1330 = vld [vmem:[%s165 + $0x50] sm:$0xf]
      %v1331 = vld [vmem:[%s165 + $0x54] sm:$0xf]
      %v1332 = vld [vmem:[%s165 + $0x58] sm:$0xf]
      %v1333 = vld [vmem:[%s165 + $0x5c] sm:$0xf]
      %v1334 = vld [vmem:[%s165 + $0x60] sm:$0xf]
      %v1335 = vld [vmem:[%s165 + $0x64] sm:$0xf]
      %v1336 = vld [vmem:[%s165 + $0x68] sm:$0xf]
      %v1337 = vld [vmem:[%s165 + $0x6c] sm:$0xf]
      %v1338 = vld [vmem:[%s165 + $0x70] sm:$0xf]
      %v1339 = vld [vmem:[%s165 + $0x74] sm:$0xf]
      %v1340 = vld [vmem:[%s165 + $0x78] sm:$0xf]
      %v1341 = vld [vmem:[%s165 + $0x7c] sm:$0xf]
      %v1342 = vld [vmem:[%s165 + $0x80] sm:$0xf]
      %v1343 = vld [vmem:[%s165 + $0x84] sm:$0xf]
      %v1344 = vld [vmem:[%s165 + $0x88] sm:$0xf]
      %v1345 = vld [vmem:[%s165 + $0x8c] sm:$0xf]
      %v1346 = vld [vmem:[%s165 + $0x90] sm:$0x1]
      %v1347 = vld [vmem:[%s170] sm:$0xff]
      %v1348 = vld [vmem:[%s170 + $0x8] sm:$0xff]
      %v1349 = vld [vmem:[%s170 + $0x10] sm:$0xff]
      %v1350 = vld [vmem:[%s170 + $0x18] sm:$0xff]
      %v1351 = vld [vmem:[%s170 + $0x20] sm:$0xff]
      %v1352 = vld [vmem:[%s170 + $0x28] sm:$0xff]
      %v1353 = vld [vmem:[%s170 + $0x30] sm:$0xff]
      %v1354 = vld [vmem:[%s170 + $0x38] sm:$0xff]
      %v1355 = vld [vmem:[%s170 + $0x40] sm:$0xff]
      %v1356 = vld [vmem:[%s170 + $0x48] sm:$0xff]
      %v1357 = vld [vmem:[%s170 + $0x50] sm:$0xff]
      %v1358 = vld [vmem:[%s170 + $0x58] sm:$0xff]
      %v1359 = vld [vmem:[%s170 + $0x60] sm:$0xff]
      %v1360 = vld [vmem:[%s170 + $0x68] sm:$0xff]
      %v1361 = vld [vmem:[%s170 + $0x70] sm:$0xff]
      %v1362 = vld [vmem:[%s170 + $0x78] sm:$0xff]
      %v1363 = vld [vmem:[%s170 + $0x80] sm:$0xff]
      %v1364 = vld [vmem:[%s170 + $0x88] sm:$0xff]
      %v1365 = vld [vmem:[%s170 + $0x90] sm:$0xff]
      %v1366 = vld [vmem:[%s170 + $0x98] sm:$0xff]
      %v1367 = vld [vmem:[%s170 + $0xa0] sm:$0xff]
      %v1368 = vld [vmem:[%s170 + $0xa8] sm:$0xff]
      %v1369 = vld [vmem:[%s170 + $0xb0] sm:$0xff]
      %v1370 = vld [vmem:[%s170 + $0xb8] sm:$0xff]
      %v1371 = vld [vmem:[%s170 + $0xc0] sm:$0xff]
      %v1372 = vld [vmem:[%s170 + $0xc8] sm:$0xff]
      %v1373 = vld [vmem:[%s170 + $0xd0] sm:$0xff]
      %v1374 = vld [vmem:[%s170 + $0xd8] sm:$0xff]
      %v1375 = vld [vmem:[%s170 + $0xe0] sm:$0xff]
      %v1376 = vld [vmem:[%s170 + $0xe8] sm:$0xff]
      %v1377 = vld [vmem:[%s170 + $0xf0] sm:$0xff]
      %v1378 = vld [vmem:[%s170 + $0xf8] sm:$0xff]
      %v1379 = vld [vmem:[%s170 + $0x100] sm:$0xff]
      %v1380 = vld [vmem:[%s170 + $0x108] sm:$0xff]
      %v1381 = vld [vmem:[%s170 + $0x110] sm:$0xff]
      %v1382 = vld [vmem:[%s170 + $0x118] sm:$0xff]
      %s1383 = scalar_lea.vmem %s1, 4
      %v1384 = vld [vmem:[%s1383] sm:$0x3]
      %v1422 = vunpack.c.l.b16 %v1310
      %v1423 = vunpack.c.l.b16 %v1311
      %v1424 = vunpack.c.l.b16 %v1312
      %v1425 = vunpack.c.l.b16 %v1313
      %v1426 = vunpack.c.l.b16 %v1314
      %v1427 = vunpack.c.l.b16 %v1315
      %v1428 = vunpack.c.l.b16 %v1316
      %v1429 = vunpack.c.l.b16 %v1317
      %v1430 = vunpack.c.l.b16 %v1318
      %v1431 = vunpack.c.l.b16 %v1319
      %v1432 = vunpack.c.l.b16 %v1320
      %v1433 = vunpack.c.l.b16 %v1321
      %v1434 = vunpack.c.l.b16 %v1322
      %v1435 = vunpack.c.l.b16 %v1323
      %v1436 = vunpack.c.l.b16 %v1324
      %v1437 = vunpack.c.l.b16 %v1325
      %v1438 = vunpack.c.l.b16 %v1326
      %v1439 = vunpack.c.l.b16 %v1327
      %v1440 = vunpack.c.l.b16 %v1328
      %v1441 = vunpack.c.l.b16 %v1329
      %v1442 = vunpack.c.l.b16 %v1330
      %v1443 = vunpack.c.l.b16 %v1331
      %v1444 = vunpack.c.l.b16 %v1332
      %v1445 = vunpack.c.l.b16 %v1333
      %v1446 = vunpack.c.l.b16 %v1334
      %v1447 = vunpack.c.l.b16 %v1335
      %v1448 = vunpack.c.l.b16 %v1336
      %v1449 = vunpack.c.l.b16 %v1337
      %v1450 = vunpack.c.l.b16 %v1338
      %v1451 = vunpack.c.l.b16 %v1339
      %v1452 = vunpack.c.l.b16 %v1340
      %v1453 = vunpack.c.l.b16 %v1341
      %v1454 = vunpack.c.l.b16 %v1342
      %v1455 = vunpack.c.l.b16 %v1343
      %v1456 = vunpack.c.l.b16 %v1344
      %v1457 = vunpack.c.l.b16 %v1345
      %v1458 = vunpack.c.l.b16 %v1346
      %v1459 = vpack.c.b16 %v1423, %v1422
      %v1460 = vpack.c.b16 %v1425, %v1424
      %v1461 = vpack.c.b16 %v1427, %v1426
      %v1462 = vpack.c.b16 %v1429, %v1428
      %v1463 = vpack.c.b16 %v1431, %v1430
      %v1464 = vpack.c.b16 %v1433, %v1432
      %v1465 = vpack.c.b16 %v1435, %v1434
      %v1466 = vpack.c.b16 %v1437, %v1436
      %v1467 = vpack.c.b16 %v1439, %v1438
      %v1468 = vpack.c.b16 %v1441, %v1440
      %v1469 = vpack.c.b16 %v1443, %v1442
      %v1470 = vpack.c.b16 %v1445, %v1444
      %v1471 = vpack.c.b16 %v1447, %v1446
      %v1472 = vpack.c.b16 %v1449, %v1448
      %v1473 = vpack.c.b16 %v1451, %v1450
      %v1474 = vpack.c.b16 %v1453, %v1452
      %v1475 = vpack.c.b16 %v1455, %v1454
      %v1476 = vpack.c.b16 %v1457, %v1456
      %v1477 = vpack.c.b16 %v1458, %v1458
      %vm1478 = vcmask 1046528
      %v1479 = vrot.slane %v1459, 1
      %v1480 = vrot.slane %v1460, 1
      %v1481 = vsel %vm1478, %v1479, %v1480
      %v1482 = vrot.slane %v1461, 1
      %v1483 = vsel %vm1478, %v1480, %v1482
      %v1484 = vrot.slane %v1462, 1
      %v1485 = vsel %vm1478, %v1482, %v1484
      %v1486 = vrot.slane %v1463, 1
      %v1487 = vsel %vm1478, %v1484, %v1486
      %v1488 = vrot.slane %v1464, 1
      %v1489 = vsel %vm1478, %v1486, %v1488
      %v1490 = vrot.slane %v1465, 1
      %v1491 = vsel %vm1478, %v1488, %v1490
      %v1492 = vrot.slane %v1466, 1
      %v1493 = vsel %vm1478, %v1490, %v1492
      %v1494 = vrot.slane %v1467, 1
      %v1495 = vsel %vm1478, %v1492, %v1494
      %v1496 = vrot.slane %v1468, 1
      %v1497 = vsel %vm1478, %v1494, %v1496
      %v1498 = vrot.slane %v1469, 1
      %v1499 = vsel %vm1478, %v1496, %v1498
      %v1500 = vrot.slane %v1470, 1
      %v1501 = vsel %vm1478, %v1498, %v1500
      %v1502 = vrot.slane %v1471, 1
      %v1503 = vsel %vm1478, %v1500, %v1502
      %v1504 = vrot.slane %v1472, 1
      %v1505 = vsel %vm1478, %v1502, %v1504
      %v1506 = vrot.slane %v1473, 1
      %v1507 = vsel %vm1478, %v1504, %v1506
      %v1508 = vrot.slane %v1474, 1
      %v1509 = vsel %vm1478, %v1506, %v1508
      %v1510 = vrot.slane %v1475, 1
      %v1511 = vsel %vm1478, %v1508, %v1510
      %v1512 = vrot.slane %v1476, 1
      %v1513 = vsel %vm1478, %v1510, %v1512
      %v1514 = vrot.slane %v1477, 1
      %v1515 = vsel %vm1478, %v1512, %v1514
      %v1517 = vsel %vm379, %v1481, 0
      %v1520 = vsel %vm379, %v1483, 0
      %v1523 = vsel %vm379, %v1485, 0
      %v1526 = vsel %vm379, %v1487, 0
      %v1529 = vsel %vm379, %v1489, 0
      %v1532 = vsel %vm379, %v1491, 0
      %v1535 = vsel %vm379, %v1493, 0
      %v1538 = vsel %vm379, %v1495, 0
      %v1541 = vsel %vm379, %v1497, 0
      %v1544 = vsel %vm379, %v1499, 0
      %v1547 = vsel %vm379, %v1501, 0
      %v1550 = vsel %vm379, %v1503, 0
      %v1553 = vsel %vm379, %v1505, 0
      %v1556 = vsel %vm379, %v1507, 0
      %v1559 = vsel %vm379, %v1509, 0
      %v1562 = vsel %vm379, %v1511, 0
      %v1565 = vsel %vm379, %v1513, 0
      %v1568 = vsel %vm379, %v1515, 0
      %v1571 = vsel %vm434, %v1384, 0
      %1573 = vmatprep.subr.bf16.mxu0 0
      %1574 = vmatpush1.bf16.msra.mxu0 %v1571
      %1575 = vmatprep.subr.bf16.mxu0 0
      %1576 = vmatpush1.bf16.msra.mxu0 0
      %1577 = vmatprep.subr.bf16.mxu0 0
      %1578 = vmatpush1.bf16.msra.mxu0 0
      %1579 = vmatprep.subr.bf16.mxu0 0
      %1580 = vmatpush1.bf16.msra.mxu0 0
      %1581 = vmatprep.subr.bf16.mxu0 0
      %1582 = vmatpush1.bf16.msra.mxu0 0
      %1583 = vmatprep.subr.bf16.mxu0 0
      %1584 = vmatpush1.bf16.msra.mxu0 0
      %1585 = vmatprep.subr.bf16.mxu0 0
      %1586 = vmatpush1.bf16.msra.mxu0 0
      %1587 = vmatprep.subr.bf16.mxu0 0
      %1588 = vmatpush1.bf16.msra.mxu0 0
      %1589 = vmatprep.subr.bf16.mxu0 0
      %1590 = vmatpush1.bf16.msra.mxu0 0
      %1591 = vmatprep.subr.bf16.mxu0 0
      %1592 = vmatpush1.bf16.msra.mxu0 0
      %1593 = vmatprep.subr.bf16.mxu0 0
      %1594 = vmatpush1.bf16.msra.mxu0 0
      %1595 = vmatprep.subr.bf16.mxu0 0
      %1596 = vmatpush1.bf16.msra.mxu0 0
      %1597 = vmatprep.subr.bf16.mxu0 0
      %1598 = vmatpush1.bf16.msra.mxu0 0
      %1599 = vmatprep.subr.bf16.mxu0 0
      %1600 = vmatpush1.bf16.msra.mxu0 0
      %1601 = vmatprep.subr.bf16.mxu0 0
      %1602 = vmatpush1.bf16.msra.mxu0 0
      %1603 = vmatprep.subr.bf16.mxu0 0
      %1604 = vmatpush1.bf16.msra.mxu0 0
      %1605 = vmatprep.mubr.bf16.mxu0 0
      %1606 = vmatmul.mubr.bf16.gmra.mrb[0].mxu0 %v1517
      %v1607 = vpop.f32.mrb[0].mxu0
      %v1608 = vadd.f32 0.0, %v1607
      %v1609 = vpop.f32.mrb[0].mxu0
      %v1610 = vpop.f32.mrb[0].mxu0
      %v1611 = vadd.f32 0.0, %v1610
      %v1612 = vpop.f32.mrb[0].mxu0
      %1613 = vmatprep.mubr.bf16.mxu0 0
      %1614 = vmatmul.mubr.bf16.gmra.mrb[0].mxu0 %v1520
      %v1615 = vpop.f32.mrb[0].mxu0
      %v1616 = vadd.f32 0.0, %v1615
      %v1617 = vpop.f32.mrb[0].mxu0
      %v1618 = vpop.f32.mrb[0].mxu0
      %v1619 = vadd.f32 0.0, %v1618
      %v1620 = vpop.f32.mrb[0].mxu0
      %1621 = vmatprep.mubr.bf16.mxu0 0
      %1622 = vmatmul.mubr.bf16.gmra.mrb[0].mxu0 %v1523
      %v1623 = vpop.f32.mrb[0].mxu0
      %v1624 = vadd.f32 0.0, %v1623
      %v1625 = vpop.f32.mrb[0].mxu0
      %v1626 = vpop.f32.mrb[0].mxu0
      %v1627 = vadd.f32 0.0, %v1626
      %v1628 = vpop.f32.mrb[0].mxu0
      %1629 = vmatprep.mubr.bf16.mxu0 0
      %1630 = vmatmul.mubr.bf16.gmra.mrb[0].mxu0 %v1526
      %v1631 = vpop.f32.mrb[0].mxu0
      %v1632 = vadd.f32 0.0, %v1631
      %v1633 = vpop.f32.mrb[0].mxu0
      %v1634 = vpop.f32.mrb[0].mxu0
      %v1635 = vadd.f32 0.0, %v1634
      %v1636 = vpop.f32.mrb[0].mxu0
      %1637 = vmatprep.mubr.bf16.mxu0 0
      %1638 = vmatmul.mubr.bf16.gmra.mrb[0].mxu0 %v1529
      %v1639 = vpop.f32.mrb[0].mxu0
      %v1640 = vadd.f32 0.0, %v1639
      %v1641 = vpop.f32.mrb[0].mxu0
      %v1642 = vpop.f32.mrb[0].mxu0
      %v1643 = vadd.f32 0.0, %v1642
      %v1644 = vpop.f32.mrb[0].mxu0
      %1645 = vmatprep.mubr.bf16.mxu0 0
      %1646 = vmatmul.mubr.bf16.gmra.mrb[0].mxu0 %v1532
      %v1647 = vpop.f32.mrb[0].mxu0
      %v1648 = vadd.f32 0.0, %v1647
      %v1649 = vpop.f32.mrb[0].mxu0
      %v1650 = vpop.f32.mrb[0].mxu0
      %v1651 = vadd.f32 0.0, %v1650
      %v1652 = vpop.f32.mrb[0].mxu0
      %1653 = vmatprep.mubr.bf16.mxu0 0
      %1654 = vmatmul.mubr.bf16.gmra.mrb[0].mxu0 %v1535
      %v1655 = vpop.f32.mrb[0].mxu0
      %v1656 = vadd.f32 0.0, %v1655
      %v1657 = vpop.f32.mrb[0].mxu0
      %v1658 = vpop.f32.mrb[0].mxu0
      %v1659 = vadd.f32 0.0, %v1658
      %v1660 = vpop.f32.mrb[0].mxu0
      %1661 = vmatprep.mubr.bf16.mxu0 0
      %1662 = vmatmul.mubr.bf16.gmra.mrb[0].mxu0 %v1538
      %v1663 = vpop.f32.mrb[0].mxu0
      %v1664 = vadd.f32 0.0, %v1663
      %v1665 = vpop.f32.mrb[0].mxu0
      %v1666 = vpop.f32.mrb[0].mxu0
      %v1667 = vadd.f32 0.0, %v1666
      %v1668 = vpop.f32.mrb[0].mxu0
      %1669 = vmatprep.mubr.bf16.mxu0 0
      %1670 = vmatmul.mubr.bf16.gmra.mrb[0].mxu0 %v1541
      %v1671 = vpop.f32.mrb[0].mxu0
      %v1672 = vadd.f32 0.0, %v1671
      %v1673 = vpop.f32.mrb[0].mxu0
      %v1674 = vpop.f32.mrb[0].mxu0
      %v1675 = vadd.f32 0.0, %v1674
      %v1676 = vpop.f32.mrb[0].mxu0
      %1677 = vmatprep.mubr.bf16.mxu0 0
      %1678 = vmatmul.mubr.bf16.gmra.mrb[0].mxu0 %v1544
      %v1679 = vpop.f32.mrb[0].mxu0
      %v1680 = vadd.f32 0.0, %v1679
      %v1681 = vpop.f32.mrb[0].mxu0
      %v1682 = vpop.f32.mrb[0].mxu0
      %v1683 = vadd.f32 0.0, %v1682
      %v1684 = vpop.f32.mrb[0].mxu0
      %1685 = vmatprep.mubr.bf16.mxu0 0
      %1686 = vmatmul.mubr.bf16.gmra.mrb[0].mxu0 %v1547
      %v1687 = vpop.f32.mrb[0].mxu0
      %v1688 = vadd.f32 0.0, %v1687
      %v1689 = vpop.f32.mrb[0].mxu0
      %v1690 = vpop.f32.mrb[0].mxu0
      %v1691 = vadd.f32 0.0, %v1690
      %v1692 = vpop.f32.mrb[0].mxu0
      %1693 = vmatprep.mubr.bf16.mxu0 0
      %1694 = vmatmul.mubr.bf16.gmra.mrb[0].mxu0 %v1550
      %v1695 = vpop.f32.mrb[0].mxu0
      %v1696 = vadd.f32 0.0, %v1695
      %v1697 = vpop.f32.mrb[0].mxu0
      %v1698 = vpop.f32.mrb[0].mxu0
      %v1699 = vadd.f32 0.0, %v1698
      %v1700 = vpop.f32.mrb[0].mxu0
      %1701 = vmatprep.mubr.bf16.mxu0 0
      %1702 = vmatmul.mubr.bf16.gmra.mrb[0].mxu0 %v1553
      %v1703 = vpop.f32.mrb[0].mxu0
      %v1704 = vadd.f32 0.0, %v1703
      %v1705 = vpop.f32.mrb[0].mxu0
      %v1706 = vpop.f32.mrb[0].mxu0
      %v1707 = vadd.f32 0.0, %v1706
      %v1708 = vpop.f32.mrb[0].mxu0
      %1709 = vmatprep.mubr.bf16.mxu0 0
      %1710 = vmatmul.mubr.bf16.gmra.mrb[0].mxu0 %v1556
      %v1711 = vpop.f32.mrb[0].mxu0
      %v1712 = vadd.f32 0.0, %v1711
      %v1713 = vpop.f32.mrb[0].mxu0
      %v1714 = vpop.f32.mrb[0].mxu0
      %v1715 = vadd.f32 0.0, %v1714
      %v1716 = vpop.f32.mrb[0].mxu0
      %1717 = vmatprep.mubr.bf16.mxu0 0
      %1718 = vmatmul.mubr.bf16.gmra.mrb[0].mxu0 %v1559
      %v1719 = vpop.f32.mrb[0].mxu0
      %v1720 = vadd.f32 0.0, %v1719
      %v1721 = vpop.f32.mrb[0].mxu0
      %v1722 = vpop.f32.mrb[0].mxu0
      %v1723 = vadd.f32 0.0, %v1722
      %v1724 = vpop.f32.mrb[0].mxu0
      %1725 = vmatprep.mubr.bf16.mxu0 0
      %1726 = vmatmul.mubr.bf16.gmra.mrb[0].mxu0 %v1562
      %v1727 = vpop.f32.mrb[0].mxu0
      %v1728 = vadd.f32 0.0, %v1727
      %v1729 = vpop.f32.mrb[0].mxu0
      %v1730 = vpop.f32.mrb[0].mxu0
      %v1731 = vadd.f32 0.0, %v1730
      %v1732 = vpop.f32.mrb[0].mxu0
      %1733 = vmatprep.mubr.bf16.mxu0 0
      %1734 = vmatmul.mubr.bf16.gmra.mrb[0].mxu0 %v1565
      %v1735 = vpop.f32.mrb[0].mxu0
      %v1736 = vadd.f32 0.0, %v1735
      %v1737 = vpop.f32.mrb[0].mxu0
      %v1738 = vpop.f32.mrb[0].mxu0
      %v1739 = vadd.f32 0.0, %v1738
      %v1740 = vpop.f32.mrb[0].mxu0
      %1741 = vmatprep.mubr.bf16.mxu0 0
      %1742 = vmatmul.mubr.bf16.gmra.mrb[0].mxu0 %v1568
      %v1743 = vpop.f32.mrb[0].mxu0
      %v1744 = vadd.f32 0.0, %v1743
      %v1745 = vpop.f32.mrb[0].mxu0
      %v1746 = vpop.f32.mrb[0].mxu0
      %v1747 = vadd.f32 0.0, %v1746
      %v1748 = vpop.f32.mrb[0].mxu0
      %1749 = vdwg.mxu0
      %v1750 = vadd.f32 %v1347, %v1608
      %v1751 = vadd.f32 %v1348, %v1611
      %v1752 = vadd.f32 %v1349, %v1616
      %v1753 = vadd.f32 %v1350, %v1619
      %v1754 = vadd.f32 %v1351, %v1624
      %v1755 = vadd.f32 %v1352, %v1627
      %v1756 = vadd.f32 %v1353, %v1632
      %v1757 = vadd.f32 %v1354, %v1635
      %v1758 = vadd.f32 %v1355, %v1640
      %v1759 = vadd.f32 %v1356, %v1643
      %v1760 = vadd.f32 %v1357, %v1648
      %v1761 = vadd.f32 %v1358, %v1651
      %v1762 = vadd.f32 %v1359, %v1656
      %v1763 = vadd.f32 %v1360, %v1659
      %v1764 = vadd.f32 %v1361, %v1664
      %v1765 = vadd.f32 %v1362, %v1667
      %v1766 = vadd.f32 %v1363, %v1672
      %v1767 = vadd.f32 %v1364, %v1675
      %v1768 = vadd.f32 %v1365, %v1680
      %v1769 = vadd.f32 %v1366, %v1683
      %v1770 = vadd.f32 %v1367, %v1688
      %v1771 = vadd.f32 %v1368, %v1691
      %v1772 = vadd.f32 %v1369, %v1696
      %v1773 = vadd.f32 %v1370, %v1699
      %v1774 = vadd.f32 %v1371, %v1704
      %v1775 = vadd.f32 %v1372, %v1707
      %v1776 = vadd.f32 %v1373, %v1712
      %v1777 = vadd.f32 %v1374, %v1715
      %v1778 = vadd.f32 %v1375, %v1720
      %v1779 = vadd.f32 %v1376, %v1723
      %v1780 = vadd.f32 %v1377, %v1728
      %v1781 = vadd.f32 %v1378, %v1731
      %v1782 = vadd.f32 %v1379, %v1736
      %v1783 = vadd.f32 %v1380, %v1739
      %v1784 = vadd.f32 %v1381, %v1744
      %v1785 = vadd.f32 %v1382, %v1747
      %1786 = vst.msk [vmem:[%s170] sm:$0xff] %vm179, %v1750
      %1787 = vst.msk [vmem:[%s170 + $0x8] sm:$0xff] %vm179, %v1751
      %1788 = vst.msk [vmem:[%s170 + $0x10] sm:$0xff] %vm179, %v1752
      %1789 = vst.msk [vmem:[%s170 + $0x18] sm:$0xff] %vm179, %v1753
      %1790 = vst.msk [vmem:[%s170 + $0x20] sm:$0xff] %vm179, %v1754
      %1791 = vst.msk [vmem:[%s170 + $0x28] sm:$0xff] %vm179, %v1755
      %1792 = vst.msk [vmem:[%s170 + $0x30] sm:$0xff] %vm179, %v1756
      %1793 = vst.msk [vmem:[%s170 + $0x38] sm:$0xff] %vm179, %v1757
      %1794 = vst.msk [vmem:[%s170 + $0x40] sm:$0xff] %vm179, %v1758
      %1795 = vst.msk [vmem:[%s170 + $0x48] sm:$0xff] %vm179, %v1759
      %1796 = vst.msk [vmem:[%s170 + $0x50] sm:$0xff] %vm179, %v1760
      %1797 = vst.msk [vmem:[%s170 + $0x58] sm:$0xff] %vm179, %v1761
      %1798 = vst.msk [vmem:[%s170 + $0x60] sm:$0xff] %vm179, %v1762
      %1799 = vst.msk [vmem:[%s170 + $0x68] sm:$0xff] %vm179, %v1763
      %1800 = vst.msk [vmem:[%s170 + $0x70] sm:$0xff] %vm179, %v1764
      %1801 = vst.msk [vmem:[%s170 + $0x78] sm:$0xff] %vm179, %v1765
      %1802 = vst.msk [vmem:[%s170 + $0x80] sm:$0xff] %vm179, %v1766
      %1803 = vst.msk [vmem:[%s170 + $0x88] sm:$0xff] %vm179, %v1767
      %1804 = vst.msk [vmem:[%s170 + $0x90] sm:$0xff] %vm179, %v1768
      %1805 = vst.msk [vmem:[%s170 + $0x98] sm:$0xff] %vm179, %v1769
      %1806 = vst.msk [vmem:[%s170 + $0xa0] sm:$0xff] %vm179, %v1770
      %1807 = vst.msk [vmem:[%s170 + $0xa8] sm:$0xff] %vm179, %v1771
      %1808 = vst.msk [vmem:[%s170 + $0xb0] sm:$0xff] %vm179, %v1772
      %1809 = vst.msk [vmem:[%s170 + $0xb8] sm:$0xff] %vm179, %v1773
      %1810 = vst.msk [vmem:[%s170 + $0xc0] sm:$0xff] %vm179, %v1774
      %1811 = vst.msk [vmem:[%s170 + $0xc8] sm:$0xff] %vm179, %v1775
      %1812 = vst.msk [vmem:[%s170 + $0xd0] sm:$0xff] %vm179, %v1776
      %1813 = vst.msk [vmem:[%s170 + $0xd8] sm:$0xff] %vm179, %v1777
      %1814 = vst.msk [vmem:[%s170 + $0xe0] sm:$0xff] %vm179, %v1778
      %1815 = vst.msk [vmem:[%s170 + $0xe8] sm:$0xff] %vm179, %v1779
      %1816 = vst.msk [vmem:[%s170 + $0xf0] sm:$0xff] %vm179, %v1780
      %1817 = vst.msk [vmem:[%s170 + $0xf8] sm:$0xff] %vm179, %v1781
      %1818 = vst.msk [vmem:[%s170 + $0x100] sm:$0xff] %vm179, %v1782
      %1819 = vst.msk [vmem:[%s170 + $0x108] sm:$0xff] %vm179, %v1783
      %1820 = vst.msk [vmem:[%s170 + $0x110] sm:$0xff] %vm179, %v1784
      %1821 = vst.msk [vmem:[%s170 + $0x118] sm:$0xff] %vm179, %v1785
      %v1822 = vld [vmem:[%s165 + $0x8] sm:$0xe]
      %v1823 = vld [vmem:[%s165 + $0xc] sm:$0xf]
      %v1824 = vld [vmem:[%s165 + $0x10] sm:$0xf]
      %v1825 = vld [vmem:[%s165 + $0x14] sm:$0xf]
      %v1826 = vld [vmem:[%s165 + $0x18] sm:$0xf]
      %v1827 = vld [vmem:[%s165 + $0x1c] sm:$0xf]
      %v1828 = vld [vmem:[%s165 + $0x20] sm:$0xf]
      %v1829 = vld [vmem:[%s165 + $0x24] sm:$0xf]
      %v1830 = vld [vmem:[%s165 + $0x28] sm:$0xf]
      %v1831 = vld [vmem:[%s165 + $0x2c] sm:$0xf]
      %v1832 = vld [vmem:[%s165 + $0x30] sm:$0xf]
      %v1833 = vld [vmem:[%s165 + $0x34] sm:$0xf]
      %v1834 = vld [vmem:[%s165 + $0x38] sm:$0xf]
      %v1835 = vld [vmem:[%s165 + $0x3c] sm:$0xf]
      %v1836 = vld [vmem:[%s165 + $0x40] sm:$0xf]
      %v1837 = vld [vmem:[%s165 + $0x44] sm:$0xf]
      %v1838 = vld [vmem:[%s165 + $0x48] sm:$0xf]
      %v1839 = vld [vmem:[%s165 + $0x4c] sm:$0xf]
      %v1840 = vld [vmem:[%s165 + $0x50] sm:$0xf]
      %v1841 = vld [vmem:[%s165 + $0x54] sm:$0xf]
      %v1842 = vld [vmem:[%s165 + $0x58] sm:$0xf]
      %v1843 = vld [vmem:[%s165 + $0x5c] sm:$0xf]
      %v1844 = vld [vmem:[%s165 + $0x60] sm:$0xf]
      %v1845 = vld [vmem:[%s165 + $0x64] sm:$0xf]
      %v1846 = vld [vmem:[%s165 + $0x68] sm:$0xf]
      %v1847 = vld [vmem:[%s165 + $0x6c] sm:$0xf]
      %v1848 = vld [vmem:[%s165 + $0x70] sm:$0xf]
      %v1849 = vld [vmem:[%s165 + $0x74] sm:$0xf]
      %v1850 = vld [vmem:[%s165 + $0x78] sm:$0xf]
      %v1851 = vld [vmem:[%s165 + $0x7c] sm:$0xf]
      %v1852 = vld [vmem:[%s165 + $0x80] sm:$0xf]
      %v1853 = vld [vmem:[%s165 + $0x84] sm:$0xf]
      %v1854 = vld [vmem:[%s165 + $0x88] sm:$0xf]
      %v1855 = vld [vmem:[%s165 + $0x8c] sm:$0xf]
      %v1856 = vld [vmem:[%s165 + $0x90] sm:$0xf]
      %v1857 = vld [vmem:[%s165 + $0x94] sm:$0xf]
      %v1858 = vld [vmem:[%s165 + $0x98] sm:$0x1]
      %v1859 = vld [vmem:[%s170] sm:$0xff]
      %v1860 = vld [vmem:[%s170 + $0x8] sm:$0xff]
      %v1861 = vld [vmem:[%s170 + $0x10] sm:$0xff]
      %v1862 = vld [vmem:[%s170 + $0x18] sm:$0xff]
      %v1863 = vld [vmem:[%s170 + $0x20] sm:$0xff]
      %v1864 = vld [vmem:[%s170 + $0x28] sm:$0xff]
      %v1865 = vld [vmem:[%s170 + $0x30] sm:$0xff]
      %v1866 = vld [vmem:[%s170 + $0x38] sm:$0xff]
      %v1867 = vld [vmem:[%s170 + $0x40] sm:$0xff]
      %v1868 = vld [vmem:[%s170 + $0x48] sm:$0xff]
      %v1869 = vld [vmem:[%s170 + $0x50] sm:$0xff]
      %v1870 = vld [vmem:[%s170 + $0x58] sm:$0xff]
      %v1871 = vld [vmem:[%s170 + $0x60] sm:$0xff]
      %v1872 = vld [vmem:[%s170 + $0x68] sm:$0xff]
      %v1873 = vld [vmem:[%s170 + $0x70] sm:$0xff]
      %v1874 = vld [vmem:[%s170 + $0x78] sm:$0xff]
      %v1875 = vld [vmem:[%s170 + $0x80] sm:$0xff]
      %v1876 = vld [vmem:[%s170 + $0x88] sm:$0xff]
      %v1877 = vld [vmem:[%s170 + $0x90] sm:$0xff]
      %v1878 = vld [vmem:[%s170 + $0x98] sm:$0xff]
      %v1879 = vld [vmem:[%s170 + $0xa0] sm:$0xff]
      %v1880 = vld [vmem:[%s170 + $0xa8] sm:$0xff]
      %v1881 = vld [vmem:[%s170 + $0xb0] sm:$0xff]
      %v1882 = vld [vmem:[%s170 + $0xb8] sm:$0xff]
      %v1883 = vld [vmem:[%s170 + $0xc0] sm:$0xff]
      %v1884 = vld [vmem:[%s170 + $0xc8] sm:$0xff]
      %v1885 = vld [vmem:[%s170 + $0xd0] sm:$0xff]
      %v1886 = vld [vmem:[%s170 + $0xd8] sm:$0xff]
      %v1887 = vld [vmem:[%s170 + $0xe0] sm:$0xff]
      %v1888 = vld [vmem:[%s170 + $0xe8] sm:$0xff]
      %v1889 = vld [vmem:[%s170 + $0xf0] sm:$0xff]
      %v1890 = vld [vmem:[%s170 + $0xf8] sm:$0xff]
      %v1891 = vld [vmem:[%s170 + $0x100] sm:$0xff]
      %v1892 = vld [vmem:[%s170 + $0x108] sm:$0xff]
      %v1893 = vld [vmem:[%s170 + $0x110] sm:$0xff]
      %v1894 = vld [vmem:[%s170 + $0x118] sm:$0xff]
      %s1895 = scalar_lea.vmem %s1, 6
      %v1896 = vld [vmem:[%s1895] sm:$0x3]
      %v1934 = vunpack.c.l.b16 %v1822
      %v1935 = vunpack.c.l.b16 %v1823
      %v1936 = vunpack.c.l.b16 %v1824
      %v1937 = vunpack.c.l.b16 %v1825
      %v1938 = vunpack.c.l.b16 %v1826
      %v1939 = vunpack.c.l.b16 %v1827
      %v1940 = vunpack.c.l.b16 %v1828
      %v1941 = vunpack.c.l.b16 %v1829
      %v1942 = vunpack.c.l.b16 %v1830
      %v1943 = vunpack.c.l.b16 %v1831
      %v1944 = vunpack.c.l.b16 %v1832
      %v1945 = vunpack.c.l.b16 %v1833
      %v1946 = vunpack.c.l.b16 %v1834
      %v1947 = vunpack.c.l.b16 %v1835
      %v1948 = vunpack.c.l.b16 %v1836
      %v1949 = vunpack.c.l.b16 %v1837
      %v1950 = vunpack.c.l.b16 %v1838
      %v1951 = vunpack.c.l.b16 %v1839
      %v1952 = vunpack.c.l.b16 %v1840
      %v1953 = vunpack.c.l.b16 %v1841
      %v1954 = vunpack.c.l.b16 %v1842
      %v1955 = vunpack.c.l.b16 %v1843
      %v1956 = vunpack.c.l.b16 %v1844
      %v1957 = vunpack.c.l.b16 %v1845
      %v1958 = vunpack.c.l.b16 %v1846
      %v1959 = vunpack.c.l.b16 %v1847
      %v1960 = vunpack.c.l.b16 %v1848
      %v1961 = vunpack.c.l.b16 %v1849
      %v1962 = vunpack.c.l.b16 %v1850
      %v1963 = vunpack.c.l.b16 %v1851
      %v1964 = vunpack.c.l.b16 %v1852
      %v1965 = vunpack.c.l.b16 %v1853
      %v1966 = vunpack.c.l.b16 %v1854
      %v1967 = vunpack.c.l.b16 %v1855
      %v1968 = vunpack.c.l.b16 %v1856
      %v1969 = vunpack.c.l.b16 %v1857
      %v1970 = vunpack.c.l.b16 %v1858
      %v1971 = vpack.c.b16 %v1935, %v1934
      %v1972 = vpack.c.b16 %v1937, %v1936
      %v1973 = vpack.c.b16 %v1939, %v1938
      %v1974 = vpack.c.b16 %v1941, %v1940
      %v1975 = vpack.c.b16 %v1943, %v1942
      %v1976 = vpack.c.b16 %v1945, %v1944
      %v1977 = vpack.c.b16 %v1947, %v1946
      %v1978 = vpack.c.b16 %v1949, %v1948
      %v1979 = vpack.c.b16 %v1951, %v1950
      %v1980 = vpack.c.b16 %v1953, %v1952
      %v1981 = vpack.c.b16 %v1955, %v1954
      %v1982 = vpack.c.b16 %v1957, %v1956
      %v1983 = vpack.c.b16 %v1959, %v1958
      %v1984 = vpack.c.b16 %v1961, %v1960
      %v1985 = vpack.c.b16 %v1963, %v1962
      %v1986 = vpack.c.b16 %v1965, %v1964
      %v1987 = vpack.c.b16 %v1967, %v1966
      %v1988 = vpack.c.b16 %v1969, %v1968
      %v1989 = vpack.c.b16 %v1970, %v1970
      %v1990 = vrot.slane %v1971, 1
      %v1991 = vrot.slane %v1972, 1
      %v1992 = vsel %vm1478, %v1990, %v1991
      %v1993 = vrot.slane %v1973, 1
      %v1994 = vsel %vm1478, %v1991, %v1993
      %v1995 = vrot.slane %v1974, 1
      %v1996 = vsel %vm1478, %v1993, %v1995
      %v1997 = vrot.slane %v1975, 1
      %v1998 = vsel %vm1478, %v1995, %v1997
      %v1999 = vrot.slane %v1976, 1
      %v2000 = vsel %vm1478, %v1997, %v1999
      %v2001 = vrot.slane %v1977, 1
      %v2002 = vsel %vm1478, %v1999, %v2001
      %v2003 = vrot.slane %v1978, 1
      %v2004 = vsel %vm1478, %v2001, %v2003
      %v2005 = vrot.slane %v1979, 1
      %v2006 = vsel %vm1478, %v2003, %v2005
      %v2007 = vrot.slane %v1980, 1
      %v2008 = vsel %vm1478, %v2005, %v2007
      %v2009 = vrot.slane %v1981, 1
      %v2010 = vsel %vm1478, %v2007, %v2009
      %v2011 = vrot.slane %v1982, 1
      %v2012 = vsel %vm1478, %v2009, %v2011
      %v2013 = vrot.slane %v1983, 1
      %v2014 = vsel %vm1478, %v2011, %v2013
      %v2015 = vrot.slane %v1984, 1
      %v2016 = vsel %vm1478, %v2013, %v2015
      %v2017 = vrot.slane %v1985, 1
      %v2018 = vsel %vm1478, %v2015, %v2017
      %v2019 = vrot.slane %v1986, 1
      %v2020 = vsel %vm1478, %v2017, %v2019
      %v2021 = vrot.slane %v1987, 1
      %v2022 = vsel %vm1478, %v2019, %v2021
      %v2023 = vrot.slane %v1988, 1
      %v2024 = vsel %vm1478, %v2021, %v2023
      %v2025 = vrot.slane %v1989, 1
      %v2026 = vsel %vm1478, %v2023, %v2025
      %v2028 = vsel %vm379, %v1992, 0
      %v2031 = vsel %vm379, %v1994, 0
      %v2034 = vsel %vm379, %v1996, 0
      %v2037 = vsel %vm379, %v1998, 0
      %v2040 = vsel %vm379, %v2000, 0
      %v2043 = vsel %vm379, %v2002, 0
      %v2046 = vsel %vm379, %v2004, 0
      %v2049 = vsel %vm379, %v2006, 0
      %v2052 = vsel %vm379, %v2008, 0
      %v2055 = vsel %vm379, %v2010, 0
      %v2058 = vsel %vm379, %v2012, 0
      %v2061 = vsel %vm379, %v2014, 0
      %v2064 = vsel %vm379, %v2016, 0
      %v2067 = vsel %vm379, %v2018, 0
      %v2070 = vsel %vm379, %v2020, 0
      %v2073 = vsel %vm379, %v2022, 0
      %v2076 = vsel %vm379, %v2024, 0
      %v2079 = vsel %vm379, %v2026, 0
      %v2082 = vsel %vm434, %v1896, 0
      %2084 = vmatprep.subr.bf16.mxu0 0
      %2085 = vmatpush1.bf16.msra.mxu0 %v2082
      %2086 = vmatprep.subr.bf16.mxu0 0
      %2087 = vmatpush1.bf16.msra.mxu0 0
      %2088 = vmatprep.subr.bf16.mxu0 0
      %2089 = vmatpush1.bf16.msra.mxu0 0
      %2090 = vmatprep.subr.bf16.mxu0 0
      %2091 = vmatpush1.bf16.msra.mxu0 0
      %2092 = vmatprep.subr.bf16.mxu0 0
      %2093 = vmatpush1.bf16.msra.mxu0 0
      %2094 = vmatprep.subr.bf16.mxu0 0
      %2095 = vmatpush1.bf16.msra.mxu0 0
      %2096 = vmatprep.subr.bf16.mxu0 0
      %2097 = vmatpush1.bf16.msra.mxu0 0
      %2098 = vmatprep.subr.bf16.mxu0 0
      %2099 = vmatpush1.bf16.msra.mxu0 0
      %2100 = vmatprep.subr.bf16.mxu0 0
      %2101 = vmatpush1.bf16.msra.mxu0 0
      %2102 = vmatprep.subr.bf16.mxu0 0
      %2103 = vmatpush1.bf16.msra.mxu0 0
      %2104 = vmatprep.subr.bf16.mxu0 0
      %2105 = vmatpush1.bf16.msra.mxu0 0
      %2106 = vmatprep.subr.bf16.mxu0 0
      %2107 = vmatpush1.bf16.msra.mxu0 0
      %2108 = vmatprep.subr.bf16.mxu0 0
      %2109 = vmatpush1.bf16.msra.mxu0 0
      %2110 = vmatprep.subr.bf16.mxu0 0
      %2111 = vmatpush1.bf16.msra.mxu0 0
      %2112 = vmatprep.subr.bf16.mxu0 0
      %2113 = vmatpush1.bf16.msra.mxu0 0
      %2114 = vmatprep.subr.bf16.mxu0 0
      %2115 = vmatpush1.bf16.msra.mxu0 0
      %2116 = vmatprep.mubr.bf16.mxu0 0
      %2117 = vmatmul.mubr.bf16.gmra.mrb[0].mxu0 %v2028
      %v2118 = vpop.f32.mrb[0].mxu0
      %v2119 = vadd.f32 0.0, %v2118
      %v2120 = vpop.f32.mrb[0].mxu0
      %v2121 = vpop.f32.mrb[0].mxu0
      %v2122 = vadd.f32 0.0, %v2121
      %v2123 = vpop.f32.mrb[0].mxu0
      %2124 = vmatprep.mubr.bf16.mxu0 0
      %2125 = vmatmul.mubr.bf16.gmra.mrb[0].mxu0 %v2031
      %v2126 = vpop.f32.mrb[0].mxu0
      %v2127 = vadd.f32 0.0, %v2126
      %v2128 = vpop.f32.mrb[0].mxu0
      %v2129 = vpop.f32.mrb[0].mxu0
      %v2130 = vadd.f32 0.0, %v2129
      %v2131 = vpop.f32.mrb[0].mxu0
      %2132 = vmatprep.mubr.bf16.mxu0 0
      %2133 = vmatmul.mubr.bf16.gmra.mrb[0].mxu0 %v2034
      %v2134 = vpop.f32.mrb[0].mxu0
      %v2135 = vadd.f32 0.0, %v2134
      %v2136 = vpop.f32.mrb[0].mxu0
      %v2137 = vpop.f32.mrb[0].mxu0
      %v2138 = vadd.f32 0.0, %v2137
      %v2139 = vpop.f32.mrb[0].mxu0
      %2140 = vmatprep.mubr.bf16.mxu0 0
      %2141 = vmatmul.mubr.bf16.gmra.mrb[0].mxu0 %v2037
      %v2142 = vpop.f32.mrb[0].mxu0
      %v2143 = vadd.f32 0.0, %v2142
      %v2144 = vpop.f32.mrb[0].mxu0
      %v2145 = vpop.f32.mrb[0].mxu0
      %v2146 = vadd.f32 0.0, %v2145
      %v2147 = vpop.f32.mrb[0].mxu0
      %2148 = vmatprep.mubr.bf16.mxu0 0
      %2149 = vmatmul.mubr.bf16.gmra.mrb[0].mxu0 %v2040
      %v2150 = vpop.f32.mrb[0].mxu0
      %v2151 = vadd.f32 0.0, %v2150
      %v2152 = vpop.f32.mrb[0].mxu0
      %v2153 = vpop.f32.mrb[0].mxu0
      %v2154 = vadd.f32 0.0, %v2153
      %v2155 = vpop.f32.mrb[0].mxu0
      %2156 = vmatprep.mubr.bf16.mxu0 0
      %2157 = vmatmul.mubr.bf16.gmra.mrb[0].mxu0 %v2043
      %v2158 = vpop.f32.mrb[0].mxu0
      %v2159 = vadd.f32 0.0, %v2158
      %v2160 = vpop.f32.mrb[0].mxu0
      %v2161 = vpop.f32.mrb[0].mxu0
      %v2162 = vadd.f32 0.0, %v2161
      %v2163 = vpop.f32.mrb[0].mxu0
      %2164 = vmatprep.mubr.bf16.mxu0 0
      %2165 = vmatmul.mubr.bf16.gmra.mrb[0].mxu0 %v2046
      %v2166 = vpop.f32.mrb[0].mxu0
      %v2167 = vadd.f32 0.0, %v2166
      %v2168 = vpop.f32.mrb[0].mxu0
      %v2169 = vpop.f32.mrb[0].mxu0
      %v2170 = vadd.f32 0.0, %v2169
      %v2171 = vpop.f32.mrb[0].mxu0
      %2172 = vmatprep.mubr.bf16.mxu0 0
      %2173 = vmatmul.mubr.bf16.gmra.mrb[0].mxu0 %v2049
      %v2174 = vpop.f32.mrb[0].mxu0
      %v2175 = vadd.f32 0.0, %v2174
      %v2176 = vpop.f32.mrb[0].mxu0
      %v2177 = vpop.f32.mrb[0].mxu0
      %v2178 = vadd.f32 0.0, %v2177
      %v2179 = vpop.f32.mrb[0].mxu0
      %2180 = vmatprep.mubr.bf16.mxu0 0
      %2181 = vmatmul.mubr.bf16.gmra.mrb[0].mxu0 %v2052
      %v2182 = vpop.f32.mrb[0].mxu0
      %v2183 = vadd.f32 0.0, %v2182
      %v2184 = vpop.f32.mrb[0].mxu0
      %v2185 = vpop.f32.mrb[0].mxu0
      %v2186 = vadd.f32 0.0, %v2185
      %v2187 = vpop.f32.mrb[0].mxu0
      %2188 = vmatprep.mubr.bf16.mxu0 0
      %2189 = vmatmul.mubr.bf16.gmra.mrb[0].mxu0 %v2055
      %v2190 = vpop.f32.mrb[0].mxu0
      %v2191 = vadd.f32 0.0, %v2190
      %v2192 = vpop.f32.mrb[0].mxu0
      %v2193 = vpop.f32.mrb[0].mxu0
      %v2194 = vadd.f32 0.0, %v2193
      %v2195 = vpop.f32.mrb[0].mxu0
      %2196 = vmatprep.mubr.bf16.mxu0 0
      %2197 = vmatmul.mubr.bf16.gmra.mrb[0].mxu0 %v2058
      %v2198 = vpop.f32.mrb[0].mxu0
      %v2199 = vadd.f32 0.0, %v2198
      %v2200 = vpop.f32.mrb[0].mxu0
      %v2201 = vpop.f32.mrb[0].mxu0
      %v2202 = vadd.f32 0.0, %v2201
      %v2203 = vpop.f32.mrb[0].mxu0
      %2204 = vmatprep.mubr.bf16.mxu0 0
      %2205 = vmatmul.mubr.bf16.gmra.mrb[0].mxu0 %v2061
      %v2206 = vpop.f32.mrb[0].mxu0
      %v2207 = vadd.f32 0.0, %v2206
      %v2208 = vpop.f32.mrb[0].mxu0
      %v2209 = vpop.f32.mrb[0].mxu0
      %v2210 = vadd.f32 0.0, %v2209
      %v2211 = vpop.f32.mrb[0].mxu0
      %2212 = vmatprep.mubr.bf16.mxu0 0
      %2213 = vmatmul.mubr.bf16.gmra.mrb[0].mxu0 %v2064
      %v2214 = vpop.f32.mrb[0].mxu0
      %v2215 = vadd.f32 0.0, %v2214
      %v2216 = vpop.f32.mrb[0].mxu0
      %v2217 = vpop.f32.mrb[0].mxu0
      %v2218 = vadd.f32 0.0, %v2217
      %v2219 = vpop.f32.mrb[0].mxu0
      %2220 = vmatprep.mubr.bf16.mxu0 0
      %2221 = vmatmul.mubr.bf16.gmra.mrb[0].mxu0 %v2067
      %v2222 = vpop.f32.mrb[0].mxu0
      %v2223 = vadd.f32 0.0, %v2222
      %v2224 = vpop.f32.mrb[0].mxu0
      %v2225 = vpop.f32.mrb[0].mxu0
      %v2226 = vadd.f32 0.0, %v2225
      %v2227 = vpop.f32.mrb[0].mxu0
      %2228 = vmatprep.mubr.bf16.mxu0 0
      %2229 = vmatmul.mubr.bf16.gmra.mrb[0].mxu0 %v2070
      %v2230 = vpop.f32.mrb[0].mxu0
      %v2231 = vadd.f32 0.0, %v2230
      %v2232 = vpop.f32.mrb[0].mxu0
      %v2233 = vpop.f32.mrb[0].mxu0
      %v2234 = vadd.f32 0.0, %v2233
      %v2235 = vpop.f32.mrb[0].mxu0
      %2236 = vmatprep.mubr.bf16.mxu0 0
      %2237 = vmatmul.mubr.bf16.gmra.mrb[0].mxu0 %v2073
      %v2238 = vpop.f32.mrb[0].mxu0
      %v2239 = vadd.f32 0.0, %v2238
      %v2240 = vpop.f32.mrb[0].mxu0
      %v2241 = vpop.f32.mrb[0].mxu0
      %v2242 = vadd.f32 0.0, %v2241
      %v2243 = vpop.f32.mrb[0].mxu0
      %2244 = vmatprep.mubr.bf16.mxu0 0
      %2245 = vmatmul.mubr.bf16.gmra.mrb[0].mxu0 %v2076
      %v2246 = vpop.f32.mrb[0].mxu0
      %v2247 = vadd.f32 0.0, %v2246
      %v2248 = vpop.f32.mrb[0].mxu0
      %v2249 = vpop.f32.mrb[0].mxu0
      %v2250 = vadd.f32 0.0, %v2249
      %v2251 = vpop.f32.mrb[0].mxu0
      %2252 = vmatprep.mubr.bf16.mxu0 0
      %2253 = vmatmul.mubr.bf16.gmra.mrb[0].mxu0 %v2079
      %v2254 = vpop.f32.mrb[0].mxu0
      %v2255 = vadd.f32 0.0, %v2254
      %v2256 = vpop.f32.mrb[0].mxu0
      %v2257 = vpop.f32.mrb[0].mxu0
      %v2258 = vadd.f32 0.0, %v2257
      %v2259 = vpop.f32.mrb[0].mxu0
      %2260 = vdwg.mxu0
      %v2261 = vadd.f32 %v1859, %v2119
      %v2262 = vadd.f32 %v1860, %v2122
      %v2263 = vadd.f32 %v1861, %v2127
      %v2264 = vadd.f32 %v1862, %v2130
      %v2265 = vadd.f32 %v1863, %v2135
      %v2266 = vadd.f32 %v1864, %v2138
      %v2267 = vadd.f32 %v1865, %v2143
      %v2268 = vadd.f32 %v1866, %v2146
      %v2269 = vadd.f32 %v1867, %v2151
      %v2270 = vadd.f32 %v1868, %v2154
      %v2271 = vadd.f32 %v1869, %v2159
      %v2272 = vadd.f32 %v1870, %v2162
      %v2273 = vadd.f32 %v1871, %v2167
      %v2274 = vadd.f32 %v1872, %v2170
      %v2275 = vadd.f32 %v1873, %v2175
      %v2276 = vadd.f32 %v1874, %v2178
      %v2277 = vadd.f32 %v1875, %v2183
      %v2278 = vadd.f32 %v1876, %v2186
      %v2279 = vadd.f32 %v1877, %v2191
      %v2280 = vadd.f32 %v1878, %v2194
      %v2281 = vadd.f32 %v1879, %v2199
      %v2282 = vadd.f32 %v1880, %v2202
      %v2283 = vadd.f32 %v1881, %v2207
      %v2284 = vadd.f32 %v1882, %v2210
      %v2285 = vadd.f32 %v1883, %v2215
      %v2286 = vadd.f32 %v1884, %v2218
      %v2287 = vadd.f32 %v1885, %v2223
      %v2288 = vadd.f32 %v1886, %v2226
      %v2289 = vadd.f32 %v1887, %v2231
      %v2290 = vadd.f32 %v1888, %v2234
      %v2291 = vadd.f32 %v1889, %v2239
      %v2292 = vadd.f32 %v1890, %v2242
      %v2293 = vadd.f32 %v1891, %v2247
      %v2294 = vadd.f32 %v1892, %v2250
      %v2295 = vadd.f32 %v1893, %v2255
      %v2296 = vadd.f32 %v1894, %v2258
      %2297 = vst.msk [vmem:[%s170] sm:$0xff] %vm179, %v2261
      %2298 = vst.msk [vmem:[%s170 + $0x8] sm:$0xff] %vm179, %v2262
      %2299 = vst.msk [vmem:[%s170 + $0x10] sm:$0xff] %vm179, %v2263
      %2300 = vst.msk [vmem:[%s170 + $0x18] sm:$0xff] %vm179, %v2264
      %2301 = vst.msk [vmem:[%s170 + $0x20] sm:$0xff] %vm179, %v2265
      %2302 = vst.msk [vmem:[%s170 + $0x28] sm:$0xff] %vm179, %v2266
      %2303 = vst.msk [vmem:[%s170 + $0x30] sm:$0xff] %vm179, %v2267
      %2304 = vst.msk [vmem:[%s170 + $0x38] sm:$0xff] %vm179, %v2268
      %2305 = vst.msk [vmem:[%s170 + $0x40] sm:$0xff] %vm179, %v2269
      %2306 = vst.msk [vmem:[%s170 + $0x48] sm:$0xff] %vm179, %v2270
      %2307 = vst.msk [vmem:[%s170 + $0x50] sm:$0xff] %vm179, %v2271
      %2308 = vst.msk [vmem:[%s170 + $0x58] sm:$0xff] %vm179, %v2272
      %2309 = vst.msk [vmem:[%s170 + $0x60] sm:$0xff] %vm179, %v2273
      %2310 = vst.msk [vmem:[%s170 + $0x68] sm:$0xff] %vm179, %v2274
      %2311 = vst.msk [vmem:[%s170 + $0x70] sm:$0xff] %vm179, %v2275
      %2312 = vst.msk [vmem:[%s170 + $0x78] sm:$0xff] %vm179, %v2276
      %2313 = vst.msk [vmem:[%s170 + $0x80] sm:$0xff] %vm179, %v2277
      %2314 = vst.msk [vmem:[%s170 + $0x88] sm:$0xff] %vm179, %v2278
      %2315 = vst.msk [vmem:[%s170 + $0x90] sm:$0xff] %vm179, %v2279
      %2316 = vst.msk [vmem:[%s170 + $0x98] sm:$0xff] %vm179, %v2280
      %2317 = vst.msk [vmem:[%s170 + $0xa0] sm:$0xff] %vm179, %v2281
      %2318 = vst.msk [vmem:[%s170 + $0xa8] sm:$0xff] %vm179, %v2282
      %2319 = vst.msk [vmem:[%s170 + $0xb0] sm:$0xff] %vm179, %v2283
      %2320 = vst.msk [vmem:[%s170 + $0xb8] sm:$0xff] %vm179, %v2284
      %2321 = vst.msk [vmem:[%s170 + $0xc0] sm:$0xff] %vm179, %v2285
      %2322 = vst.msk [vmem:[%s170 + $0xc8] sm:$0xff] %vm179, %v2286
      %2323 = vst.msk [vmem:[%s170 + $0xd0] sm:$0xff] %vm179, %v2287
      %2324 = vst.msk [vmem:[%s170 + $0xd8] sm:$0xff] %vm179, %v2288
      %2325 = vst.msk [vmem:[%s170 + $0xe0] sm:$0xff] %vm179, %v2289
      %2326 = vst.msk [vmem:[%s170 + $0xe8] sm:$0xff] %vm179, %v2290
      %2327 = vst.msk [vmem:[%s170 + $0xf0] sm:$0xff] %vm179, %v2291
      %2328 = vst.msk [vmem:[%s170 + $0xf8] sm:$0xff] %vm179, %v2292
      %2329 = vst.msk [vmem:[%s170 + $0x100] sm:$0xff] %vm179, %v2293
      %2330 = vst.msk [vmem:[%s170 + $0x108] sm:$0xff] %vm179, %v2294
      %2331 = vst.msk [vmem:[%s170 + $0x110] sm:$0xff] %vm179, %v2295
      %2332 = vst.msk [vmem:[%s170 + $0x118] sm:$0xff] %vm179, %v2296
      %v2333 = vld [vmem:[%s165 + $0x8] sm:$0xe]
      %v2334 = vld [vmem:[%s165 + $0xc] sm:$0xf]
      %v2335 = vld [vmem:[%s165 + $0x10] sm:$0xf]
      %v2336 = vld [vmem:[%s165 + $0x14] sm:$0xf]
      %v2337 = vld [vmem:[%s165 + $0x18] sm:$0xf]
      %v2338 = vld [vmem:[%s165 + $0x1c] sm:$0xf]
      %v2339 = vld [vmem:[%s165 + $0x20] sm:$0xf]
      %v2340 = vld [vmem:[%s165 + $0x24] sm:$0xf]
      %v2341 = vld [vmem:[%s165 + $0x28] sm:$0xf]
      %v2342 = vld [vmem:[%s165 + $0x2c] sm:$0xf]
      %v2343 = vld [vmem:[%s165 + $0x30] sm:$0xf]
      %v2344 = vld [vmem:[%s165 + $0x34] sm:$0xf]
      %v2345 = vld [vmem:[%s165 + $0x38] sm:$0xf]
      %v2346 = vld [vmem:[%s165 + $0x3c] sm:$0xf]
      %v2347 = vld [vmem:[%s165 + $0x40] sm:$0xf]
      %v2348 = vld [vmem:[%s165 + $0x44] sm:$0xf]
      %v2349 = vld [vmem:[%s165 + $0x48] sm:$0xf]
      %v2350 = vld [vmem:[%s165 + $0x4c] sm:$0xf]
      %v2351 = vld [vmem:[%s165 + $0x50] sm:$0xf]
      %v2352 = vld [vmem:[%s165 + $0x54] sm:$0xf]
      %v2353 = vld [vmem:[%s165 + $0x58] sm:$0xf]
      %v2354 = vld [vmem:[%s165 + $0x5c] sm:$0xf]
      %v2355 = vld [vmem:[%s165 + $0x60] sm:$0xf]
      %v2356 = vld [vmem:[%s165 + $0x64] sm:$0xf]
      %v2357 = vld [vmem:[%s165 + $0x68] sm:$0xf]
      %v2358 = vld [vmem:[%s165 + $0x6c] sm:$0xf]
      %v2359 = vld [vmem:[%s165 + $0x70] sm:$0xf]
      %v2360 = vld [vmem:[%s165 + $0x74] sm:$0xf]
      %v2361 = vld [vmem:[%s165 + $0x78] sm:$0xf]
      %v2362 = vld [vmem:[%s165 + $0x7c] sm:$0xf]
      %v2363 = vld [vmem:[%s165 + $0x80] sm:$0xf]
      %v2364 = vld [vmem:[%s165 + $0x84] sm:$0xf]
      %v2365 = vld [vmem:[%s165 + $0x88] sm:$0xf]
      %v2366 = vld [vmem:[%s165 + $0x8c] sm:$0xf]
      %v2367 = vld [vmem:[%s165 + $0x90] sm:$0xf]
      %v2368 = vld [vmem:[%s165 + $0x94] sm:$0xf]
      %v2369 = vld [vmem:[%s165 + $0x98] sm:$0x3]
      %v2370 = vld [vmem:[%s170] sm:$0xff]
      %v2371 = vld [vmem:[%s170 + $0x8] sm:$0xff]
      %v2372 = vld [vmem:[%s170 + $0x10] sm:$0xff]
      %v2373 = vld [vmem:[%s170 + $0x18] sm:$0xff]
      %v2374 = vld [vmem:[%s170 + $0x20] sm:$0xff]
      %v2375 = vld [vmem:[%s170 + $0x28] sm:$0xff]
      %v2376 = vld [vmem:[%s170 + $0x30] sm:$0xff]
      %v2377 = vld [vmem:[%s170 + $0x38] sm:$0xff]
      %v2378 = vld [vmem:[%s170 + $0x40] sm:$0xff]
      %v2379 = vld [vmem:[%s170 + $0x48] sm:$0xff]
      %v2380 = vld [vmem:[%s170 + $0x50] sm:$0xff]
      %v2381 = vld [vmem:[%s170 + $0x58] sm:$0xff]
      %v2382 = vld [vmem:[%s170 + $0x60] sm:$0xff]
      %v2383 = vld [vmem:[%s170 + $0x68] sm:$0xff]
      %v2384 = vld [vmem:[%s170 + $0x70] sm:$0xff]
      %v2385 = vld [vmem:[%s170 + $0x78] sm:$0xff]
      %v2386 = vld [vmem:[%s170 + $0x80] sm:$0xff]
      %v2387 = vld [vmem:[%s170 + $0x88] sm:$0xff]
      %v2388 = vld [vmem:[%s170 + $0x90] sm:$0xff]
      %v2389 = vld [vmem:[%s170 + $0x98] sm:$0xff]
      %v2390 = vld [vmem:[%s170 + $0xa0] sm:$0xff]
      %v2391 = vld [vmem:[%s170 + $0xa8] sm:$0xff]
      %v2392 = vld [vmem:[%s170 + $0xb0] sm:$0xff]
      %v2393 = vld [vmem:[%s170 + $0xb8] sm:$0xff]
      %v2394 = vld [vmem:[%s170 + $0xc0] sm:$0xff]
      %v2395 = vld [vmem:[%s170 + $0xc8] sm:$0xff]
      %v2396 = vld [vmem:[%s170 + $0xd0] sm:$0xff]
      %v2397 = vld [vmem:[%s170 + $0xd8] sm:$0xff]
      %v2398 = vld [vmem:[%s170 + $0xe0] sm:$0xff]
      %v2399 = vld [vmem:[%s170 + $0xe8] sm:$0xff]
      %v2400 = vld [vmem:[%s170 + $0xf0] sm:$0xff]
      %v2401 = vld [vmem:[%s170 + $0xf8] sm:$0xff]
      %v2402 = vld [vmem:[%s170 + $0x100] sm:$0xff]
      %v2403 = vld [vmem:[%s170 + $0x108] sm:$0xff]
      %v2404 = vld [vmem:[%s170 + $0x110] sm:$0xff]
      %v2405 = vld [vmem:[%s170 + $0x118] sm:$0xff]
      %s2406 = scalar_lea.vmem %s1, 8
      %v2407 = vld [vmem:[%s2406] sm:$0x3]
      %v2445 = vunpack.c.l.b16 %v2333
      %v2446 = vunpack.c.l.b16 %v2334
      %v2447 = vunpack.c.l.b16 %v2335
      %v2448 = vunpack.c.l.b16 %v2336
      %v2449 = vunpack.c.l.b16 %v2337
      %v2450 = vunpack.c.l.b16 %v2338
      %v2451 = vunpack.c.l.b16 %v2339
      %v2452 = vunpack.c.l.b16 %v2340
      %v2453 = vunpack.c.l.b16 %v2341
      %v2454 = vunpack.c.l.b16 %v2342
      %v2455 = vunpack.c.l.b16 %v2343
      %v2456 = vunpack.c.l.b16 %v2344
      %v2457 = vunpack.c.l.b16 %v2345
      %v2458 = vunpack.c.l.b16 %v2346
      %v2459 = vunpack.c.l.b16 %v2347
      %v2460 = vunpack.c.l.b16 %v2348
      %v2461 = vunpack.c.l.b16 %v2349
      %v2462 = vunpack.c.l.b16 %v2350
      %v2463 = vunpack.c.l.b16 %v2351
      %v2464 = vunpack.c.l.b16 %v2352
      %v2465 = vunpack.c.l.b16 %v2353
      %v2466 = vunpack.c.l.b16 %v2354
      %v2467 = vunpack.c.l.b16 %v2355
      %v2468 = vunpack.c.l.b16 %v2356
      %v2469 = vunpack.c.l.b16 %v2357
      %v2470 = vunpack.c.l.b16 %v2358
      %v2471 = vunpack.c.l.b16 %v2359
      %v2472 = vunpack.c.l.b16 %v2360
      %v2473 = vunpack.c.l.b16 %v2361
      %v2474 = vunpack.c.l.b16 %v2362
      %v2475 = vunpack.c.l.b16 %v2363
      %v2476 = vunpack.c.l.b16 %v2364
      %v2477 = vunpack.c.l.b16 %v2365
      %v2478 = vunpack.c.l.b16 %v2366
      %v2479 = vunpack.c.l.b16 %v2367
      %v2480 = vunpack.c.l.b16 %v2368
      %v2481 = vunpack.c.l.b16 %v2369
      %v2482 = vpack.c.b16 %v2446, %v2445
      %v2483 = vpack.c.b16 %v2448, %v2447
      %v2484 = vpack.c.b16 %v2450, %v2449
      %v2485 = vpack.c.b16 %v2452, %v2451
      %v2486 = vpack.c.b16 %v2454, %v2453
      %v2487 = vpack.c.b16 %v2456, %v2455
      %v2488 = vpack.c.b16 %v2458, %v2457
      %v2489 = vpack.c.b16 %v2460, %v2459
      %v2490 = vpack.c.b16 %v2462, %v2461
      %v2491 = vpack.c.b16 %v2464, %v2463
      %v2492 = vpack.c.b16 %v2466, %v2465
      %v2493 = vpack.c.b16 %v2468, %v2467
      %v2494 = vpack.c.b16 %v2470, %v2469
      %v2495 = vpack.c.b16 %v2472, %v2471
      %v2496 = vpack.c.b16 %v2474, %v2473
      %v2497 = vpack.c.b16 %v2476, %v2475
      %v2498 = vpack.c.b16 %v2478, %v2477
      %v2499 = vpack.c.b16 %v2480, %v2479
      %v2500 = vpack.c.b16 %v2481, %v2481
      %vm2501 = vsmask.f32 6400
      %v2503 = vshrl.u32 %v2482, 16
      %v2505 = vrot.slane %v2503, 1
      %v2506 = vshll.u32 %v2482, 16
      %v2508 = vrot.slane %v2506, 2
      %v2509 = vor.u32 %v2505, %v2508
      %v2511 = vshrl.u32 %v2483, 16
      %v2513 = vrot.slane %v2511, 1
      %v2514 = vshll.u32 %v2483, 16
      %v2516 = vrot.slane %v2514, 2
      %v2517 = vor.u32 %v2513, %v2516
      %v2518 = vsel %vm2501, %v2509, %v2517
      %v2520 = vshrl.u32 %v2484, 16
      %v2522 = vrot.slane %v2520, 1
      %v2523 = vshll.u32 %v2484, 16
      %v2525 = vrot.slane %v2523, 2
      %v2526 = vor.u32 %v2522, %v2525
      %v2527 = vsel %vm2501, %v2517, %v2526
      %v2529 = vshrl.u32 %v2485, 16
      %v2531 = vrot.slane %v2529, 1
      %v2532 = vshll.u32 %v2485, 16
      %v2534 = vrot.slane %v2532, 2
      %v2535 = vor.u32 %v2531, %v2534
      %v2536 = vsel %vm2501, %v2526, %v2535
      %v2538 = vshrl.u32 %v2486, 16
      %v2540 = vrot.slane %v2538, 1
      %v2541 = vshll.u32 %v2486, 16
      %v2543 = vrot.slane %v2541, 2
      %v2544 = vor.u32 %v2540, %v2543
      %v2545 = vsel %vm2501, %v2535, %v2544
      %v2547 = vshrl.u32 %v2487, 16
      %v2549 = vrot.slane %v2547, 1
      %v2550 = vshll.u32 %v2487, 16
      %v2552 = vrot.slane %v2550, 2
      %v2553 = vor.u32 %v2549, %v2552
      %v2554 = vsel %vm2501, %v2544, %v2553
      %v2556 = vshrl.u32 %v2488, 16
      %v2558 = vrot.slane %v2556, 1
      %v2559 = vshll.u32 %v2488, 16
      %v2561 = vrot.slane %v2559, 2
      %v2562 = vor.u32 %v2558, %v2561
      %v2563 = vsel %vm2501, %v2553, %v2562
      %v2565 = vshrl.u32 %v2489, 16
      %v2567 = vrot.slane %v2565, 1
      %v2568 = vshll.u32 %v2489, 16
      %v2570 = vrot.slane %v2568, 2
      %v2571 = vor.u32 %v2567, %v2570
      %v2572 = vsel %vm2501, %v2562, %v2571
      %v2574 = vshrl.u32 %v2490, 16
      %v2576 = vrot.slane %v2574, 1
      %v2577 = vshll.u32 %v2490, 16
      %v2579 = vrot.slane %v2577, 2
      %v2580 = vor.u32 %v2576, %v2579
      %v2581 = vsel %vm2501, %v2571, %v2580
      %v2583 = vshrl.u32 %v2491, 16
      %v2585 = vrot.slane %v2583, 1
      %v2586 = vshll.u32 %v2491, 16
      %v2588 = vrot.slane %v2586, 2
      %v2589 = vor.u32 %v2585, %v2588
      %v2590 = vsel %vm2501, %v2580, %v2589
      %v2592 = vshrl.u32 %v2492, 16
      %v2594 = vrot.slane %v2592, 1
      %v2595 = vshll.u32 %v2492, 16
      %v2597 = vrot.slane %v2595, 2
      %v2598 = vor.u32 %v2594, %v2597
      %v2599 = vsel %vm2501, %v2589, %v2598
      %v2601 = vshrl.u32 %v2493, 16
      %v2603 = vrot.slane %v2601, 1
      %v2604 = vshll.u32 %v2493, 16
      %v2606 = vrot.slane %v2604, 2
      %v2607 = vor.u32 %v2603, %v2606
      %v2608 = vsel %vm2501, %v2598, %v2607
      %v2610 = vshrl.u32 %v2494, 16
      %v2612 = vrot.slane %v2610, 1
      %v2613 = vshll.u32 %v2494, 16
      %v2615 = vrot.slane %v2613, 2
      %v2616 = vor.u32 %v2612, %v2615
      %v2617 = vsel %vm2501, %v2607, %v2616
      %v2619 = vshrl.u32 %v2495, 16
      %v2621 = vrot.slane %v2619, 1
      %v2622 = vshll.u32 %v2495, 16
      %v2624 = vrot.slane %v2622, 2
      %v2625 = vor.u32 %v2621, %v2624
      %v2626 = vsel %vm2501, %v2616, %v2625
      %v2628 = vshrl.u32 %v2496, 16
      %v2630 = vrot.slane %v2628, 1
      %v2631 = vshll.u32 %v2496, 16
      %v2633 = vrot.slane %v2631, 2
      %v2634 = vor.u32 %v2630, %v2633
      %v2635 = vsel %vm2501, %v2625, %v2634
      %v2637 = vshrl.u32 %v2497, 16
      %v2639 = vrot.slane %v2637, 1
      %v2640 = vshll.u32 %v2497, 16
      %v2642 = vrot.slane %v2640, 2
      %v2643 = vor.u32 %v2639, %v2642
      %v2644 = vsel %vm2501, %v2634, %v2643
      %v2646 = vshrl.u32 %v2498, 16
      %v2648 = vrot.slane %v2646, 1
      %v2649 = vshll.u32 %v2498, 16
      %v2651 = vrot.slane %v2649, 2
      %v2652 = vor.u32 %v2648, %v2651
      %v2653 = vsel %vm2501, %v2643, %v2652
      %v2655 = vshrl.u32 %v2499, 16
      %v2657 = vrot.slane %v2655, 1
      %v2658 = vshll.u32 %v2499, 16
      %v2660 = vrot.slane %v2658, 2
      %v2661 = vor.u32 %v2657, %v2660
      %v2662 = vsel %vm2501, %v2652, %v2661
      %v2664 = vshrl.u32 %v2500, 16
      %v2666 = vrot.slane %v2664, 1
      %v2667 = vshll.u32 %v2500, 16
      %v2669 = vrot.slane %v2667, 2
      %v2670 = vor.u32 %v2666, %v2669
      %v2671 = vsel %vm2501, %v2661, %v2670
      %v2673 = vsel %vm379, %v2518, 0
      %v2676 = vsel %vm379, %v2527, 0
      %v2679 = vsel %vm379, %v2536, 0
      %v2682 = vsel %vm379, %v2545, 0
      %v2685 = vsel %vm379, %v2554, 0
      %v2688 = vsel %vm379, %v2563, 0
      %v2691 = vsel %vm379, %v2572, 0
      %v2694 = vsel %vm379, %v2581, 0
      %v2697 = vsel %vm379, %v2590, 0
      %v2700 = vsel %vm379, %v2599, 0
      %v2703 = vsel %vm379, %v2608, 0
      %v2706 = vsel %vm379, %v2617, 0
      %v2709 = vsel %vm379, %v2626, 0
      %v2712 = vsel %vm379, %v2635, 0
      %v2715 = vsel %vm379, %v2644, 0
      %v2718 = vsel %vm379, %v2653, 0
      %v2721 = vsel %vm379, %v2662, 0
      %v2724 = vsel %vm379, %v2671, 0
      %v2727 = vsel %vm434, %v2407, 0
      %2729 = vmatprep.subr.bf16.mxu0 0
      %2730 = vmatpush1.bf16.msra.mxu0 %v2727
      %2731 = vmatprep.subr.bf16.mxu0 0
      %2732 = vmatpush1.bf16.msra.mxu0 0
      %2733 = vmatprep.subr.bf16.mxu0 0
      %2734 = vmatpush1.bf16.msra.mxu0 0
      %2735 = vmatprep.subr.bf16.mxu0 0
      %2736 = vmatpush1.bf16.msra.mxu0 0
      %2737 = vmatprep.subr.bf16.mxu0 0
      %2738 = vmatpush1.bf16.msra.mxu0 0
      %2739 = vmatprep.subr.bf16.mxu0 0
      %2740 = vmatpush1.bf16.msra.mxu0 0
      %2741 = vmatprep.subr.bf16.mxu0 0
      %2742 = vmatpush1.bf16.msra.mxu0 0
      %2743 = vmatprep.subr.bf16.mxu0 0
      %2744 = vmatpush1.bf16.msra.mxu0 0
      %2745 = vmatprep.subr.bf16.mxu0 0
      %2746 = vmatpush1.bf16.msra.mxu0 0
      %2747 = vmatprep.subr.bf16.mxu0 0
      %2748 = vmatpush1.bf16.msra.mxu0 0
      %2749 = vmatprep.subr.bf16.mxu0 0
      %2750 = vmatpush1.bf16.msra.mxu0 0
      %2751 = vmatprep.subr.bf16.mxu0 0
      %2752 = vmatpush1.bf16.msra.mxu0 0
      %2753 = vmatprep.subr.bf16.mxu0 0
      %2754 = vmatpush1.bf16.msra.mxu0 0
      %2755 = vmatprep.subr.bf16.mxu0 0
      %2756 = vmatpush1.bf16.msra.mxu0 0
      %2757 = vmatprep.subr.bf16.mxu0 0
      %2758 = vmatpush1.bf16.msra.mxu0 0
      %2759 = vmatprep.subr.bf16.mxu0 0
      %2760 = vmatpush1.bf16.msra.mxu0 0
      %2761 = vmatprep.mubr.bf16.mxu0 0
      %2762 = vmatmul.mubr.bf16.gmra.mrb[0].mxu0 %v2673
      %v2763 = vpop.f32.mrb[0].mxu0
      %v2764 = vadd.f32 0.0, %v2763
      %v2765 = vpop.f32.mrb[0].mxu0
      %v2766 = vpop.f32.mrb[0].mxu0
      %v2767 = vadd.f32 0.0, %v2766
      %v2768 = vpop.f32.mrb[0].mxu0
      %2769 = vmatprep.mubr.bf16.mxu0 0
      %2770 = vmatmul.mubr.bf16.gmra.mrb[0].mxu0 %v2676
      %v2771 = vpop.f32.mrb[0].mxu0
      %v2772 = vadd.f32 0.0, %v2771
      %v2773 = vpop.f32.mrb[0].mxu0
      %v2774 = vpop.f32.mrb[0].mxu0
      %v2775 = vadd.f32 0.0, %v2774
      %v2776 = vpop.f32.mrb[0].mxu0
      %2777 = vmatprep.mubr.bf16.mxu0 0
      %2778 = vmatmul.mubr.bf16.gmra.mrb[0].mxu0 %v2679
      %v2779 = vpop.f32.mrb[0].mxu0
      %v2780 = vadd.f32 0.0, %v2779
      %v2781 = vpop.f32.mrb[0].mxu0
      %v2782 = vpop.f32.mrb[0].mxu0
      %v2783 = vadd.f32 0.0, %v2782
      %v2784 = vpop.f32.mrb[0].mxu0
      %2785 = vmatprep.mubr.bf16.mxu0 0
      %2786 = vmatmul.mubr.bf16.gmra.mrb[0].mxu0 %v2682
      %v2787 = vpop.f32.mrb[0].mxu0
      %v2788 = vadd.f32 0.0, %v2787
      %v2789 = vpop.f32.mrb[0].mxu0
      %v2790 = vpop.f32.mrb[0].mxu0
      %v2791 = vadd.f32 0.0, %v2790
      %v2792 = vpop.f32.mrb[0].mxu0
      %2793 = vmatprep.mubr.bf16.mxu0 0
      %2794 = vmatmul.mubr.bf16.gmra.mrb[0].mxu0 %v2685
      %v2795 = vpop.f32.mrb[0].mxu0
      %v2796 = vadd.f32 0.0, %v2795
      %v2797 = vpop.f32.mrb[0].mxu0
      %v2798 = vpop.f32.mrb[0].mxu0
      %v2799 = vadd.f32 0.0, %v2798
      %v2800 = vpop.f32.mrb[0].mxu0
      %2801 = vmatprep.mubr.bf16.mxu0 0
      %2802 = vmatmul.mubr.bf16.gmra.mrb[0].mxu0 %v2688
      %v2803 = vpop.f32.mrb[0].mxu0
      %v2804 = vadd.f32 0.0, %v2803
      %v2805 = vpop.f32.mrb[0].mxu0
      %v2806 = vpop.f32.mrb[0].mxu0
      %v2807 = vadd.f32 0.0, %v2806
      %v2808 = vpop.f32.mrb[0].mxu0
      %2809 = vmatprep.mubr.bf16.mxu0 0
      %2810 = vmatmul.mubr.bf16.gmra.mrb[0].mxu0 %v2691
      %v2811 = vpop.f32.mrb[0].mxu0
      %v2812 = vadd.f32 0.0, %v2811
      %v2813 = vpop.f32.mrb[0].mxu0
      %v2814 = vpop.f32.mrb[0].mxu0
      %v2815 = vadd.f32 0.0, %v2814
      %v2816 = vpop.f32.mrb[0].mxu0
      %2817 = vmatprep.mubr.bf16.mxu0 0
      %2818 = vmatmul.mubr.bf16.gmra.mrb[0].mxu0 %v2694
      %v2819 = vpop.f32.mrb[0].mxu0
      %v2820 = vadd.f32 0.0, %v2819
      %v2821 = vpop.f32.mrb[0].mxu0
      %v2822 = vpop.f32.mrb[0].mxu0
      %v2823 = vadd.f32 0.0, %v2822
      %v2824 = vpop.f32.mrb[0].mxu0
      %2825 = vmatprep.mubr.bf16.mxu0 0
      %2826 = vmatmul.mubr.bf16.gmra.mrb[0].mxu0 %v2697
      %v2827 = vpop.f32.mrb[0].mxu0
      %v2828 = vadd.f32 0.0, %v2827
      %v2829 = vpop.f32.mrb[0].mxu0
      %v2830 = vpop.f32.mrb[0].mxu0
      %v2831 = vadd.f32 0.0, %v2830
      %v2832 = vpop.f32.mrb[0].mxu0
      %2833 = vmatprep.mubr.bf16.mxu0 0
      %2834 = vmatmul.mubr.bf16.gmra.mrb[0].mxu0 %v2700
      %v2835 = vpop.f32.mrb[0].mxu0
      %v2836 = vadd.f32 0.0, %v2835
      %v2837 = vpop.f32.mrb[0].mxu0
      %v2838 = vpop.f32.mrb[0].mxu0
      %v2839 = vadd.f32 0.0, %v2838
      %v2840 = vpop.f32.mrb[0].mxu0
      %2841 = vmatprep.mubr.bf16.mxu0 0
      %2842 = vmatmul.mubr.bf16.gmra.mrb[0].mxu0 %v2703
      %v2843 = vpop.f32.mrb[0].mxu0
      %v2844 = vadd.f32 0.0, %v2843
      %v2845 = vpop.f32.mrb[0].mxu0
      %v2846 = vpop.f32.mrb[0].mxu0
      %v2847 = vadd.f32 0.0, %v2846
      %v2848 = vpop.f32.mrb[0].mxu0
      %2849 = vmatprep.mubr.bf16.mxu0 0
      %2850 = vmatmul.mubr.bf16.gmra.mrb[0].mxu0 %v2706
      %v2851 = vpop.f32.mrb[0].mxu0
      %v2852 = vadd.f32 0.0, %v2851
      %v2853 = vpop.f32.mrb[0].mxu0
      %v2854 = vpop.f32.mrb[0].mxu0
      %v2855 = vadd.f32 0.0, %v2854
      %v2856 = vpop.f32.mrb[0].mxu0
      %2857 = vmatprep.mubr.bf16.mxu0 0
      %2858 = vmatmul.mubr.bf16.gmra.mrb[0].mxu0 %v2709
      %v2859 = vpop.f32.mrb[0].mxu0
      %v2860 = vadd.f32 0.0, %v2859
      %v2861 = vpop.f32.mrb[0].mxu0
      %v2862 = vpop.f32.mrb[0].mxu0
      %v2863 = vadd.f32 0.0, %v2862
      %v2864 = vpop.f32.mrb[0].mxu0
      %2865 = vmatprep.mubr.bf16.mxu0 0
      %2866 = vmatmul.mubr.bf16.gmra.mrb[0].mxu0 %v2712
      %v2867 = vpop.f32.mrb[0].mxu0
      %v2868 = vadd.f32 0.0, %v2867
      %v2869 = vpop.f32.mrb[0].mxu0
      %v2870 = vpop.f32.mrb[0].mxu0
      %v2871 = vadd.f32 0.0, %v2870
      %v2872 = vpop.f32.mrb[0].mxu0
      %2873 = vmatprep.mubr.bf16.mxu0 0
      %2874 = vmatmul.mubr.bf16.gmra.mrb[0].mxu0 %v2715
      %v2875 = vpop.f32.mrb[0].mxu0
      %v2876 = vadd.f32 0.0, %v2875
      %v2877 = vpop.f32.mrb[0].mxu0
      %v2878 = vpop.f32.mrb[0].mxu0
      %v2879 = vadd.f32 0.0, %v2878
      %v2880 = vpop.f32.mrb[0].mxu0
      %2881 = vmatprep.mubr.bf16.mxu0 0
      %2882 = vmatmul.mubr.bf16.gmra.mrb[0].mxu0 %v2718
      %v2883 = vpop.f32.mrb[0].mxu0
      %v2884 = vadd.f32 0.0, %v2883
      %v2885 = vpop.f32.mrb[0].mxu0
      %v2886 = vpop.f32.mrb[0].mxu0
      %v2887 = vadd.f32 0.0, %v2886
      %v2888 = vpop.f32.mrb[0].mxu0
      %2889 = vmatprep.mubr.bf16.mxu0 0
      %2890 = vmatmul.mubr.bf16.gmra.mrb[0].mxu0 %v2721
      %v2891 = vpop.f32.mrb[0].mxu0
      %v2892 = vadd.f32 0.0, %v2891
      %v2893 = vpop.f32.mrb[0].mxu0
      %v2894 = vpop.f32.mrb[0].mxu0
      %v2895 = vadd.f32 0.0, %v2894
      %v2896 = vpop.f32.mrb[0].mxu0
      %2897 = vmatprep.mubr.bf16.mxu0 0
      %2898 = vmatmul.mubr.bf16.gmra.mrb[0].mxu0 %v2724
      %v2899 = vpop.f32.mrb[0].mxu0
      %v2900 = vadd.f32 0.0, %v2899
      %v2901 = vpop.f32.mrb[0].mxu0
      %v2902 = vpop.f32.mrb[0].mxu0
      %v2903 = vadd.f32 0.0, %v2902
      %v2904 = vpop.f32.mrb[0].mxu0
      %2905 = vdwg.mxu0
      %v2906 = vadd.f32 %v2370, %v2764
      %v2907 = vadd.f32 %v2371, %v2767
      %v2908 = vadd.f32 %v2372, %v2772
      %v2909 = vadd.f32 %v2373, %v2775
      %v2910 = vadd.f32 %v2374, %v2780
      %v2911 = vadd.f32 %v2375, %v2783
      %v2912 = vadd.f32 %v2376, %v2788
      %v2913 = vadd.f32 %v2377, %v2791
      %v2914 = vadd.f32 %v2378, %v2796
      %v2915 = vadd.f32 %v2379, %v2799
      %v2916 = vadd.f32 %v2380, %v2804
      %v2917 = vadd.f32 %v2381, %v2807
      %v2918 = vadd.f32 %v2382, %v2812
      %v2919 = vadd.f32 %v2383, %v2815
      %v2920 = vadd.f32 %v2384, %v2820
      %v2921 = vadd.f32 %v2385, %v2823
      %v2922 = vadd.f32 %v2386, %v2828
      %v2923 = vadd.f32 %v2387, %v2831
      %v2924 = vadd.f32 %v2388, %v2836
      %v2925 = vadd.f32 %v2389, %v2839
      %v2926 = vadd.f32 %v2390, %v2844
      %v2927 = vadd.f32 %v2391, %v2847
      %v2928 = vadd.f32 %v2392, %v2852
      %v2929 = vadd.f32 %v2393, %v2855
      %v2930 = vadd.f32 %v2394, %v2860
      %v2931 = vadd.f32 %v2395, %v2863
      %v2932 = vadd.f32 %v2396, %v2868
      %v2933 = vadd.f32 %v2397, %v2871
      %v2934 = vadd.f32 %v2398, %v2876
      %v2935 = vadd.f32 %v2399, %v2879
      %v2936 = vadd.f32 %v2400, %v2884
      %v2937 = vadd.f32 %v2401, %v2887
      %v2938 = vadd.f32 %v2402, %v2892
      %v2939 = vadd.f32 %v2403, %v2895
      %v2940 = vadd.f32 %v2404, %v2900
      %v2941 = vadd.f32 %v2405, %v2903
      %2942 = vst.msk [vmem:[%s170] sm:$0xff] %vm179, %v2906
      %2943 = vst.msk [vmem:[%s170 + $0x8] sm:$0xff] %vm179, %v2907
      %2944 = vst.msk [vmem:[%s170 + $0x10] sm:$0xff] %vm179, %v2908
      %2945 = vst.msk [vmem:[%s170 + $0x18] sm:$0xff] %vm179, %v2909
      %2946 = vst.msk [vmem:[%s170 + $0x20] sm:$0xff] %vm179, %v2910
      %2947 = vst.msk [vmem:[%s170 + $0x28] sm:$0xff] %vm179, %v2911
      %2948 = vst.msk [vmem:[%s170 + $0x30] sm:$0xff] %vm179, %v2912
      %2949 = vst.msk [vmem:[%s170 + $0x38] sm:$0xff] %vm179, %v2913
      %2950 = vst.msk [vmem:[%s170 + $0x40] sm:$0xff] %vm179, %v2914
      %2951 = vst.msk [vmem:[%s170 + $0x48] sm:$0xff] %vm179, %v2915
      %2952 = vst.msk [vmem:[%s170 + $0x50] sm:$0xff] %vm179, %v2916
      %2953 = vst.msk [vmem:[%s170 + $0x58] sm:$0xff] %vm179, %v2917
      %2954 = vst.msk [vmem:[%s170 + $0x60] sm:$0xff] %vm179, %v2918
      %2955 = vst.msk [vmem:[%s170 + $0x68] sm:$0xff] %vm179, %v2919
      %2956 = vst.msk [vmem:[%s170 + $0x70] sm:$0xff] %vm179, %v2920
      %2957 = vst.msk [vmem:[%s170 + $0x78] sm:$0xff] %vm179, %v2921
      %2958 = vst.msk [vmem:[%s170 + $0x80] sm:$0xff] %vm179, %v2922
      %2959 = vst.msk [vmem:[%s170 + $0x88] sm:$0xff] %vm179, %v2923
      %2960 = vst.msk [vmem:[%s170 + $0x90] sm:$0xff] %vm179, %v2924
      %2961 = vst.msk [vmem:[%s170 + $0x98] sm:$0xff] %vm179, %v2925
      %2962 = vst.msk [vmem:[%s170 + $0xa0] sm:$0xff] %vm179, %v2926
      %2963 = vst.msk [vmem:[%s170 + $0xa8] sm:$0xff] %vm179, %v2927
      %2964 = vst.msk [vmem:[%s170 + $0xb0] sm:$0xff] %vm179, %v2928
      %2965 = vst.msk [vmem:[%s170 + $0xb8] sm:$0xff] %vm179, %v2929
      %2966 = vst.msk [vmem:[%s170 + $0xc0] sm:$0xff] %vm179, %v2930
      %2967 = vst.msk [vmem:[%s170 + $0xc8] sm:$0xff] %vm179, %v2931
      %2968 = vst.msk [vmem:[%s170 + $0xd0] sm:$0xff] %vm179, %v2932
      %2969 = vst.msk [vmem:[%s170 + $0xd8] sm:$0xff] %vm179, %v2933
      %2970 = vst.msk [vmem:[%s170 + $0xe0] sm:$0xff] %vm179, %v2934
      %2971 = vst.msk [vmem:[%s170 + $0xe8] sm:$0xff] %vm179, %v2935
      %2972 = vst.msk [vmem:[%s170 + $0xf0] sm:$0xff] %vm179, %v2936
      %2973 = vst.msk [vmem:[%s170 + $0xf8] sm:$0xff] %vm179, %v2937
      %2974 = vst.msk [vmem:[%s170 + $0x100] sm:$0xff] %vm179, %v2938
      %2975 = vst.msk [vmem:[%s170 + $0x108] sm:$0xff] %vm179, %v2939
      %2976 = vst.msk [vmem:[%s170 + $0x110] sm:$0xff] %vm179, %v2940
      %2977 = vst.msk [vmem:[%s170 + $0x118] sm:$0xff] %vm179, %v2941
      %v2978 = vld [vmem:[%s165 + $0x8] sm:$0xc]
      %v2979 = vld [vmem:[%s165 + $0xc] sm:$0xf]
      %v2980 = vld [vmem:[%s165 + $0x10] sm:$0xf]
      %v2981 = vld [vmem:[%s165 + $0x14] sm:$0xf]
      %v2982 = vld [vmem:[%s165 + $0x18] sm:$0xf]
      %v2983 = vld [vmem:[%s165 + $0x1c] sm:$0xf]
      %v2984 = vld [vmem:[%s165 + $0x20] sm:$0xf]
      %v2985 = vld [vmem:[%s165 + $0x24] sm:$0xf]
      %v2986 = vld [vmem:[%s165 + $0x28] sm:$0xf]
      %v2987 = vld [vmem:[%s165 + $0x2c] sm:$0xf]
      %v2988 = vld [vmem:[%s165 + $0x30] sm:$0xf]
      %v2989 = vld [vmem:[%s165 + $0x34] sm:$0xf]
      %v2990 = vld [vmem:[%s165 + $0x38] sm:$0xf]
      %v2991 = vld [vmem:[%s165 + $0x3c] sm:$0xf]
      %v2992 = vld [vmem:[%s165 + $0x40] sm:$0xf]
      %v2993 = vld [vmem:[%s165 + $0x44] sm:$0xf]
      %v2994 = vld [vmem:[%s165 + $0x48] sm:$0xf]
      %v2995 = vld [vmem:[%s165 + $0x4c] sm:$0xf]
      %v2996 = vld [vmem:[%s165 + $0x50] sm:$0xf]
      %v2997 = vld [vmem:[%s165 + $0x54] sm:$0xf]
      %v2998 = vld [vmem:[%s165 + $0x58] sm:$0xf]
      %v2999 = vld [vmem:[%s165 + $0x5c] sm:$0xf]
      %v3000 = vld [vmem:[%s165 + $0x60] sm:$0xf]
      %v3001 = vld [vmem:[%s165 + $0x64] sm:$0xf]
      %v3002 = vld [vmem:[%s165 + $0x68] sm:$0xf]
      %v3003 = vld [vmem:[%s165 + $0x6c] sm:$0xf]
      %v3004 = vld [vmem:[%s165 + $0x70] sm:$0xf]
      %v3005 = vld [vmem:[%s165 + $0x74] sm:$0xf]
      %v3006 = vld [vmem:[%s165 + $0x78] sm:$0xf]
      %v3007 = vld [vmem:[%s165 + $0x7c] sm:$0xf]
      %v3008 = vld [vmem:[%s165 + $0x80] sm:$0xf]
      %v3009 = vld [vmem:[%s165 + $0x84] sm:$0xf]
      %v3010 = vld [vmem:[%s165 + $0x88] sm:$0xf]
      %v3011 = vld [vmem:[%s165 + $0x8c] sm:$0xf]
      %v3012 = vld [vmem:[%s165 + $0x90] sm:$0xf]
      %v3013 = vld [vmem:[%s165 + $0x94] sm:$0xf]
      %v3014 = vld [vmem:[%s165 + $0x98] sm:$0x3]
      %v3015 = vld [vmem:[%s170] sm:$0xff]
      %v3016 = vld [vmem:[%s170 + $0x8] sm:$0xff]
      %v3017 = vld [vmem:[%s170 + $0x10] sm:$0xff]
      %v3018 = vld [vmem:[%s170 + $0x18] sm:$0xff]
      %v3019 = vld [vmem:[%s170 + $0x20] sm:$0xff]
      %v3020 = vld [vmem:[%s170 + $0x28] sm:$0xff]
      %v3021 = vld [vmem:[%s170 + $0x30] sm:$0xff]
      %v3022 = vld [vmem:[%s170 + $0x38] sm:$0xff]
      %v3023 = vld [vmem:[%s170 + $0x40] sm:$0xff]
      %v3024 = vld [vmem:[%s170 + $0x48] sm:$0xff]
      %v3025 = vld [vmem:[%s170 + $0x50] sm:$0xff]
      %v3026 = vld [vmem:[%s170 + $0x58] sm:$0xff]
      %v3027 = vld [vmem:[%s170 + $0x60] sm:$0xff]
      %v3028 = vld [vmem:[%s170 + $0x68] sm:$0xff]
      %v3029 = vld [vmem:[%s170 + $0x70] sm:$0xff]
      %v3030 = vld [vmem:[%s170 + $0x78] sm:$0xff]
      %v3031 = vld [vmem:[%s170 + $0x80] sm:$0xff]
      %v3032 = vld [vmem:[%s170 + $0x88] sm:$0xff]
      %v3033 = vld [vmem:[%s170 + $0x90] sm:$0xff]
      %v3034 = vld [vmem:[%s170 + $0x98] sm:$0xff]
      %v3035 = vld [vmem:[%s170 + $0xa0] sm:$0xff]
      %v3036 = vld [vmem:[%s170 + $0xa8] sm:$0xff]
      %v3037 = vld [vmem:[%s170 + $0xb0] sm:$0xff]
      %v3038 = vld [vmem:[%s170 + $0xb8] sm:$0xff]
      %v3039 = vld [vmem:[%s170 + $0xc0] sm:$0xff]
      %v3040 = vld [vmem:[%s170 + $0xc8] sm:$0xff]
      %v3041 = vld [vmem:[%s170 + $0xd0] sm:$0xff]
      %v3042 = vld [vmem:[%s170 + $0xd8] sm:$0xff]
      %v3043 = vld [vmem:[%s170 + $0xe0] sm:$0xff]
      %v3044 = vld [vmem:[%s170 + $0xe8] sm:$0xff]
      %v3045 = vld [vmem:[%s170 + $0xf0] sm:$0xff]
      %v3046 = vld [vmem:[%s170 + $0xf8] sm:$0xff]
      %v3047 = vld [vmem:[%s170 + $0x100] sm:$0xff]
      %v3048 = vld [vmem:[%s170 + $0x108] sm:$0xff]
      %v3049 = vld [vmem:[%s170 + $0x110] sm:$0xff]
      %v3050 = vld [vmem:[%s170 + $0x118] sm:$0xff]
      %s3051 = scalar_lea.vmem %s1, 10
      %v3052 = vld [vmem:[%s3051] sm:$0x3]
      %v3090 = vunpack.c.l.b16 %v2978
      %v3091 = vunpack.c.l.b16 %v2979
      %v3092 = vunpack.c.l.b16 %v2980
      %v3093 = vunpack.c.l.b16 %v2981
      %v3094 = vunpack.c.l.b16 %v2982
      %v3095 = vunpack.c.l.b16 %v2983
      %v3096 = vunpack.c.l.b16 %v2984
      %v3097 = vunpack.c.l.b16 %v2985
      %v3098 = vunpack.c.l.b16 %v2986
      %v3099 = vunpack.c.l.b16 %v2987
      %v3100 = vunpack.c.l.b16 %v2988
      %v3101 = vunpack.c.l.b16 %v2989
      %v3102 = vunpack.c.l.b16 %v2990
      %v3103 = vunpack.c.l.b16 %v2991
      %v3104 = vunpack.c.l.b16 %v2992
      %v3105 = vunpack.c.l.b16 %v2993
      %v3106 = vunpack.c.l.b16 %v2994
      %v3107 = vunpack.c.l.b16 %v2995
      %v3108 = vunpack.c.l.b16 %v2996
      %v3109 = vunpack.c.l.b16 %v2997
      %v3110 = vunpack.c.l.b16 %v2998
      %v3111 = vunpack.c.l.b16 %v2999
      %v3112 = vunpack.c.l.b16 %v3000
      %v3113 = vunpack.c.l.b16 %v3001
      %v3114 = vunpack.c.l.b16 %v3002
      %v3115 = vunpack.c.l.b16 %v3003
      %v3116 = vunpack.c.l.b16 %v3004
      %v3117 = vunpack.c.l.b16 %v3005
      %v3118 = vunpack.c.l.b16 %v3006
      %v3119 = vunpack.c.l.b16 %v3007
      %v3120 = vunpack.c.l.b16 %v3008
      %v3121 = vunpack.c.l.b16 %v3009
      %v3122 = vunpack.c.l.b16 %v3010
      %v3123 = vunpack.c.l.b16 %v3011
      %v3124 = vunpack.c.l.b16 %v3012
      %v3125 = vunpack.c.l.b16 %v3013
      %v3126 = vunpack.c.l.b16 %v3014
      %v3127 = vpack.c.b16 %v3091, %v3090
      %v3128 = vpack.c.b16 %v3093, %v3092
      %v3129 = vpack.c.b16 %v3095, %v3094
      %v3130 = vpack.c.b16 %v3097, %v3096
      %v3131 = vpack.c.b16 %v3099, %v3098
      %v3132 = vpack.c.b16 %v3101, %v3100
      %v3133 = vpack.c.b16 %v3103, %v3102
      %v3134 = vpack.c.b16 %v3105, %v3104
      %v3135 = vpack.c.b16 %v3107, %v3106
      %v3136 = vpack.c.b16 %v3109, %v3108
      %v3137 = vpack.c.b16 %v3111, %v3110
      %v3138 = vpack.c.b16 %v3113, %v3112
      %v3139 = vpack.c.b16 %v3115, %v3114
      %v3140 = vpack.c.b16 %v3117, %v3116
      %v3141 = vpack.c.b16 %v3119, %v3118
      %v3142 = vpack.c.b16 %v3121, %v3120
      %v3143 = vpack.c.b16 %v3123, %v3122
      %v3144 = vpack.c.b16 %v3125, %v3124
      %v3145 = vpack.c.b16 %v3126, %v3126
      %vm3146 = vcmask 1045504
      %v3147 = vrot.slane %v3127, 2
      %v3148 = vrot.slane %v3128, 2
      %v3149 = vsel %vm3146, %v3147, %v3148
      %v3150 = vrot.slane %v3129, 2
      %v3151 = vsel %vm3146, %v3148, %v3150
      %v3152 = vrot.slane %v3130, 2
      %v3153 = vsel %vm3146, %v3150, %v3152
      %v3154 = vrot.slane %v3131, 2
      %v3155 = vsel %vm3146, %v3152, %v3154
      %v3156 = vrot.slane %v3132, 2
      %v3157 = vsel %vm3146, %v3154, %v3156
      %v3158 = vrot.slane %v3133, 2
      %v3159 = vsel %vm3146, %v3156, %v3158
      %v3160 = vrot.slane %v3134, 2
      %v3161 = vsel %vm3146, %v3158, %v3160
      %v3162 = vrot.slane %v3135, 2
      %v3163 = vsel %vm3146, %v3160, %v3162
      %v3164 = vrot.slane %v3136, 2
      %v3165 = vsel %vm3146, %v3162, %v3164
      %v3166 = vrot.slane %v3137, 2
      %v3167 = vsel %vm3146, %v3164, %v3166
      %v3168 = vrot.slane %v3138, 2
      %v3169 = vsel %vm3146, %v3166, %v3168
      %v3170 = vrot.slane %v3139, 2
      %v3171 = vsel %vm3146, %v3168, %v3170
      %v3172 = vrot.slane %v3140, 2
      %v3173 = vsel %vm3146, %v3170, %v3172
      %v3174 = vrot.slane %v3141, 2
      %v3175 = vsel %vm3146, %v3172, %v3174
      %v3176 = vrot.slane %v3142, 2
      %v3177 = vsel %vm3146, %v3174, %v3176
      %v3178 = vrot.slane %v3143, 2
      %v3179 = vsel %vm3146, %v3176, %v3178
      %v3180 = vrot.slane %v3144, 2
      %v3181 = vsel %vm3146, %v3178, %v3180
      %v3182 = vrot.slane %v3145, 2
      %v3183 = vsel %vm3146, %v3180, %v3182
      %v3185 = vsel %vm379, %v3149, 0
      %v3188 = vsel %vm379, %v3151, 0
      %v3191 = vsel %vm379, %v3153, 0
      %v3194 = vsel %vm379, %v3155, 0
      %v3197 = vsel %vm379, %v3157, 0
      %v3200 = vsel %vm379, %v3159, 0
      %v3203 = vsel %vm379, %v3161, 0
      %v3206 = vsel %vm379, %v3163, 0
      %v3209 = vsel %vm379, %v3165, 0
      %v3212 = vsel %vm379, %v3167, 0
      %v3215 = vsel %vm379, %v3169, 0
      %v3218 = vsel %vm379, %v3171, 0
      %v3221 = vsel %vm379, %v3173, 0
      %v3224 = vsel %vm379, %v3175, 0
      %v3227 = vsel %vm379, %v3177, 0
      %v3230 = vsel %vm379, %v3179, 0
      %v3233 = vsel %vm379, %v3181, 0
      %v3236 = vsel %vm379, %v3183, 0
      %v3239 = vsel %vm434, %v3052, 0
      %3241 = vmatprep.subr.bf16.mxu0 0
      %3242 = vmatpush1.bf16.msra.mxu0 %v3239
      %3243 = vmatprep.subr.bf16.mxu0 0
      %3244 = vmatpush1.bf16.msra.mxu0 0
      %3245 = vmatprep.subr.bf16.mxu0 0
      %3246 = vmatpush1.bf16.msra.mxu0 0
      %3247 = vmatprep.subr.bf16.mxu0 0
      %3248 = vmatpush1.bf16.msra.mxu0 0
      %3249 = vmatprep.subr.bf16.mxu0 0
      %3250 = vmatpush1.bf16.msra.mxu0 0
      %3251 = vmatprep.subr.bf16.mxu0 0
      %3252 = vmatpush1.bf16.msra.mxu0 0
      %3253 = vmatprep.subr.bf16.mxu0 0
      %3254 = vmatpush1.bf16.msra.mxu0 0
      %3255 = vmatprep.subr.bf16.mxu0 0
      %3256 = vmatpush1.bf16.msra.mxu0 0
      %3257 = vmatprep.subr.bf16.mxu0 0
      %3258 = vmatpush1.bf16.msra.mxu0 0
      %3259 = vmatprep.subr.bf16.mxu0 0
      %3260 = vmatpush1.bf16.msra.mxu0 0
      %3261 = vmatprep.subr.bf16.mxu0 0
      %3262 = vmatpush1.bf16.msra.mxu0 0
      %3263 = vmatprep.subr.bf16.mxu0 0
      %3264 = vmatpush1.bf16.msra.mxu0 0
      %3265 = vmatprep.subr.bf16.mxu0 0
      %3266 = vmatpush1.bf16.msra.mxu0 0
      %3267 = vmatprep.subr.bf16.mxu0 0
      %3268 = vmatpush1.bf16.msra.mxu0 0
      %3269 = vmatprep.subr.bf16.mxu0 0
      %3270 = vmatpush1.bf16.msra.mxu0 0
      %3271 = vmatprep.subr.bf16.mxu0 0
      %3272 = vmatpush1.bf16.msra.mxu0 0
      %3273 = vmatprep.mubr.bf16.mxu0 0
      %3274 = vmatmul.mubr.bf16.gmra.mrb[0].mxu0 %v3185
      %v3275 = vpop.f32.mrb[0].mxu0
      %v3276 = vadd.f32 0.0, %v3275
      %v3277 = vpop.f32.mrb[0].mxu0
      %v3278 = vpop.f32.mrb[0].mxu0
      %v3279 = vadd.f32 0.0, %v3278
      %v3280 = vpop.f32.mrb[0].mxu0
      %3281 = vmatprep.mubr.bf16.mxu0 0
      %3282 = vmatmul.mubr.bf16.gmra.mrb[0].mxu0 %v3188
      %v3283 = vpop.f32.mrb[0].mxu0
      %v3284 = vadd.f32 0.0, %v3283
      %v3285 = vpop.f32.mrb[0].mxu0
      %v3286 = vpop.f32.mrb[0].mxu0
      %v3287 = vadd.f32 0.0, %v3286
      %v3288 = vpop.f32.mrb[0].mxu0
      %3289 = vmatprep.mubr.bf16.mxu0 0
      %3290 = vmatmul.mubr.bf16.gmra.mrb[0].mxu0 %v3191
      %v3291 = vpop.f32.mrb[0].mxu0
      %v3292 = vadd.f32 0.0, %v3291
      %v3293 = vpop.f32.mrb[0].mxu0
      %v3294 = vpop.f32.mrb[0].mxu0
      %v3295 = vadd.f32 0.0, %v3294
      %v3296 = vpop.f32.mrb[0].mxu0
      %3297 = vmatprep.mubr.bf16.mxu0 0
      %3298 = vmatmul.mubr.bf16.gmra.mrb[0].mxu0 %v3194
      %v3299 = vpop.f32.mrb[0].mxu0
      %v3300 = vadd.f32 0.0, %v3299
      %v3301 = vpop.f32.mrb[0].mxu0
      %v3302 = vpop.f32.mrb[0].mxu0
      %v3303 = vadd.f32 0.0, %v3302
      %v3304 = vpop.f32.mrb[0].mxu0
      %3305 = vmatprep.mubr.bf16.mxu0 0
      %3306 = vmatmul.mubr.bf16.gmra.mrb[0].mxu0 %v3197
      %v3307 = vpop.f32.mrb[0].mxu0
      %v3308 = vadd.f32 0.0, %v3307
      %v3309 = vpop.f32.mrb[0].mxu0
      %v3310 = vpop.f32.mrb[0].mxu0
      %v3311 = vadd.f32 0.0, %v3310
      %v3312 = vpop.f32.mrb[0].mxu0
      %3313 = vmatprep.mubr.bf16.mxu0 0
      %3314 = vmatmul.mubr.bf16.gmra.mrb[0].mxu0 %v3200
      %v3315 = vpop.f32.mrb[0].mxu0
      %v3316 = vadd.f32 0.0, %v3315
      %v3317 = vpop.f32.mrb[0].mxu0
      %v3318 = vpop.f32.mrb[0].mxu0
      %v3319 = vadd.f32 0.0, %v3318
      %v3320 = vpop.f32.mrb[0].mxu0
      %3321 = vmatprep.mubr.bf16.mxu0 0
      %3322 = vmatmul.mubr.bf16.gmra.mrb[0].mxu0 %v3203
      %v3323 = vpop.f32.mrb[0].mxu0
      %v3324 = vadd.f32 0.0, %v3323
      %v3325 = vpop.f32.mrb[0].mxu0
      %v3326 = vpop.f32.mrb[0].mxu0
      %v3327 = vadd.f32 0.0, %v3326
      %v3328 = vpop.f32.mrb[0].mxu0
      %3329 = vmatprep.mubr.bf16.mxu0 0
      %3330 = vmatmul.mubr.bf16.gmra.mrb[0].mxu0 %v3206
      %v3331 = vpop.f32.mrb[0].mxu0
      %v3332 = vadd.f32 0.0, %v3331
      %v3333 = vpop.f32.mrb[0].mxu0
      %v3334 = vpop.f32.mrb[0].mxu0
      %v3335 = vadd.f32 0.0, %v3334
      %v3336 = vpop.f32.mrb[0].mxu0
      %3337 = vmatprep.mubr.bf16.mxu0 0
      %3338 = vmatmul.mubr.bf16.gmra.mrb[0].mxu0 %v3209
      %v3339 = vpop.f32.mrb[0].mxu0
      %v3340 = vadd.f32 0.0, %v3339
      %v3341 = vpop.f32.mrb[0].mxu0
      %v3342 = vpop.f32.mrb[0].mxu0
      %v3343 = vadd.f32 0.0, %v3342
      %v3344 = vpop.f32.mrb[0].mxu0
      %3345 = vmatprep.mubr.bf16.mxu0 0
      %3346 = vmatmul.mubr.bf16.gmra.mrb[0].mxu0 %v3212
      %v3347 = vpop.f32.mrb[0].mxu0
      %v3348 = vadd.f32 0.0, %v3347
      %v3349 = vpop.f32.mrb[0].mxu0
      %v3350 = vpop.f32.mrb[0].mxu0
      %v3351 = vadd.f32 0.0, %v3350
      %v3352 = vpop.f32.mrb[0].mxu0
      %3353 = vmatprep.mubr.bf16.mxu0 0
      %3354 = vmatmul.mubr.bf16.gmra.mrb[0].mxu0 %v3215
      %v3355 = vpop.f32.mrb[0].mxu0
      %v3356 = vadd.f32 0.0, %v3355
      %v3357 = vpop.f32.mrb[0].mxu0
      %v3358 = vpop.f32.mrb[0].mxu0
      %v3359 = vadd.f32 0.0, %v3358
      %v3360 = vpop.f32.mrb[0].mxu0
      %3361 = vmatprep.mubr.bf16.mxu0 0
      %3362 = vmatmul.mubr.bf16.gmra.mrb[0].mxu0 %v3218
      %v3363 = vpop.f32.mrb[0].mxu0
      %v3364 = vadd.f32 0.0, %v3363
      %v3365 = vpop.f32.mrb[0].mxu0
      %v3366 = vpop.f32.mrb[0].mxu0
      %v3367 = vadd.f32 0.0, %v3366
      %v3368 = vpop.f32.mrb[0].mxu0
      %3369 = vmatprep.mubr.bf16.mxu0 0
      %3370 = vmatmul.mubr.bf16.gmra.mrb[0].mxu0 %v3221
      %v3371 = vpop.f32.mrb[0].mxu0
      %v3372 = vadd.f32 0.0, %v3371
      %v3373 = vpop.f32.mrb[0].mxu0
      %v3374 = vpop.f32.mrb[0].mxu0
      %v3375 = vadd.f32 0.0, %v3374
      %v3376 = vpop.f32.mrb[0].mxu0
      %3377 = vmatprep.mubr.bf16.mxu0 0
      %3378 = vmatmul.mubr.bf16.gmra.mrb[0].mxu0 %v3224
      %v3379 = vpop.f32.mrb[0].mxu0
      %v3380 = vadd.f32 0.0, %v3379
      %v3381 = vpop.f32.mrb[0].mxu0
      %v3382 = vpop.f32.mrb[0].mxu0
      %v3383 = vadd.f32 0.0, %v3382
      %v3384 = vpop.f32.mrb[0].mxu0
      %3385 = vmatprep.mubr.bf16.mxu0 0
      %3386 = vmatmul.mubr.bf16.gmra.mrb[0].mxu0 %v3227
      %v3387 = vpop.f32.mrb[0].mxu0
      %v3388 = vadd.f32 0.0, %v3387
      %v3389 = vpop.f32.mrb[0].mxu0
      %v3390 = vpop.f32.mrb[0].mxu0
      %v3391 = vadd.f32 0.0, %v3390
      %v3392 = vpop.f32.mrb[0].mxu0
      %3393 = vmatprep.mubr.bf16.mxu0 0
      %3394 = vmatmul.mubr.bf16.gmra.mrb[0].mxu0 %v3230
      %v3395 = vpop.f32.mrb[0].mxu0
      %v3396 = vadd.f32 0.0, %v3395
      %v3397 = vpop.f32.mrb[0].mxu0
      %v3398 = vpop.f32.mrb[0].mxu0
      %v3399 = vadd.f32 0.0, %v3398
      %v3400 = vpop.f32.mrb[0].mxu0
      %3401 = vmatprep.mubr.bf16.mxu0 0
      %3402 = vmatmul.mubr.bf16.gmra.mrb[0].mxu0 %v3233
      %v3403 = vpop.f32.mrb[0].mxu0
      %v3404 = vadd.f32 0.0, %v3403
      %v3405 = vpop.f32.mrb[0].mxu0
      %v3406 = vpop.f32.mrb[0].mxu0
      %v3407 = vadd.f32 0.0, %v3406
      %v3408 = vpop.f32.mrb[0].mxu0
      %3409 = vmatprep.mubr.bf16.mxu0 0
      %3410 = vmatmul.mubr.bf16.gmra.mrb[0].mxu0 %v3236
      %v3411 = vpop.f32.mrb[0].mxu0
      %v3412 = vadd.f32 0.0, %v3411
      %v3413 = vpop.f32.mrb[0].mxu0
      %v3414 = vpop.f32.mrb[0].mxu0
      %v3415 = vadd.f32 0.0, %v3414
      %v3416 = vpop.f32.mrb[0].mxu0
      %3417 = vdwg.mxu0
      %v3418 = vadd.f32 %v3015, %v3276
      %v3419 = vadd.f32 %v3016, %v3279
      %v3420 = vadd.f32 %v3017, %v3284
      %v3421 = vadd.f32 %v3018, %v3287
      %v3422 = vadd.f32 %v3019, %v3292
      %v3423 = vadd.f32 %v3020, %v3295
      %v3424 = vadd.f32 %v3021, %v3300
      %v3425 = vadd.f32 %v3022, %v3303
      %v3426 = vadd.f32 %v3023, %v3308
      %v3427 = vadd.f32 %v3024, %v3311
      %v3428 = vadd.f32 %v3025, %v3316
      %v3429 = vadd.f32 %v3026, %v3319
      %v3430 = vadd.f32 %v3027, %v3324
      %v3431 = vadd.f32 %v3028, %v3327
      %v3432 = vadd.f32 %v3029, %v3332
      %v3433 = vadd.f32 %v3030, %v3335
      %v3434 = vadd.f32 %v3031, %v3340
      %v3435 = vadd.f32 %v3032, %v3343
      %v3436 = vadd.f32 %v3033, %v3348
      %v3437 = vadd.f32 %v3034, %v3351
      %v3438 = vadd.f32 %v3035, %v3356
      %v3439 = vadd.f32 %v3036, %v3359
      %v3440 = vadd.f32 %v3037, %v3364
      %v3441 = vadd.f32 %v3038, %v3367
      %v3442 = vadd.f32 %v3039, %v3372
      %v3443 = vadd.f32 %v3040, %v3375
      %v3444 = vadd.f32 %v3041, %v3380
      %v3445 = vadd.f32 %v3042, %v3383
      %v3446 = vadd.f32 %v3043, %v3388
      %v3447 = vadd.f32 %v3044, %v3391
      %v3448 = vadd.f32 %v3045, %v3396
      %v3449 = vadd.f32 %v3046, %v3399
      %v3450 = vadd.f32 %v3047, %v3404
      %v3451 = vadd.f32 %v3048, %v3407
      %v3452 = vadd.f32 %v3049, %v3412
      %v3453 = vadd.f32 %v3050, %v3415
      %3454 = vst.msk [vmem:[%s170] sm:$0xff] %vm179, %v3418
      %3455 = vst.msk [vmem:[%s170 + $0x8] sm:$0xff] %vm179, %v3419
      %3456 = vst.msk [vmem:[%s170 + $0x10] sm:$0xff] %vm179, %v3420
      %3457 = vst.msk [vmem:[%s170 + $0x18] sm:$0xff] %vm179, %v3421
      %3458 = vst.msk [vmem:[%s170 + $0x20] sm:$0xff] %vm179, %v3422
      %3459 = vst.msk [vmem:[%s170 + $0x28] sm:$0xff] %vm179, %v3423
      %3460 = vst.msk [vmem:[%s170 + $0x30] sm:$0xff] %vm179, %v3424
      %3461 = vst.msk [vmem:[%s170 + $0x38] sm:$0xff] %vm179, %v3425
      %3462 = vst.msk [vmem:[%s170 + $0x40] sm:$0xff] %vm179, %v3426
      %3463 = vst.msk [vmem:[%s170 + $0x48] sm:$0xff] %vm179, %v3427
      %3464 = vst.msk [vmem:[%s170 + $0x50] sm:$0xff] %vm179, %v3428
      %3465 = vst.msk [vmem:[%s170 + $0x58] sm:$0xff] %vm179, %v3429
      %3466 = vst.msk [vmem:[%s170 + $0x60] sm:$0xff] %vm179, %v3430
      %3467 = vst.msk [vmem:[%s170 + $0x68] sm:$0xff] %vm179, %v3431
      %3468 = vst.msk [vmem:[%s170 + $0x70] sm:$0xff] %vm179, %v3432
      %3469 = vst.msk [vmem:[%s170 + $0x78] sm:$0xff] %vm179, %v3433
      %3470 = vst.msk [vmem:[%s170 + $0x80] sm:$0xff] %vm179, %v3434
      %3471 = vst.msk [vmem:[%s170 + $0x88] sm:$0xff] %vm179, %v3435
      %3472 = vst.msk [vmem:[%s170 + $0x90] sm:$0xff] %vm179, %v3436
      %3473 = vst.msk [vmem:[%s170 + $0x98] sm:$0xff] %vm179, %v3437
      %3474 = vst.msk [vmem:[%s170 + $0xa0] sm:$0xff] %vm179, %v3438
      %3475 = vst.msk [vmem:[%s170 + $0xa8] sm:$0xff] %vm179, %v3439
      %3476 = vst.msk [vmem:[%s170 + $0xb0] sm:$0xff] %vm179, %v3440
      %3477 = vst.msk [vmem:[%s170 + $0xb8] sm:$0xff] %vm179, %v3441
      %3478 = vst.msk [vmem:[%s170 + $0xc0] sm:$0xff] %vm179, %v3442
      %3479 = vst.msk [vmem:[%s170 + $0xc8] sm:$0xff] %vm179, %v3443
      %3480 = vst.msk [vmem:[%s170 + $0xd0] sm:$0xff] %vm179, %v3444
      %3481 = vst.msk [vmem:[%s170 + $0xd8] sm:$0xff] %vm179, %v3445
      %3482 = vst.msk [vmem:[%s170 + $0xe0] sm:$0xff] %vm179, %v3446
      %3483 = vst.msk [vmem:[%s170 + $0xe8] sm:$0xff] %vm179, %v3447
      %3484 = vst.msk [vmem:[%s170 + $0xf0] sm:$0xff] %vm179, %v3448
      %3485 = vst.msk [vmem:[%s170 + $0xf8] sm:$0xff] %vm179, %v3449
      %3486 = vst.msk [vmem:[%s170 + $0x100] sm:$0xff] %vm179, %v3450
      %3487 = vst.msk [vmem:[%s170 + $0x108] sm:$0xff] %vm179, %v3451
      %3488 = vst.msk [vmem:[%s170 + $0x110] sm:$0xff] %vm179, %v3452
      %3489 = vst.msk [vmem:[%s170 + $0x118] sm:$0xff] %vm179, %v3453
      %v3490 = vld [vmem:[%s165 + $0x10] sm:$0xc]
      %v3491 = vld [vmem:[%s165 + $0x14] sm:$0xf]
      %v3492 = vld [vmem:[%s165 + $0x18] sm:$0xf]
      %v3493 = vld [vmem:[%s165 + $0x1c] sm:$0xf]
      %v3494 = vld [vmem:[%s165 + $0x20] sm:$0xf]
      %v3495 = vld [vmem:[%s165 + $0x24] sm:$0xf]
      %v3496 = vld [vmem:[%s165 + $0x28] sm:$0xf]
      %v3497 = vld [vmem:[%s165 + $0x2c] sm:$0xf]
      %v3498 = vld [vmem:[%s165 + $0x30] sm:$0xf]
      %v3499 = vld [vmem:[%s165 + $0x34] sm:$0xf]
      %v3500 = vld [vmem:[%s165 + $0x38] sm:$0xf]
      %v3501 = vld [vmem:[%s165 + $0x3c] sm:$0xf]
      %v3502 = vld [vmem:[%s165 + $0x40] sm:$0xf]
      %v3503 = vld [vmem:[%s165 + $0x44] sm:$0xf]
      %v3504 = vld [vmem:[%s165 + $0x48] sm:$0xf]
      %v3505 = vld [vmem:[%s165 + $0x4c] sm:$0xf]
      %v3506 = vld [vmem:[%s165 + $0x50] sm:$0xf]
      %v3507 = vld [vmem:[%s165 + $0x54] sm:$0xf]
      %v3508 = vld [vmem:[%s165 + $0x58] sm:$0xf]
      %v3509 = vld [vmem:[%s165 + $0x5c] sm:$0xf]
      %v3510 = vld [vmem:[%s165 + $0x60] sm:$0xf]
      %v3511 = vld [vmem:[%s165 + $0x64] sm:$0xf]
      %v3512 = vld [vmem:[%s165 + $0x68] sm:$0xf]
      %v3513 = vld [vmem:[%s165 + $0x6c] sm:$0xf]
      %v3514 = vld [vmem:[%s165 + $0x70] sm:$0xf]
      %v3515 = vld [vmem:[%s165 + $0x74] sm:$0xf]
      %v3516 = vld [vmem:[%s165 + $0x78] sm:$0xf]
      %v3517 = vld [vmem:[%s165 + $0x7c] sm:$0xf]
      %v3518 = vld [vmem:[%s165 + $0x80] sm:$0xf]
      %v3519 = vld [vmem:[%s165 + $0x84] sm:$0xf]
      %v3520 = vld [vmem:[%s165 + $0x88] sm:$0xf]
      %v3521 = vld [vmem:[%s165 + $0x8c] sm:$0xf]
      %v3522 = vld [vmem:[%s165 + $0x90] sm:$0xf]
      %v3523 = vld [vmem:[%s165 + $0x94] sm:$0xf]
      %v3524 = vld [vmem:[%s165 + $0x98] sm:$0xf]
      %v3525 = vld [vmem:[%s165 + $0x9c] sm:$0xf]
      %v3526 = vld [vmem:[%s165 + $0xa0] sm:$0x3]
      %v3527 = vld [vmem:[%s170] sm:$0xff]
      %v3528 = vld [vmem:[%s170 + $0x8] sm:$0xff]
      %v3529 = vld [vmem:[%s170 + $0x10] sm:$0xff]
      %v3530 = vld [vmem:[%s170 + $0x18] sm:$0xff]
      %v3531 = vld [vmem:[%s170 + $0x20] sm:$0xff]
      %v3532 = vld [vmem:[%s170 + $0x28] sm:$0xff]
      %v3533 = vld [vmem:[%s170 + $0x30] sm:$0xff]
      %v3534 = vld [vmem:[%s170 + $0x38] sm:$0xff]
      %v3535 = vld [vmem:[%s170 + $0x40] sm:$0xff]
      %v3536 = vld [vmem:[%s170 + $0x48] sm:$0xff]
      %v3537 = vld [vmem:[%s170 + $0x50] sm:$0xff]
      %v3538 = vld [vmem:[%s170 + $0x58] sm:$0xff]
      %v3539 = vld [vmem:[%s170 + $0x60] sm:$0xff]
      %v3540 = vld [vmem:[%s170 + $0x68] sm:$0xff]
      %v3541 = vld [vmem:[%s170 + $0x70] sm:$0xff]
      %v3542 = vld [vmem:[%s170 + $0x78] sm:$0xff]
      %v3543 = vld [vmem:[%s170 + $0x80] sm:$0xff]
      %v3544 = vld [vmem:[%s170 + $0x88] sm:$0xff]
      %v3545 = vld [vmem:[%s170 + $0x90] sm:$0xff]
      %v3546 = vld [vmem:[%s170 + $0x98] sm:$0xff]
      %v3547 = vld [vmem:[%s170 + $0xa0] sm:$0xff]
      %v3548 = vld [vmem:[%s170 + $0xa8] sm:$0xff]
      %v3549 = vld [vmem:[%s170 + $0xb0] sm:$0xff]
      %v3550 = vld [vmem:[%s170 + $0xb8] sm:$0xff]
      %v3551 = vld [vmem:[%s170 + $0xc0] sm:$0xff]
      %v3552 = vld [vmem:[%s170 + $0xc8] sm:$0xff]
      %v3553 = vld [vmem:[%s170 + $0xd0] sm:$0xff]
      %v3554 = vld [vmem:[%s170 + $0xd8] sm:$0xff]
      %v3555 = vld [vmem:[%s170 + $0xe0] sm:$0xff]
      %v3556 = vld [vmem:[%s170 + $0xe8] sm:$0xff]
      %v3557 = vld [vmem:[%s170 + $0xf0] sm:$0xff]
      %v3558 = vld [vmem:[%s170 + $0xf8] sm:$0xff]
      %v3559 = vld [vmem:[%s170 + $0x100] sm:$0xff]
      %v3560 = vld [vmem:[%s170 + $0x108] sm:$0xff]
      %v3561 = vld [vmem:[%s170 + $0x110] sm:$0xff]
      %v3562 = vld [vmem:[%s170 + $0x118] sm:$0xff]
      %s3563 = scalar_lea.vmem %s1, 12
      %v3564 = vld [vmem:[%s3563] sm:$0x3]
      %v3602 = vunpack.c.l.b16 %v3490
      %v3603 = vunpack.c.l.b16 %v3491
      %v3604 = vunpack.c.l.b16 %v3492
      %v3605 = vunpack.c.l.b16 %v3493
      %v3606 = vunpack.c.l.b16 %v3494
      %v3607 = vunpack.c.l.b16 %v3495
      %v3608 = vunpack.c.l.b16 %v3496
      %v3609 = vunpack.c.l.b16 %v3497
      %v3610 = vunpack.c.l.b16 %v3498
      %v3611 = vunpack.c.l.b16 %v3499
      %v3612 = vunpack.c.l.b16 %v3500
      %v3613 = vunpack.c.l.b16 %v3501
      %v3614 = vunpack.c.l.b16 %v3502
      %v3615 = vunpack.c.l.b16 %v3503
      %v3616 = vunpack.c.l.b16 %v3504
      %v3617 = vunpack.c.l.b16 %v3505
      %v3618 = vunpack.c.l.b16 %v3506
      %v3619 = vunpack.c.l.b16 %v3507
      %v3620 = vunpack.c.l.b16 %v3508
      %v3621 = vunpack.c.l.b16 %v3509
      %v3622 = vunpack.c.l.b16 %v3510
      %v3623 = vunpack.c.l.b16 %v3511
      %v3624 = vunpack.c.l.b16 %v3512
      %v3625 = vunpack.c.l.b16 %v3513
      %v3626 = vunpack.c.l.b16 %v3514
      %v3627 = vunpack.c.l.b16 %v3515
      %v3628 = vunpack.c.l.b16 %v3516
      %v3629 = vunpack.c.l.b16 %v3517
      %v3630 = vunpack.c.l.b16 %v3518
      %v3631 = vunpack.c.l.b16 %v3519
      %v3632 = vunpack.c.l.b16 %v3520
      %v3633 = vunpack.c.l.b16 %v3521
      %v3634 = vunpack.c.l.b16 %v3522
      %v3635 = vunpack.c.l.b16 %v3523
      %v3636 = vunpack.c.l.b16 %v3524
      %v3637 = vunpack.c.l.b16 %v3525
      %v3638 = vunpack.c.l.b16 %v3526
      %v3639 = vpack.c.b16 %v3603, %v3602
      %v3640 = vpack.c.b16 %v3605, %v3604
      %v3641 = vpack.c.b16 %v3607, %v3606
      %v3642 = vpack.c.b16 %v3609, %v3608
      %v3643 = vpack.c.b16 %v3611, %v3610
      %v3644 = vpack.c.b16 %v3613, %v3612
      %v3645 = vpack.c.b16 %v3615, %v3614
      %v3646 = vpack.c.b16 %v3617, %v3616
      %v3647 = vpack.c.b16 %v3619, %v3618
      %v3648 = vpack.c.b16 %v3621, %v3620
      %v3649 = vpack.c.b16 %v3623, %v3622
      %v3650 = vpack.c.b16 %v3625, %v3624
      %v3651 = vpack.c.b16 %v3627, %v3626
      %v3652 = vpack.c.b16 %v3629, %v3628
      %v3653 = vpack.c.b16 %v3631, %v3630
      %v3654 = vpack.c.b16 %v3633, %v3632
      %v3655 = vpack.c.b16 %v3635, %v3634
      %v3656 = vpack.c.b16 %v3637, %v3636
      %v3657 = vpack.c.b16 %v3638, %v3638
      %v3658 = vrot.slane %v3639, 2
      %v3659 = vrot.slane %v3640, 2
      %v3660 = vsel %vm3146, %v3658, %v3659
      %v3661 = vrot.slane %v3641, 2
      %v3662 = vsel %vm3146, %v3659, %v3661
      %v3663 = vrot.slane %v3642, 2
      %v3664 = vsel %vm3146, %v3661, %v3663
      %v3665 = vrot.slane %v3643, 2
      %v3666 = vsel %vm3146, %v3663, %v3665
      %v3667 = vrot.slane %v3644, 2
      %v3668 = vsel %vm3146, %v3665, %v3667
      %v3669 = vrot.slane %v3645, 2
      %v3670 = vsel %vm3146, %v3667, %v3669
      %v3671 = vrot.slane %v3646, 2
      %v3672 = vsel %vm3146, %v3669, %v3671
      %v3673 = vrot.slane %v3647, 2
      %v3674 = vsel %vm3146, %v3671, %v3673
      %v3675 = vrot.slane %v3648, 2
      %v3676 = vsel %vm3146, %v3673, %v3675
      %v3677 = vrot.slane %v3649, 2
      %v3678 = vsel %vm3146, %v3675, %v3677
      %v3679 = vrot.slane %v3650, 2
      %v3680 = vsel %vm3146, %v3677, %v3679
      %v3681 = vrot.slane %v3651, 2
      %v3682 = vsel %vm3146, %v3679, %v3681
      %v3683 = vrot.slane %v3652, 2
      %v3684 = vsel %vm3146, %v3681, %v3683
      %v3685 = vrot.slane %v3653, 2
      %v3686 = vsel %vm3146, %v3683, %v3685
      %v3687 = vrot.slane %v3654, 2
      %v3688 = vsel %vm3146, %v3685, %v3687
      %v3689 = vrot.slane %v3655, 2
      %v3690 = vsel %vm3146, %v3687, %v3689
      %v3691 = vrot.slane %v3656, 2
      %v3692 = vsel %vm3146, %v3689, %v3691
      %v3693 = vrot.slane %v3657, 2
      %v3694 = vsel %vm3146, %v3691, %v3693
      %v3696 = vsel %vm379, %v3660, 0
      %v3699 = vsel %vm379, %v3662, 0
      %v3702 = vsel %vm379, %v3664, 0
      %v3705 = vsel %vm379, %v3666, 0
      %v3708 = vsel %vm379, %v3668, 0
      %v3711 = vsel %vm379, %v3670, 0
      %v3714 = vsel %vm379, %v3672, 0
      %v3717 = vsel %vm379, %v3674, 0
      %v3720 = vsel %vm379, %v3676, 0
      %v3723 = vsel %vm379, %v3678, 0
      %v3726 = vsel %vm379, %v3680, 0
      %v3729 = vsel %vm379, %v3682, 0
      %v3732 = vsel %vm379, %v3684, 0
      %v3735 = vsel %vm379, %v3686, 0
      %v3738 = vsel %vm379, %v3688, 0
      %v3741 = vsel %vm379, %v3690, 0
      %v3744 = vsel %vm379, %v3692, 0
      %v3747 = vsel %vm379, %v3694, 0
      %v3750 = vsel %vm434, %v3564, 0
      %3752 = vmatprep.subr.bf16.mxu0 0
      %3753 = vmatpush1.bf16.msra.mxu0 %v3750
      %3754 = vmatprep.subr.bf16.mxu0 0
      %3755 = vmatpush1.bf16.msra.mxu0 0
      %3756 = vmatprep.subr.bf16.mxu0 0
      %3757 = vmatpush1.bf16.msra.mxu0 0
      %3758 = vmatprep.subr.bf16.mxu0 0
      %3759 = vmatpush1.bf16.msra.mxu0 0
      %3760 = vmatprep.subr.bf16.mxu0 0
      %3761 = vmatpush1.bf16.msra.mxu0 0
      %3762 = vmatprep.subr.bf16.mxu0 0
      %3763 = vmatpush1.bf16.msra.mxu0 0
      %3764 = vmatprep.subr.bf16.mxu0 0
      %3765 = vmatpush1.bf16.msra.mxu0 0
      %3766 = vmatprep.subr.bf16.mxu0 0
      %3767 = vmatpush1.bf16.msra.mxu0 0
      %3768 = vmatprep.subr.bf16.mxu0 0
      %3769 = vmatpush1.bf16.msra.mxu0 0
      %3770 = vmatprep.subr.bf16.mxu0 0
      %3771 = vmatpush1.bf16.msra.mxu0 0
      %3772 = vmatprep.subr.bf16.mxu0 0
      %3773 = vmatpush1.bf16.msra.mxu0 0
      %3774 = vmatprep.subr.bf16.mxu0 0
      %3775 = vmatpush1.bf16.msra.mxu0 0
      %3776 = vmatprep.subr.bf16.mxu0 0
      %3777 = vmatpush1.bf16.msra.mxu0 0
      %3778 = vmatprep.subr.bf16.mxu0 0
      %3779 = vmatpush1.bf16.msra.mxu0 0
      %3780 = vmatprep.subr.bf16.mxu0 0
      %3781 = vmatpush1.bf16.msra.mxu0 0
      %3782 = vmatprep.subr.bf16.mxu0 0
      %3783 = vmatpush1.bf16.msra.mxu0 0
      %3784 = vmatprep.mubr.bf16.mxu0 0
      %3785 = vmatmul.mubr.bf16.gmra.mrb[0].mxu0 %v3696
      %v3786 = vpop.f32.mrb[0].mxu0
      %v3787 = vadd.f32 0.0, %v3786
      %v3788 = vpop.f32.mrb[0].mxu0
      %v3789 = vpop.f32.mrb[0].mxu0
      %v3790 = vadd.f32 0.0, %v3789
      %v3791 = vpop.f32.mrb[0].mxu0
      %3792 = vmatprep.mubr.bf16.mxu0 0
      %3793 = vmatmul.mubr.bf16.gmra.mrb[0].mxu0 %v3699
      %v3794 = vpop.f32.mrb[0].mxu0
      %v3795 = vadd.f32 0.0, %v3794
      %v3796 = vpop.f32.mrb[0].mxu0
      %v3797 = vpop.f32.mrb[0].mxu0
      %v3798 = vadd.f32 0.0, %v3797
      %v3799 = vpop.f32.mrb[0].mxu0
      %3800 = vmatprep.mubr.bf16.mxu0 0
      %3801 = vmatmul.mubr.bf16.gmra.mrb[0].mxu0 %v3702
      %v3802 = vpop.f32.mrb[0].mxu0
      %v3803 = vadd.f32 0.0, %v3802
      %v3804 = vpop.f32.mrb[0].mxu0
      %v3805 = vpop.f32.mrb[0].mxu0
      %v3806 = vadd.f32 0.0, %v3805
      %v3807 = vpop.f32.mrb[0].mxu0
      %3808 = vmatprep.mubr.bf16.mxu0 0
      %3809 = vmatmul.mubr.bf16.gmra.mrb[0].mxu0 %v3705
      %v3810 = vpop.f32.mrb[0].mxu0
      %v3811 = vadd.f32 0.0, %v3810
      %v3812 = vpop.f32.mrb[0].mxu0
      %v3813 = vpop.f32.mrb[0].mxu0
      %v3814 = vadd.f32 0.0, %v3813
      %v3815 = vpop.f32.mrb[0].mxu0
      %3816 = vmatprep.mubr.bf16.mxu0 0
      %3817 = vmatmul.mubr.bf16.gmra.mrb[0].mxu0 %v3708
      %v3818 = vpop.f32.mrb[0].mxu0
      %v3819 = vadd.f32 0.0, %v3818
      %v3820 = vpop.f32.mrb[0].mxu0
      %v3821 = vpop.f32.mrb[0].mxu0
      %v3822 = vadd.f32 0.0, %v3821
      %v3823 = vpop.f32.mrb[0].mxu0
      %3824 = vmatprep.mubr.bf16.mxu0 0
      %3825 = vmatmul.mubr.bf16.gmra.mrb[0].mxu0 %v3711
      %v3826 = vpop.f32.mrb[0].mxu0
      %v3827 = vadd.f32 0.0, %v3826
      %v3828 = vpop.f32.mrb[0].mxu0
      %v3829 = vpop.f32.mrb[0].mxu0
      %v3830 = vadd.f32 0.0, %v3829
      %v3831 = vpop.f32.mrb[0].mxu0
      %3832 = vmatprep.mubr.bf16.mxu0 0
      %3833 = vmatmul.mubr.bf16.gmra.mrb[0].mxu0 %v3714
      %v3834 = vpop.f32.mrb[0].mxu0
      %v3835 = vadd.f32 0.0, %v3834
      %v3836 = vpop.f32.mrb[0].mxu0
      %v3837 = vpop.f32.mrb[0].mxu0
      %v3838 = vadd.f32 0.0, %v3837
      %v3839 = vpop.f32.mrb[0].mxu0
      %3840 = vmatprep.mubr.bf16.mxu0 0
      %3841 = vmatmul.mubr.bf16.gmra.mrb[0].mxu0 %v3717
      %v3842 = vpop.f32.mrb[0].mxu0
      %v3843 = vadd.f32 0.0, %v3842
      %v3844 = vpop.f32.mrb[0].mxu0
      %v3845 = vpop.f32.mrb[0].mxu0
      %v3846 = vadd.f32 0.0, %v3845
      %v3847 = vpop.f32.mrb[0].mxu0
      %3848 = vmatprep.mubr.bf16.mxu0 0
      %3849 = vmatmul.mubr.bf16.gmra.mrb[0].mxu0 %v3720
      %v3850 = vpop.f32.mrb[0].mxu0
      %v3851 = vadd.f32 0.0, %v3850
      %v3852 = vpop.f32.mrb[0].mxu0
      %v3853 = vpop.f32.mrb[0].mxu0
      %v3854 = vadd.f32 0.0, %v3853
      %v3855 = vpop.f32.mrb[0].mxu0
      %3856 = vmatprep.mubr.bf16.mxu0 0
      %3857 = vmatmul.mubr.bf16.gmra.mrb[0].mxu0 %v3723
      %v3858 = vpop.f32.mrb[0].mxu0
      %v3859 = vadd.f32 0.0, %v3858
      %v3860 = vpop.f32.mrb[0].mxu0
      %v3861 = vpop.f32.mrb[0].mxu0
      %v3862 = vadd.f32 0.0, %v3861
      %v3863 = vpop.f32.mrb[0].mxu0
      %3864 = vmatprep.mubr.bf16.mxu0 0
      %3865 = vmatmul.mubr.bf16.gmra.mrb[0].mxu0 %v3726
      %v3866 = vpop.f32.mrb[0].mxu0
      %v3867 = vadd.f32 0.0, %v3866
      %v3868 = vpop.f32.mrb[0].mxu0
      %v3869 = vpop.f32.mrb[0].mxu0
      %v3870 = vadd.f32 0.0, %v3869
      %v3871 = vpop.f32.mrb[0].mxu0
      %3872 = vmatprep.mubr.bf16.mxu0 0
      %3873 = vmatmul.mubr.bf16.gmra.mrb[0].mxu0 %v3729
      %v3874 = vpop.f32.mrb[0].mxu0
      %v3875 = vadd.f32 0.0, %v3874
      %v3876 = vpop.f32.mrb[0].mxu0
      %v3877 = vpop.f32.mrb[0].mxu0
      %v3878 = vadd.f32 0.0, %v3877
      %v3879 = vpop.f32.mrb[0].mxu0
      %3880 = vmatprep.mubr.bf16.mxu0 0
      %3881 = vmatmul.mubr.bf16.gmra.mrb[0].mxu0 %v3732
      %v3882 = vpop.f32.mrb[0].mxu0
      %v3883 = vadd.f32 0.0, %v3882
      %v3884 = vpop.f32.mrb[0].mxu0
      %v3885 = vpop.f32.mrb[0].mxu0
      %v3886 = vadd.f32 0.0, %v3885
      %v3887 = vpop.f32.mrb[0].mxu0
      %3888 = vmatprep.mubr.bf16.mxu0 0
      %3889 = vmatmul.mubr.bf16.gmra.mrb[0].mxu0 %v3735
      %v3890 = vpop.f32.mrb[0].mxu0
      %v3891 = vadd.f32 0.0, %v3890
      %v3892 = vpop.f32.mrb[0].mxu0
      %v3893 = vpop.f32.mrb[0].mxu0
      %v3894 = vadd.f32 0.0, %v3893
      %v3895 = vpop.f32.mrb[0].mxu0
      %3896 = vmatprep.mubr.bf16.mxu0 0
      %3897 = vmatmul.mubr.bf16.gmra.mrb[0].mxu0 %v3738
      %v3898 = vpop.f32.mrb[0].mxu0
      %v3899 = vadd.f32 0.0, %v3898
      %v3900 = vpop.f32.mrb[0].mxu0
      %v3901 = vpop.f32.mrb[0].mxu0
      %v3902 = vadd.f32 0.0, %v3901
      %v3903 = vpop.f32.mrb[0].mxu0
      %3904 = vmatprep.mubr.bf16.mxu0 0
      %3905 = vmatmul.mubr.bf16.gmra.mrb[0].mxu0 %v3741
      %v3906 = vpop.f32.mrb[0].mxu0
      %v3907 = vadd.f32 0.0, %v3906
      %v3908 = vpop.f32.mrb[0].mxu0
      %v3909 = vpop.f32.mrb[0].mxu0
      %v3910 = vadd.f32 0.0, %v3909
      %v3911 = vpop.f32.mrb[0].mxu0
      %3912 = vmatprep.mubr.bf16.mxu0 0
      %3913 = vmatmul.mubr.bf16.gmra.mrb[0].mxu0 %v3744
      %v3914 = vpop.f32.mrb[0].mxu0
      %v3915 = vadd.f32 0.0, %v3914
      %v3916 = vpop.f32.mrb[0].mxu0
      %v3917 = vpop.f32.mrb[0].mxu0
      %v3918 = vadd.f32 0.0, %v3917
      %v3919 = vpop.f32.mrb[0].mxu0
      %3920 = vmatprep.mubr.bf16.mxu0 0
      %3921 = vmatmul.mubr.bf16.gmra.mrb[0].mxu0 %v3747
      %v3922 = vpop.f32.mrb[0].mxu0
      %v3923 = vadd.f32 0.0, %v3922
      %v3924 = vpop.f32.mrb[0].mxu0
      %v3925 = vpop.f32.mrb[0].mxu0
      %v3926 = vadd.f32 0.0, %v3925
      %v3927 = vpop.f32.mrb[0].mxu0
      %3928 = vdwg.mxu0
      %v3929 = vadd.f32 %v3527, %v3787
      %v3930 = vadd.f32 %v3528, %v3790
      %v3931 = vadd.f32 %v3529, %v3795
      %v3932 = vadd.f32 %v3530, %v3798
      %v3933 = vadd.f32 %v3531, %v3803
      %v3934 = vadd.f32 %v3532, %v3806
      %v3935 = vadd.f32 %v3533, %v3811
      %v3936 = vadd.f32 %v3534, %v3814
      %v3937 = vadd.f32 %v3535, %v3819
      %v3938 = vadd.f32 %v3536, %v3822
      %v3939 = vadd.f32 %v3537, %v3827
      %v3940 = vadd.f32 %v3538, %v3830
      %v3941 = vadd.f32 %v3539, %v3835
      %v3942 = vadd.f32 %v3540, %v3838
      %v3943 = vadd.f32 %v3541, %v3843
      %v3944 = vadd.f32 %v3542, %v3846
      %v3945 = vadd.f32 %v3543, %v3851
      %v3946 = vadd.f32 %v3544, %v3854
      %v3947 = vadd.f32 %v3545, %v3859
      %v3948 = vadd.f32 %v3546, %v3862
      %v3949 = vadd.f32 %v3547, %v3867
      %v3950 = vadd.f32 %v3548, %v3870
      %v3951 = vadd.f32 %v3549, %v3875
      %v3952 = vadd.f32 %v3550, %v3878
      %v3953 = vadd.f32 %v3551, %v3883
      %v3954 = vadd.f32 %v3552, %v3886
      %v3955 = vadd.f32 %v3553, %v3891
      %v3956 = vadd.f32 %v3554, %v3894
      %v3957 = vadd.f32 %v3555, %v3899
      %v3958 = vadd.f32 %v3556, %v3902
      %v3959 = vadd.f32 %v3557, %v3907
      %v3960 = vadd.f32 %v3558, %v3910
      %v3961 = vadd.f32 %v3559, %v3915
      %v3962 = vadd.f32 %v3560, %v3918
      %v3963 = vadd.f32 %v3561, %v3923
      %v3964 = vadd.f32 %v3562, %v3926
      %3965 = vst.msk [vmem:[%s170] sm:$0xff] %vm179, %v3929
      %3966 = vst.msk [vmem:[%s170 + $0x8] sm:$0xff] %vm179, %v3930
      %3967 = vst.msk [vmem:[%s170 + $0x10] sm:$0xff] %vm179, %v3931
      %3968 = vst.msk [vmem:[%s170 + $0x18] sm:$0xff] %vm179, %v3932
      %3969 = vst.msk [vmem:[%s170 + $0x20] sm:$0xff] %vm179, %v3933
      %3970 = vst.msk [vmem:[%s170 + $0x28] sm:$0xff] %vm179, %v3934
      %3971 = vst.msk [vmem:[%s170 + $0x30] sm:$0xff] %vm179, %v3935
      %3972 = vst.msk [vmem:[%s170 + $0x38] sm:$0xff] %vm179, %v3936
      %3973 = vst.msk [vmem:[%s170 + $0x40] sm:$0xff] %vm179, %v3937
      %3974 = vst.msk [vmem:[%s170 + $0x48] sm:$0xff] %vm179, %v3938
      %3975 = vst.msk [vmem:[%s170 + $0x50] sm:$0xff] %vm179, %v3939
      %3976 = vst.msk [vmem:[%s170 + $0x58] sm:$0xff] %vm179, %v3940
      %3977 = vst.msk [vmem:[%s170 + $0x60] sm:$0xff] %vm179, %v3941
      %3978 = vst.msk [vmem:[%s170 + $0x68] sm:$0xff] %vm179, %v3942
      %3979 = vst.msk [vmem:[%s170 + $0x70] sm:$0xff] %vm179, %v3943
      %3980 = vst.msk [vmem:[%s170 + $0x78] sm:$0xff] %vm179, %v3944
      %3981 = vst.msk [vmem:[%s170 + $0x80] sm:$0xff] %vm179, %v3945
      %3982 = vst.msk [vmem:[%s170 + $0x88] sm:$0xff] %vm179, %v3946
      %3983 = vst.msk [vmem:[%s170 + $0x90] sm:$0xff] %vm179, %v3947
      %3984 = vst.msk [vmem:[%s170 + $0x98] sm:$0xff] %vm179, %v3948
      %3985 = vst.msk [vmem:[%s170 + $0xa0] sm:$0xff] %vm179, %v3949
      %3986 = vst.msk [vmem:[%s170 + $0xa8] sm:$0xff] %vm179, %v3950
      %3987 = vst.msk [vmem:[%s170 + $0xb0] sm:$0xff] %vm179, %v3951
      %3988 = vst.msk [vmem:[%s170 + $0xb8] sm:$0xff] %vm179, %v3952
      %3989 = vst.msk [vmem:[%s170 + $0xc0] sm:$0xff] %vm179, %v3953
      %3990 = vst.msk [vmem:[%s170 + $0xc8] sm:$0xff] %vm179, %v3954
      %3991 = vst.msk [vmem:[%s170 + $0xd0] sm:$0xff] %vm179, %v3955
      %3992 = vst.msk [vmem:[%s170 + $0xd8] sm:$0xff] %vm179, %v3956
      %3993 = vst.msk [vmem:[%s170 + $0xe0] sm:$0xff] %vm179, %v3957
      %3994 = vst.msk [vmem:[%s170 + $0xe8] sm:$0xff] %vm179, %v3958
      %3995 = vst.msk [vmem:[%s170 + $0xf0] sm:$0xff] %vm179, %v3959
      %3996 = vst.msk [vmem:[%s170 + $0xf8] sm:$0xff] %vm179, %v3960
      %3997 = vst.msk [vmem:[%s170 + $0x100] sm:$0xff] %vm179, %v3961
      %3998 = vst.msk [vmem:[%s170 + $0x108] sm:$0xff] %vm179, %v3962
      %3999 = vst.msk [vmem:[%s170 + $0x110] sm:$0xff] %vm179, %v3963
      %4000 = vst.msk [vmem:[%s170 + $0x118] sm:$0xff] %vm179, %v3964
      %v4001 = vld [vmem:[%s165 + $0x10] sm:$0xc]
      %v4002 = vld [vmem:[%s165 + $0x14] sm:$0xf]
      %v4003 = vld [vmem:[%s165 + $0x18] sm:$0xf]
      %v4004 = vld [vmem:[%s165 + $0x1c] sm:$0xf]
      %v4005 = vld [vmem:[%s165 + $0x20] sm:$0xf]
      %v4006 = vld [vmem:[%s165 + $0x24] sm:$0xf]
      %v4007 = vld [vmem:[%s165 + $0x28] sm:$0xf]
      %v4008 = vld [vmem:[%s165 + $0x2c] sm:$0xf]
      %v4009 = vld [vmem:[%s165 + $0x30] sm:$0xf]
      %v4010 = vld [vmem:[%s165 + $0x34] sm:$0xf]
      %v4011 = vld [vmem:[%s165 + $0x38] sm:$0xf]
      %v4012 = vld [vmem:[%s165 + $0x3c] sm:$0xf]
      %v4013 = vld [vmem:[%s165 + $0x40] sm:$0xf]
      %v4014 = vld [vmem:[%s165 + $0x44] sm:$0xf]
      %v4015 = vld [vmem:[%s165 + $0x48] sm:$0xf]
      %v4016 = vld [vmem:[%s165 + $0x4c] sm:$0xf]
      %v4017 = vld [vmem:[%s165 + $0x50] sm:$0xf]
      %v4018 = vld [vmem:[%s165 + $0x54] sm:$0xf]
      %v4019 = vld [vmem:[%s165 + $0x58] sm:$0xf]
      %v4020 = vld [vmem:[%s165 + $0x5c] sm:$0xf]
      %v4021 = vld [vmem:[%s165 + $0x60] sm:$0xf]
      %v4022 = vld [vmem:[%s165 + $0x64] sm:$0xf]
      %v4023 = vld [vmem:[%s165 + $0x68] sm:$0xf]
      %v4024 = vld [vmem:[%s165 + $0x6c] sm:$0xf]
      %v4025 = vld [vmem:[%s165 + $0x70] sm:$0xf]
      %v4026 = vld [vmem:[%s165 + $0x74] sm:$0xf]
      %v4027 = vld [vmem:[%s165 + $0x78] sm:$0xf]
      %v4028 = vld [vmem:[%s165 + $0x7c] sm:$0xf]
      %v4029 = vld [vmem:[%s165 + $0x80] sm:$0xf]
      %v4030 = vld [vmem:[%s165 + $0x84] sm:$0xf]
      %v4031 = vld [vmem:[%s165 + $0x88] sm:$0xf]
      %v4032 = vld [vmem:[%s165 + $0x8c] sm:$0xf]
      %v4033 = vld [vmem:[%s165 + $0x90] sm:$0xf]
      %v4034 = vld [vmem:[%s165 + $0x94] sm:$0xf]
      %v4035 = vld [vmem:[%s165 + $0x98] sm:$0xf]
      %v4036 = vld [vmem:[%s165 + $0x9c] sm:$0xf]
      %v4037 = vld [vmem:[%s165 + $0xa0] sm:$0x7]
      %v4038 = vld [vmem:[%s170] sm:$0xff]
      %v4039 = vld [vmem:[%s170 + $0x8] sm:$0xff]
      %v4040 = vld [vmem:[%s170 + $0x10] sm:$0xff]
      %v4041 = vld [vmem:[%s170 + $0x18] sm:$0xff]
      %v4042 = vld [vmem:[%s170 + $0x20] sm:$0xff]
      %v4043 = vld [vmem:[%s170 + $0x28] sm:$0xff]
      %v4044 = vld [vmem:[%s170 + $0x30] sm:$0xff]
      %v4045 = vld [vmem:[%s170 + $0x38] sm:$0xff]
      %v4046 = vld [vmem:[%s170 + $0x40] sm:$0xff]
      %v4047 = vld [vmem:[%s170 + $0x48] sm:$0xff]
      %v4048 = vld [vmem:[%s170 + $0x50] sm:$0xff]
      %v4049 = vld [vmem:[%s170 + $0x58] sm:$0xff]
      %v4050 = vld [vmem:[%s170 + $0x60] sm:$0xff]
      %v4051 = vld [vmem:[%s170 + $0x68] sm:$0xff]
      %v4052 = vld [vmem:[%s170 + $0x70] sm:$0xff]
      %v4053 = vld [vmem:[%s170 + $0x78] sm:$0xff]
      %v4054 = vld [vmem:[%s170 + $0x80] sm:$0xff]
      %v4055 = vld [vmem:[%s170 + $0x88] sm:$0xff]
      %v4056 = vld [vmem:[%s170 + $0x90] sm:$0xff]
      %v4057 = vld [vmem:[%s170 + $0x98] sm:$0xff]
      %v4058 = vld [vmem:[%s170 + $0xa0] sm:$0xff]
      %v4059 = vld [vmem:[%s170 + $0xa8] sm:$0xff]
      %v4060 = vld [vmem:[%s170 + $0xb0] sm:$0xff]
      %v4061 = vld [vmem:[%s170 + $0xb8] sm:$0xff]
      %v4062 = vld [vmem:[%s170 + $0xc0] sm:$0xff]
      %v4063 = vld [vmem:[%s170 + $0xc8] sm:$0xff]
      %v4064 = vld [vmem:[%s170 + $0xd0] sm:$0xff]
      %v4065 = vld [vmem:[%s170 + $0xd8] sm:$0xff]
      %v4066 = vld [vmem:[%s170 + $0xe0] sm:$0xff]
      %v4067 = vld [vmem:[%s170 + $0xe8] sm:$0xff]
      %v4068 = vld [vmem:[%s170 + $0xf0] sm:$0xff]
      %v4069 = vld [vmem:[%s170 + $0xf8] sm:$0xff]
      %v4070 = vld [vmem:[%s170 + $0x100] sm:$0xff]
      %v4071 = vld [vmem:[%s170 + $0x108] sm:$0xff]
      %v4072 = vld [vmem:[%s170 + $0x110] sm:$0xff]
      %v4073 = vld [vmem:[%s170 + $0x118] sm:$0xff]
      %s4074 = scalar_lea.vmem %s1, 14
      %v4075 = vld [vmem:[%s4074] sm:$0x3]
      %v4113 = vunpack.c.l.b16 %v4001
      %v4114 = vunpack.c.l.b16 %v4002
      %v4115 = vunpack.c.l.b16 %v4003
      %v4116 = vunpack.c.l.b16 %v4004
      %v4117 = vunpack.c.l.b16 %v4005
      %v4118 = vunpack.c.l.b16 %v4006
      %v4119 = vunpack.c.l.b16 %v4007
      %v4120 = vunpack.c.l.b16 %v4008
      %v4121 = vunpack.c.l.b16 %v4009
      %v4122 = vunpack.c.l.b16 %v4010
      %v4123 = vunpack.c.l.b16 %v4011
      %v4124 = vunpack.c.l.b16 %v4012
      %v4125 = vunpack.c.l.b16 %v4013
      %v4126 = vunpack.c.l.b16 %v4014
      %v4127 = vunpack.c.l.b16 %v4015
      %v4128 = vunpack.c.l.b16 %v4016
      %v4129 = vunpack.c.l.b16 %v4017
      %v4130 = vunpack.c.l.b16 %v4018
      %v4131 = vunpack.c.l.b16 %v4019
      %v4132 = vunpack.c.l.b16 %v4020
      %v4133 = vunpack.c.l.b16 %v4021
      %v4134 = vunpack.c.l.b16 %v4022
      %v4135 = vunpack.c.l.b16 %v4023
      %v4136 = vunpack.c.l.b16 %v4024
      %v4137 = vunpack.c.l.b16 %v4025
      %v4138 = vunpack.c.l.b16 %v4026
      %v4139 = vunpack.c.l.b16 %v4027
      %v4140 = vunpack.c.l.b16 %v4028
      %v4141 = vunpack.c.l.b16 %v4029
      %v4142 = vunpack.c.l.b16 %v4030
      %v4143 = vunpack.c.l.b16 %v4031
      %v4144 = vunpack.c.l.b16 %v4032
      %v4145 = vunpack.c.l.b16 %v4033
      %v4146 = vunpack.c.l.b16 %v4034
      %v4147 = vunpack.c.l.b16 %v4035
      %v4148 = vunpack.c.l.b16 %v4036
      %v4149 = vunpack.c.l.b16 %v4037
      %v4150 = vpack.c.b16 %v4114, %v4113
      %v4151 = vpack.c.b16 %v4116, %v4115
      %v4152 = vpack.c.b16 %v4118, %v4117
      %v4153 = vpack.c.b16 %v4120, %v4119
      %v4154 = vpack.c.b16 %v4122, %v4121
      %v4155 = vpack.c.b16 %v4124, %v4123
      %v4156 = vpack.c.b16 %v4126, %v4125
      %v4157 = vpack.c.b16 %v4128, %v4127
      %v4158 = vpack.c.b16 %v4130, %v4129
      %v4159 = vpack.c.b16 %v4132, %v4131
      %v4160 = vpack.c.b16 %v4134, %v4133
      %v4161 = vpack.c.b16 %v4136, %v4135
      %v4162 = vpack.c.b16 %v4138, %v4137
      %v4163 = vpack.c.b16 %v4140, %v4139
      %v4164 = vpack.c.b16 %v4142, %v4141
      %v4165 = vpack.c.b16 %v4144, %v4143
      %v4166 = vpack.c.b16 %v4146, %v4145
      %v4167 = vpack.c.b16 %v4148, %v4147
      %v4168 = vpack.c.b16 %v4149, %v4149
      %vm4169 = vsmask.f32 5376
      %v4171 = vshrl.u32 %v4150, 16
      %v4173 = vrot.slane %v4171, 2
      %v4174 = vshll.u32 %v4150, 16
      %v4176 = vrot.slane %v4174, 3
      %v4177 = vor.u32 %v4173, %v4176
      %v4179 = vshrl.u32 %v4151, 16
      %v4181 = vrot.slane %v4179, 2
      %v4182 = vshll.u32 %v4151, 16
      %v4184 = vrot.slane %v4182, 3
      %v4185 = vor.u32 %v4181, %v4184
      %v4186 = vsel %vm4169, %v4177, %v4185
      %v4188 = vshrl.u32 %v4152, 16
      %v4190 = vrot.slane %v4188, 2
      %v4191 = vshll.u32 %v4152, 16
      %v4193 = vrot.slane %v4191, 3
      %v4194 = vor.u32 %v4190, %v4193
      %v4195 = vsel %vm4169, %v4185, %v4194
      %v4197 = vshrl.u32 %v4153, 16
      %v4199 = vrot.slane %v4197, 2
      %v4200 = vshll.u32 %v4153, 16
      %v4202 = vrot.slane %v4200, 3
      %v4203 = vor.u32 %v4199, %v4202
      %v4204 = vsel %vm4169, %v4194, %v4203
      %v4206 = vshrl.u32 %v4154, 16
      %v4208 = vrot.slane %v4206, 2
      %v4209 = vshll.u32 %v4154, 16
      %v4211 = vrot.slane %v4209, 3
      %v4212 = vor.u32 %v4208, %v4211
      %v4213 = vsel %vm4169, %v4203, %v4212
      %v4215 = vshrl.u32 %v4155, 16
      %v4217 = vrot.slane %v4215, 2
      %v4218 = vshll.u32 %v4155, 16
      %v4220 = vrot.slane %v4218, 3
      %v4221 = vor.u32 %v4217, %v4220
      %v4222 = vsel %vm4169, %v4212, %v4221
      %v4224 = vshrl.u32 %v4156, 16
      %v4226 = vrot.slane %v4224, 2
      %v4227 = vshll.u32 %v4156, 16
      %v4229 = vrot.slane %v4227, 3
      %v4230 = vor.u32 %v4226, %v4229
      %v4231 = vsel %vm4169, %v4221, %v4230
      %v4233 = vshrl.u32 %v4157, 16
      %v4235 = vrot.slane %v4233, 2
      %v4236 = vshll.u32 %v4157, 16
      %v4238 = vrot.slane %v4236, 3
      %v4239 = vor.u32 %v4235, %v4238
      %v4240 = vsel %vm4169, %v4230, %v4239
      %v4242 = vshrl.u32 %v4158, 16
      %v4244 = vrot.slane %v4242, 2
      %v4245 = vshll.u32 %v4158, 16
      %v4247 = vrot.slane %v4245, 3
      %v4248 = vor.u32 %v4244, %v4247
      %v4249 = vsel %vm4169, %v4239, %v4248
      %v4251 = vshrl.u32 %v4159, 16
      %v4253 = vrot.slane %v4251, 2
      %v4254 = vshll.u32 %v4159, 16
      %v4256 = vrot.slane %v4254, 3
      %v4257 = vor.u32 %v4253, %v4256
      %v4258 = vsel %vm4169, %v4248, %v4257
      %v4260 = vshrl.u32 %v4160, 16
      %v4262 = vrot.slane %v4260, 2
      %v4263 = vshll.u32 %v4160, 16
      %v4265 = vrot.slane %v4263, 3
      %v4266 = vor.u32 %v4262, %v4265
      %v4267 = vsel %vm4169, %v4257, %v4266
      %v4269 = vshrl.u32 %v4161, 16
      %v4271 = vrot.slane %v4269, 2
      %v4272 = vshll.u32 %v4161, 16
      %v4274 = vrot.slane %v4272, 3
      %v4275 = vor.u32 %v4271, %v4274
      %v4276 = vsel %vm4169, %v4266, %v4275
      %v4278 = vshrl.u32 %v4162, 16
      %v4280 = vrot.slane %v4278, 2
      %v4281 = vshll.u32 %v4162, 16
      %v4283 = vrot.slane %v4281, 3
      %v4284 = vor.u32 %v4280, %v4283
      %v4285 = vsel %vm4169, %v4275, %v4284
      %v4287 = vshrl.u32 %v4163, 16
      %v4289 = vrot.slane %v4287, 2
      %v4290 = vshll.u32 %v4163, 16
      %v4292 = vrot.slane %v4290, 3
      %v4293 = vor.u32 %v4289, %v4292
      %v4294 = vsel %vm4169, %v4284, %v4293
      %v4296 = vshrl.u32 %v4164, 16
      %v4298 = vrot.slane %v4296, 2
      %v4299 = vshll.u32 %v4164, 16
      %v4301 = vrot.slane %v4299, 3
      %v4302 = vor.u32 %v4298, %v4301
      %v4303 = vsel %vm4169, %v4293, %v4302
      %v4305 = vshrl.u32 %v4165, 16
      %v4307 = vrot.slane %v4305, 2
      %v4308 = vshll.u32 %v4165, 16
      %v4310 = vrot.slane %v4308, 3
      %v4311 = vor.u32 %v4307, %v4310
      %v4312 = vsel %vm4169, %v4302, %v4311
      %v4314 = vshrl.u32 %v4166, 16
      %v4316 = vrot.slane %v4314, 2
      %v4317 = vshll.u32 %v4166, 16
      %v4319 = vrot.slane %v4317, 3
      %v4320 = vor.u32 %v4316, %v4319
      %v4321 = vsel %vm4169, %v4311, %v4320
      %v4323 = vshrl.u32 %v4167, 16
      %v4325 = vrot.slane %v4323, 2
      %v4326 = vshll.u32 %v4167, 16
      %v4328 = vrot.slane %v4326, 3
      %v4329 = vor.u32 %v4325, %v4328
      %v4330 = vsel %vm4169, %v4320, %v4329
      %v4332 = vshrl.u32 %v4168, 16
      %v4334 = vrot.slane %v4332, 2
      %v4335 = vshll.u32 %v4168, 16
      %v4337 = vrot.slane %v4335, 3
      %v4338 = vor.u32 %v4334, %v4337
      %v4339 = vsel %vm4169, %v4329, %v4338
      %v4341 = vsel %vm379, %v4186, 0
      %v4344 = vsel %vm379, %v4195, 0
      %v4347 = vsel %vm379, %v4204, 0
      %v4350 = vsel %vm379, %v4213, 0
      %v4353 = vsel %vm379, %v4222, 0
      %v4356 = vsel %vm379, %v4231, 0
      %v4359 = vsel %vm379, %v4240, 0
      %v4362 = vsel %vm379, %v4249, 0
      %v4365 = vsel %vm379, %v4258, 0
      %v4368 = vsel %vm379, %v4267, 0
      %v4371 = vsel %vm379, %v4276, 0
      %v4374 = vsel %vm379, %v4285, 0
      %v4377 = vsel %vm379, %v4294, 0
      %v4380 = vsel %vm379, %v4303, 0
      %v4383 = vsel %vm379, %v4312, 0
      %v4386 = vsel %vm379, %v4321, 0
      %v4389 = vsel %vm379, %v4330, 0
      %v4392 = vsel %vm379, %v4339, 0
      %v4395 = vsel %vm434, %v4075, 0
      %4397 = vmatprep.subr.bf16.mxu0 0
      %4398 = vmatpush1.bf16.msra.mxu0 %v4395
      %4399 = vmatprep.subr.bf16.mxu0 0
      %4400 = vmatpush1.bf16.msra.mxu0 0
      %4401 = vmatprep.subr.bf16.mxu0 0
      %4402 = vmatpush1.bf16.msra.mxu0 0
      %4403 = vmatprep.subr.bf16.mxu0 0
      %4404 = vmatpush1.bf16.msra.mxu0 0
      %4405 = vmatprep.subr.bf16.mxu0 0
      %4406 = vmatpush1.bf16.msra.mxu0 0
      %4407 = vmatprep.subr.bf16.mxu0 0
      %4408 = vmatpush1.bf16.msra.mxu0 0
      %4409 = vmatprep.subr.bf16.mxu0 0
      %4410 = vmatpush1.bf16.msra.mxu0 0
      %4411 = vmatprep.subr.bf16.mxu0 0
      %4412 = vmatpush1.bf16.msra.mxu0 0
      %4413 = vmatprep.subr.bf16.mxu0 0
      %4414 = vmatpush1.bf16.msra.mxu0 0
      %4415 = vmatprep.subr.bf16.mxu0 0
      %4416 = vmatpush1.bf16.msra.mxu0 0
      %4417 = vmatprep.subr.bf16.mxu0 0
      %4418 = vmatpush1.bf16.msra.mxu0 0
      %4419 = vmatprep.subr.bf16.mxu0 0
      %4420 = vmatpush1.bf16.msra.mxu0 0
      %4421 = vmatprep.subr.bf16.mxu0 0
      %4422 = vmatpush1.bf16.msra.mxu0 0
      %4423 = vmatprep.subr.bf16.mxu0 0
      %4424 = vmatpush1.bf16.msra.mxu0 0
      %4425 = vmatprep.subr.bf16.mxu0 0
      %4426 = vmatpush1.bf16.msra.mxu0 0
      %4427 = vmatprep.subr.bf16.mxu0 0
      %4428 = vmatpush1.bf16.msra.mxu0 0
      %4429 = vmatprep.mubr.bf16.mxu0 0
      %4430 = vmatmul.mubr.bf16.gmra.mrb[0].mxu0 %v4341
      %v4431 = vpop.f32.mrb[0].mxu0
      %v4432 = vadd.f32 0.0, %v4431
      %v4433 = vpop.f32.mrb[0].mxu0
      %v4434 = vpop.f32.mrb[0].mxu0
      %v4435 = vadd.f32 0.0, %v4434
      %v4436 = vpop.f32.mrb[0].mxu0
      %4437 = vmatprep.mubr.bf16.mxu0 0
      %4438 = vmatmul.mubr.bf16.gmra.mrb[0].mxu0 %v4344
      %v4439 = vpop.f32.mrb[0].mxu0
      %v4440 = vadd.f32 0.0, %v4439
      %v4441 = vpop.f32.mrb[0].mxu0
      %v4442 = vpop.f32.mrb[0].mxu0
      %v4443 = vadd.f32 0.0, %v4442
      %v4444 = vpop.f32.mrb[0].mxu0
      %4445 = vmatprep.mubr.bf16.mxu0 0
      %4446 = vmatmul.mubr.bf16.gmra.mrb[0].mxu0 %v4347
      %v4447 = vpop.f32.mrb[0].mxu0
      %v4448 = vadd.f32 0.0, %v4447
      %v4449 = vpop.f32.mrb[0].mxu0
      %v4450 = vpop.f32.mrb[0].mxu0
      %v4451 = vadd.f32 0.0, %v4450
      %v4452 = vpop.f32.mrb[0].mxu0
      %4453 = vmatprep.mubr.bf16.mxu0 0
      %4454 = vmatmul.mubr.bf16.gmra.mrb[0].mxu0 %v4350
      %v4455 = vpop.f32.mrb[0].mxu0
      %v4456 = vadd.f32 0.0, %v4455
      %v4457 = vpop.f32.mrb[0].mxu0
      %v4458 = vpop.f32.mrb[0].mxu0
      %v4459 = vadd.f32 0.0, %v4458
      %v4460 = vpop.f32.mrb[0].mxu0
      %4461 = vmatprep.mubr.bf16.mxu0 0
      %4462 = vmatmul.mubr.bf16.gmra.mrb[0].mxu0 %v4353
      %v4463 = vpop.f32.mrb[0].mxu0
      %v4464 = vadd.f32 0.0, %v4463
      %v4465 = vpop.f32.mrb[0].mxu0
      %v4466 = vpop.f32.mrb[0].mxu0
      %v4467 = vadd.f32 0.0, %v4466
      %v4468 = vpop.f32.mrb[0].mxu0
      %4469 = vmatprep.mubr.bf16.mxu0 0
      %4470 = vmatmul.mubr.bf16.gmra.mrb[0].mxu0 %v4356
      %v4471 = vpop.f32.mrb[0].mxu0
      %v4472 = vadd.f32 0.0, %v4471
      %v4473 = vpop.f32.mrb[0].mxu0
      %v4474 = vpop.f32.mrb[0].mxu0
      %v4475 = vadd.f32 0.0, %v4474
      %v4476 = vpop.f32.mrb[0].mxu0
      %4477 = vmatprep.mubr.bf16.mxu0 0
      %4478 = vmatmul.mubr.bf16.gmra.mrb[0].mxu0 %v4359
      %v4479 = vpop.f32.mrb[0].mxu0
      %v4480 = vadd.f32 0.0, %v4479
      %v4481 = vpop.f32.mrb[0].mxu0
      %v4482 = vpop.f32.mrb[0].mxu0
      %v4483 = vadd.f32 0.0, %v4482
      %v4484 = vpop.f32.mrb[0].mxu0
      %4485 = vmatprep.mubr.bf16.mxu0 0
      %4486 = vmatmul.mubr.bf16.gmra.mrb[0].mxu0 %v4362
      %v4487 = vpop.f32.mrb[0].mxu0
      %v4488 = vadd.f32 0.0, %v4487
      %v4489 = vpop.f32.mrb[0].mxu0
      %v4490 = vpop.f32.mrb[0].mxu0
      %v4491 = vadd.f32 0.0, %v4490
      %v4492 = vpop.f32.mrb[0].mxu0
      %4493 = vmatprep.mubr.bf16.mxu0 0
      %4494 = vmatmul.mubr.bf16.gmra.mrb[0].mxu0 %v4365
      %v4495 = vpop.f32.mrb[0].mxu0
      %v4496 = vadd.f32 0.0, %v4495
      %v4497 = vpop.f32.mrb[0].mxu0
      %v4498 = vpop.f32.mrb[0].mxu0
      %v4499 = vadd.f32 0.0, %v4498
      %v4500 = vpop.f32.mrb[0].mxu0
      %4501 = vmatprep.mubr.bf16.mxu0 0
      %4502 = vmatmul.mubr.bf16.gmra.mrb[0].mxu0 %v4368
      %v4503 = vpop.f32.mrb[0].mxu0
      %v4504 = vadd.f32 0.0, %v4503
      %v4505 = vpop.f32.mrb[0].mxu0
      %v4506 = vpop.f32.mrb[0].mxu0
      %v4507 = vadd.f32 0.0, %v4506
      %v4508 = vpop.f32.mrb[0].mxu0
      %4509 = vmatprep.mubr.bf16.mxu0 0
      %4510 = vmatmul.mubr.bf16.gmra.mrb[0].mxu0 %v4371
      %v4511 = vpop.f32.mrb[0].mxu0
      %v4512 = vadd.f32 0.0, %v4511
      %v4513 = vpop.f32.mrb[0].mxu0
      %v4514 = vpop.f32.mrb[0].mxu0
      %v4515 = vadd.f32 0.0, %v4514
      %v4516 = vpop.f32.mrb[0].mxu0
      %4517 = vmatprep.mubr.bf16.mxu0 0
      %4518 = vmatmul.mubr.bf16.gmra.mrb[0].mxu0 %v4374
      %v4519 = vpop.f32.mrb[0].mxu0
      %v4520 = vadd.f32 0.0, %v4519
      %v4521 = vpop.f32.mrb[0].mxu0
      %v4522 = vpop.f32.mrb[0].mxu0
      %v4523 = vadd.f32 0.0, %v4522
      %v4524 = vpop.f32.mrb[0].mxu0
      %4525 = vmatprep.mubr.bf16.mxu0 0
      %4526 = vmatmul.mubr.bf16.gmra.mrb[0].mxu0 %v4377
      %v4527 = vpop.f32.mrb[0].mxu0
      %v4528 = vadd.f32 0.0, %v4527
      %v4529 = vpop.f32.mrb[0].mxu0
      %v4530 = vpop.f32.mrb[0].mxu0
      %v4531 = vadd.f32 0.0, %v4530
      %v4532 = vpop.f32.mrb[0].mxu0
      %4533 = vmatprep.mubr.bf16.mxu0 0
      %4534 = vmatmul.mubr.bf16.gmra.mrb[0].mxu0 %v4380
      %v4535 = vpop.f32.mrb[0].mxu0
      %v4536 = vadd.f32 0.0, %v4535
      %v4537 = vpop.f32.mrb[0].mxu0
      %v4538 = vpop.f32.mrb[0].mxu0
      %v4539 = vadd.f32 0.0, %v4538
      %v4540 = vpop.f32.mrb[0].mxu0
      %4541 = vmatprep.mubr.bf16.mxu0 0
      %4542 = vmatmul.mubr.bf16.gmra.mrb[0].mxu0 %v4383
      %v4543 = vpop.f32.mrb[0].mxu0
      %v4544 = vadd.f32 0.0, %v4543
      %v4545 = vpop.f32.mrb[0].mxu0
      %v4546 = vpop.f32.mrb[0].mxu0
      %v4547 = vadd.f32 0.0, %v4546
      %v4548 = vpop.f32.mrb[0].mxu0
      %4549 = vmatprep.mubr.bf16.mxu0 0
      %4550 = vmatmul.mubr.bf16.gmra.mrb[0].mxu0 %v4386
      %v4551 = vpop.f32.mrb[0].mxu0
      %v4552 = vadd.f32 0.0, %v4551
      %v4553 = vpop.f32.mrb[0].mxu0
      %v4554 = vpop.f32.mrb[0].mxu0
      %v4555 = vadd.f32 0.0, %v4554
      %v4556 = vpop.f32.mrb[0].mxu0
      %4557 = vmatprep.mubr.bf16.mxu0 0
      %4558 = vmatmul.mubr.bf16.gmra.mrb[0].mxu0 %v4389
      %v4559 = vpop.f32.mrb[0].mxu0
      %v4560 = vadd.f32 0.0, %v4559
      %v4561 = vpop.f32.mrb[0].mxu0
      %v4562 = vpop.f32.mrb[0].mxu0
      %v4563 = vadd.f32 0.0, %v4562
      %v4564 = vpop.f32.mrb[0].mxu0
      %4565 = vmatprep.mubr.bf16.mxu0 0
      %4566 = vmatmul.mubr.bf16.gmra.mrb[0].mxu0 %v4392
      %v4567 = vpop.f32.mrb[0].mxu0
      %v4568 = vadd.f32 0.0, %v4567
      %v4569 = vpop.f32.mrb[0].mxu0
      %v4570 = vpop.f32.mrb[0].mxu0
      %v4571 = vadd.f32 0.0, %v4570
      %v4572 = vpop.f32.mrb[0].mxu0
      %4573 = vdwg.mxu0
      %v4574 = vadd.f32 %v4038, %v4432
      %v4575 = vadd.f32 %v4039, %v4435
      %v4576 = vadd.f32 %v4040, %v4440
      %v4577 = vadd.f32 %v4041, %v4443
      %v4578 = vadd.f32 %v4042, %v4448
      %v4579 = vadd.f32 %v4043, %v4451
      %v4580 = vadd.f32 %v4044, %v4456
      %v4581 = vadd.f32 %v4045, %v4459
      %v4582 = vadd.f32 %v4046, %v4464
      %v4583 = vadd.f32 %v4047, %v4467
      %v4584 = vadd.f32 %v4048, %v4472
      %v4585 = vadd.f32 %v4049, %v4475
      %v4586 = vadd.f32 %v4050, %v4480
      %v4587 = vadd.f32 %v4051, %v4483
      %v4588 = vadd.f32 %v4052, %v4488
      %v4589 = vadd.f32 %v4053, %v4491
      %v4590 = vadd.f32 %v4054, %v4496
      %v4591 = vadd.f32 %v4055, %v4499
      %v4592 = vadd.f32 %v4056, %v4504
      %v4593 = vadd.f32 %v4057, %v4507
      %v4594 = vadd.f32 %v4058, %v4512
      %v4595 = vadd.f32 %v4059, %v4515
      %v4596 = vadd.f32 %v4060, %v4520
      %v4597 = vadd.f32 %v4061, %v4523
      %v4598 = vadd.f32 %v4062, %v4528
      %v4599 = vadd.f32 %v4063, %v4531
      %v4600 = vadd.f32 %v4064, %v4536
      %v4601 = vadd.f32 %v4065, %v4539
      %v4602 = vadd.f32 %v4066, %v4544
      %v4603 = vadd.f32 %v4067, %v4547
      %v4604 = vadd.f32 %v4068, %v4552
      %v4605 = vadd.f32 %v4069, %v4555
      %v4606 = vadd.f32 %v4070, %v4560
      %v4607 = vadd.f32 %v4071, %v4563
      %v4608 = vadd.f32 %v4072, %v4568
      %v4609 = vadd.f32 %v4073, %v4571
      %4610 = vst.msk [vmem:[%s170] sm:$0xff] %vm179, %v4574
      %4611 = vst.msk [vmem:[%s170 + $0x8] sm:$0xff] %vm179, %v4575
      %4612 = vst.msk [vmem:[%s170 + $0x10] sm:$0xff] %vm179, %v4576
      %4613 = vst.msk [vmem:[%s170 + $0x18] sm:$0xff] %vm179, %v4577
      %4614 = vst.msk [vmem:[%s170 + $0x20] sm:$0xff] %vm179, %v4578
      %4615 = vst.msk [vmem:[%s170 + $0x28] sm:$0xff] %vm179, %v4579
      %4616 = vst.msk [vmem:[%s170 + $0x30] sm:$0xff] %vm179, %v4580
      %4617 = vst.msk [vmem:[%s170 + $0x38] sm:$0xff] %vm179, %v4581
      %4618 = vst.msk [vmem:[%s170 + $0x40] sm:$0xff] %vm179, %v4582
      %4619 = vst.msk [vmem:[%s170 + $0x48] sm:$0xff] %vm179, %v4583
      %4620 = vst.msk [vmem:[%s170 + $0x50] sm:$0xff] %vm179, %v4584
      %4621 = vst.msk [vmem:[%s170 + $0x58] sm:$0xff] %vm179, %v4585
      %4622 = vst.msk [vmem:[%s170 + $0x60] sm:$0xff] %vm179, %v4586
      %4623 = vst.msk [vmem:[%s170 + $0x68] sm:$0xff] %vm179, %v4587
      %4624 = vst.msk [vmem:[%s170 + $0x70] sm:$0xff] %vm179, %v4588
      %4625 = vst.msk [vmem:[%s170 + $0x78] sm:$0xff] %vm179, %v4589
      %4626 = vst.msk [vmem:[%s170 + $0x80] sm:$0xff] %vm179, %v4590
      %4627 = vst.msk [vmem:[%s170 + $0x88] sm:$0xff] %vm179, %v4591
      %4628 = vst.msk [vmem:[%s170 + $0x90] sm:$0xff] %vm179, %v4592
      %4629 = vst.msk [vmem:[%s170 + $0x98] sm:$0xff] %vm179, %v4593
      %4630 = vst.msk [vmem:[%s170 + $0xa0] sm:$0xff] %vm179, %v4594
      %4631 = vst.msk [vmem:[%s170 + $0xa8] sm:$0xff] %vm179, %v4595
      %4632 = vst.msk [vmem:[%s170 + $0xb0] sm:$0xff] %vm179, %v4596
      %4633 = vst.msk [vmem:[%s170 + $0xb8] sm:$0xff] %vm179, %v4597
      %4634 = vst.msk [vmem:[%s170 + $0xc0] sm:$0xff] %vm179, %v4598
      %4635 = vst.msk [vmem:[%s170 + $0xc8] sm:$0xff] %vm179, %v4599
      %4636 = vst.msk [vmem:[%s170 + $0xd0] sm:$0xff] %vm179, %v4600
      %4637 = vst.msk [vmem:[%s170 + $0xd8] sm:$0xff] %vm179, %v4601
      %4638 = vst.msk [vmem:[%s170 + $0xe0] sm:$0xff] %vm179, %v4602
      %4639 = vst.msk [vmem:[%s170 + $0xe8] sm:$0xff] %vm179, %v4603
      %4640 = vst.msk [vmem:[%s170 + $0xf0] sm:$0xff] %vm179, %v4604
      %4641 = vst.msk [vmem:[%s170 + $0xf8] sm:$0xff] %vm179, %v4605
      %4642 = vst.msk [vmem:[%s170 + $0x100] sm:$0xff] %vm179, %v4606
      %4643 = vst.msk [vmem:[%s170 + $0x108] sm:$0xff] %vm179, %v4607
      %4644 = vst.msk [vmem:[%s170 + $0x110] sm:$0xff] %vm179, %v4608
      %4645 = vst.msk [vmem:[%s170 + $0x118] sm:$0xff] %vm179, %v4609
      %v4646 = vld [vmem:[%s165 + $0x10] sm:$0x8]
      %v4647 = vld [vmem:[%s165 + $0x14] sm:$0xf]
      %v4648 = vld [vmem:[%s165 + $0x18] sm:$0xf]
      %v4649 = vld [vmem:[%s165 + $0x1c] sm:$0xf]
      %v4650 = vld [vmem:[%s165 + $0x20] sm:$0xf]
      %v4651 = vld [vmem:[%s165 + $0x24] sm:$0xf]
      %v4652 = vld [vmem:[%s165 + $0x28] sm:$0xf]
      %v4653 = vld [vmem:[%s165 + $0x2c] sm:$0xf]
      %v4654 = vld [vmem:[%s165 + $0x30] sm:$0xf]
      %v4655 = vld [vmem:[%s165 + $0x34] sm:$0xf]
      %v4656 = vld [vmem:[%s165 + $0x38] sm:$0xf]
      %v4657 = vld [vmem:[%s165 + $0x3c] sm:$0xf]
      %v4658 = vld [vmem:[%s165 + $0x40] sm:$0xf]
      %v4659 = vld [vmem:[%s165 + $0x44] sm:$0xf]
      %v4660 = vld [vmem:[%s165 + $0x48] sm:$0xf]
      %v4661 = vld [vmem:[%s165 + $0x4c] sm:$0xf]
      %v4662 = vld [vmem:[%s165 + $0x50] sm:$0xf]
      %v4663 = vld [vmem:[%s165 + $0x54] sm:$0xf]
      %v4664 = vld [vmem:[%s165 + $0x58] sm:$0xf]
      %v4665 = vld [vmem:[%s165 + $0x5c] sm:$0xf]
      %v4666 = vld [vmem:[%s165 + $0x60] sm:$0xf]
      %v4667 = vld [vmem:[%s165 + $0x64] sm:$0xf]
      %v4668 = vld [vmem:[%s165 + $0x68] sm:$0xf]
      %v4669 = vld [vmem:[%s165 + $0x6c] sm:$0xf]
      %v4670 = vld [vmem:[%s165 + $0x70] sm:$0xf]
      %v4671 = vld [vmem:[%s165 + $0x74] sm:$0xf]
      %v4672 = vld [vmem:[%s165 + $0x78] sm:$0xf]
      %v4673 = vld [vmem:[%s165 + $0x7c] sm:$0xf]
      %v4674 = vld [vmem:[%s165 + $0x80] sm:$0xf]
      %v4675 = vld [vmem:[%s165 + $0x84] sm:$0xf]
      %v4676 = vld [vmem:[%s165 + $0x88] sm:$0xf]
      %v4677 = vld [vmem:[%s165 + $0x8c] sm:$0xf]
      %v4678 = vld [vmem:[%s165 + $0x90] sm:$0xf]
      %v4679 = vld [vmem:[%s165 + $0x94] sm:$0xf]
      %v4680 = vld [vmem:[%s165 + $0x98] sm:$0xf]
      %v4681 = vld [vmem:[%s165 + $0x9c] sm:$0xf]
      %v4682 = vld [vmem:[%s165 + $0xa0] sm:$0x7]
      %v4683 = vld [vmem:[%s170] sm:$0xff]
      %v4684 = vld [vmem:[%s170 + $0x8] sm:$0xff]
      %v4685 = vld [vmem:[%s170 + $0x10] sm:$0xff]
      %v4686 = vld [vmem:[%s170 + $0x18] sm:$0xff]
      %v4687 = vld [vmem:[%s170 + $0x20] sm:$0xff]
      %v4688 = vld [vmem:[%s170 + $0x28] sm:$0xff]
      %v4689 = vld [vmem:[%s170 + $0x30] sm:$0xff]
      %v4690 = vld [vmem:[%s170 + $0x38] sm:$0xff]
      %v4691 = vld [vmem:[%s170 + $0x40] sm:$0xff]
      %v4692 = vld [vmem:[%s170 + $0x48] sm:$0xff]
      %v4693 = vld [vmem:[%s170 + $0x50] sm:$0xff]
      %v4694 = vld [vmem:[%s170 + $0x58] sm:$0xff]
      %v4695 = vld [vmem:[%s170 + $0x60] sm:$0xff]
      %v4696 = vld [vmem:[%s170 + $0x68] sm:$0xff]
      %v4697 = vld [vmem:[%s170 + $0x70] sm:$0xff]
      %v4698 = vld [vmem:[%s170 + $0x78] sm:$0xff]
      %v4699 = vld [vmem:[%s170 + $0x80] sm:$0xff]
      %v4700 = vld [vmem:[%s170 + $0x88] sm:$0xff]
      %v4701 = vld [vmem:[%s170 + $0x90] sm:$0xff]
      %v4702 = vld [vmem:[%s170 + $0x98] sm:$0xff]
      %v4703 = vld [vmem:[%s170 + $0xa0] sm:$0xff]
      %v4704 = vld [vmem:[%s170 + $0xa8] sm:$0xff]
      %v4705 = vld [vmem:[%s170 + $0xb0] sm:$0xff]
      %v4706 = vld [vmem:[%s170 + $0xb8] sm:$0xff]
      %v4707 = vld [vmem:[%s170 + $0xc0] sm:$0xff]
      %v4708 = vld [vmem:[%s170 + $0xc8] sm:$0xff]
      %v4709 = vld [vmem:[%s170 + $0xd0] sm:$0xff]
      %v4710 = vld [vmem:[%s170 + $0xd8] sm:$0xff]
      %v4711 = vld [vmem:[%s170 + $0xe0] sm:$0xff]
      %v4712 = vld [vmem:[%s170 + $0xe8] sm:$0xff]
      %v4713 = vld [vmem:[%s170 + $0xf0] sm:$0xff]
      %v4714 = vld [vmem:[%s170 + $0xf8] sm:$0xff]
      %v4715 = vld [vmem:[%s170 + $0x100] sm:$0xff]
      %v4716 = vld [vmem:[%s170 + $0x108] sm:$0xff]
      %v4717 = vld [vmem:[%s170 + $0x110] sm:$0xff]
      %v4718 = vld [vmem:[%s170 + $0x118] sm:$0xff]
      %s4719 = scalar_lea.vmem %s1, 16
      %v4720 = vld [vmem:[%s4719] sm:$0x3]
      %v4758 = vunpack.c.l.b16 %v4646
      %v4759 = vunpack.c.l.b16 %v4647
      %v4760 = vunpack.c.l.b16 %v4648
      %v4761 = vunpack.c.l.b16 %v4649
      %v4762 = vunpack.c.l.b16 %v4650
      %v4763 = vunpack.c.l.b16 %v4651
      %v4764 = vunpack.c.l.b16 %v4652
      %v4765 = vunpack.c.l.b16 %v4653
      %v4766 = vunpack.c.l.b16 %v4654
      %v4767 = vunpack.c.l.b16 %v4655
      %v4768 = vunpack.c.l.b16 %v4656
      %v4769 = vunpack.c.l.b16 %v4657
      %v4770 = vunpack.c.l.b16 %v4658
      %v4771 = vunpack.c.l.b16 %v4659
      %v4772 = vunpack.c.l.b16 %v4660
      %v4773 = vunpack.c.l.b16 %v4661
      %v4774 = vunpack.c.l.b16 %v4662
      %v4775 = vunpack.c.l.b16 %v4663
      %v4776 = vunpack.c.l.b16 %v4664
      %v4777 = vunpack.c.l.b16 %v4665
      %v4778 = vunpack.c.l.b16 %v4666
      %v4779 = vunpack.c.l.b16 %v4667
      %v4780 = vunpack.c.l.b16 %v4668
      %v4781 = vunpack.c.l.b16 %v4669
      %v4782 = vunpack.c.l.b16 %v4670
      %v4783 = vunpack.c.l.b16 %v4671
      %v4784 = vunpack.c.l.b16 %v4672
      %v4785 = vunpack.c.l.b16 %v4673
      %v4786 = vunpack.c.l.b16 %v4674
      %v4787 = vunpack.c.l.b16 %v4675
      %v4788 = vunpack.c.l.b16 %v4676
      %v4789 = vunpack.c.l.b16 %v4677
      %v4790 = vunpack.c.l.b16 %v4678
      %v4791 = vunpack.c.l.b16 %v4679
      %v4792 = vunpack.c.l.b16 %v4680
      %v4793 = vunpack.c.l.b16 %v4681
      %v4794 = vunpack.c.l.b16 %v4682
      %v4795 = vpack.c.b16 %v4759, %v4758
      %v4796 = vpack.c.b16 %v4761, %v4760
      %v4797 = vpack.c.b16 %v4763, %v4762
      %v4798 = vpack.c.b16 %v4765, %v4764
      %v4799 = vpack.c.b16 %v4767, %v4766
      %v4800 = vpack.c.b16 %v4769, %v4768
      %v4801 = vpack.c.b16 %v4771, %v4770
      %v4802 = vpack.c.b16 %v4773, %v4772
      %v4803 = vpack.c.b16 %v4775, %v4774
      %v4804 = vpack.c.b16 %v4777, %v4776
      %v4805 = vpack.c.b16 %v4779, %v4778
      %v4806 = vpack.c.b16 %v4781, %v4780
      %v4807 = vpack.c.b16 %v4783, %v4782
      %v4808 = vpack.c.b16 %v4785, %v4784
      %v4809 = vpack.c.b16 %v4787, %v4786
      %v4810 = vpack.c.b16 %v4789, %v4788
      %v4811 = vpack.c.b16 %v4791, %v4790
      %v4812 = vpack.c.b16 %v4793, %v4792
      %v4813 = vpack.c.b16 %v4794, %v4794
      %vm4814 = vcmask 1044480
      %v4815 = vrot.slane %v4795, 3
      %v4816 = vrot.slane %v4796, 3
      %v4817 = vsel %vm4814, %v4815, %v4816
      %v4818 = vrot.slane %v4797, 3
      %v4819 = vsel %vm4814, %v4816, %v4818
      %v4820 = vrot.slane %v4798, 3
      %v4821 = vsel %vm4814, %v4818, %v4820
      %v4822 = vrot.slane %v4799, 3
      %v4823 = vsel %vm4814, %v4820, %v4822
      %v4824 = vrot.slane %v4800, 3
      %v4825 = vsel %vm4814, %v4822, %v4824
      %v4826 = vrot.slane %v4801, 3
      %v4827 = vsel %vm4814, %v4824, %v4826
      %v4828 = vrot.slane %v4802, 3
      %v4829 = vsel %vm4814, %v4826, %v4828
      %v4830 = vrot.slane %v4803, 3
      %v4831 = vsel %vm4814, %v4828, %v4830
      %v4832 = vrot.slane %v4804, 3
      %v4833 = vsel %vm4814, %v4830, %v4832
      %v4834 = vrot.slane %v4805, 3
      %v4835 = vsel %vm4814, %v4832, %v4834
      %v4836 = vrot.slane %v4806, 3
      %v4837 = vsel %vm4814, %v4834, %v4836
      %v4838 = vrot.slane %v4807, 3
      %v4839 = vsel %vm4814, %v4836, %v4838
      %v4840 = vrot.slane %v4808, 3
      %v4841 = vsel %vm4814, %v4838, %v4840
      %v4842 = vrot.slane %v4809, 3
      %v4843 = vsel %vm4814, %v4840, %v4842
      %v4844 = vrot.slane %v4810, 3
      %v4845 = vsel %vm4814, %v4842, %v4844
      %v4846 = vrot.slane %v4811, 3
      %v4847 = vsel %vm4814, %v4844, %v4846
      %v4848 = vrot.slane %v4812, 3
      %v4849 = vsel %vm4814, %v4846, %v4848
      %v4850 = vrot.slane %v4813, 3
      %v4851 = vsel %vm4814, %v4848, %v4850
      %v4853 = vsel %vm379, %v4817, 0
      %v4856 = vsel %vm379, %v4819, 0
      %v4859 = vsel %vm379, %v4821, 0
      %v4862 = vsel %vm379, %v4823, 0
      %v4865 = vsel %vm379, %v4825, 0
      %v4868 = vsel %vm379, %v4827, 0
      %v4871 = vsel %vm379, %v4829, 0
      %v4874 = vsel %vm379, %v4831, 0
      %v4877 = vsel %vm379, %v4833, 0
      %v4880 = vsel %vm379, %v4835, 0
      %v4883 = vsel %vm379, %v4837, 0
      %v4886 = vsel %vm379, %v4839, 0
      %v4889 = vsel %vm379, %v4841, 0
      %v4892 = vsel %vm379, %v4843, 0
      %v4895 = vsel %vm379, %v4845, 0
      %v4898 = vsel %vm379, %v4847, 0
      %v4901 = vsel %vm379, %v4849, 0
      %v4904 = vsel %vm379, %v4851, 0
      %v4907 = vsel %vm434, %v4720, 0
      %4909 = vmatprep.subr.bf16.mxu0 0
      %4910 = vmatpush1.bf16.msra.mxu0 %v4907
      %4911 = vmatprep.subr.bf16.mxu0 0
      %4912 = vmatpush1.bf16.msra.mxu0 0
      %4913 = vmatprep.subr.bf16.mxu0 0
      %4914 = vmatpush1.bf16.msra.mxu0 0
      %4915 = vmatprep.subr.bf16.mxu0 0
      %4916 = vmatpush1.bf16.msra.mxu0 0
      %4917 = vmatprep.subr.bf16.mxu0 0
      %4918 = vmatpush1.bf16.msra.mxu0 0
      %4919 = vmatprep.subr.bf16.mxu0 0
      %4920 = vmatpush1.bf16.msra.mxu0 0
      %4921 = vmatprep.subr.bf16.mxu0 0
      %4922 = vmatpush1.bf16.msra.mxu0 0
      %4923 = vmatprep.subr.bf16.mxu0 0
      %4924 = vmatpush1.bf16.msra.mxu0 0
      %4925 = vmatprep.subr.bf16.mxu0 0
      %4926 = vmatpush1.bf16.msra.mxu0 0
      %4927 = vmatprep.subr.bf16.mxu0 0
      %4928 = vmatpush1.bf16.msra.mxu0 0
      %4929 = vmatprep.subr.bf16.mxu0 0
      %4930 = vmatpush1.bf16.msra.mxu0 0
      %4931 = vmatprep.subr.bf16.mxu0 0
      %4932 = vmatpush1.bf16.msra.mxu0 0
      %4933 = vmatprep.subr.bf16.mxu0 0
      %4934 = vmatpush1.bf16.msra.mxu0 0
      %4935 = vmatprep.subr.bf16.mxu0 0
      %4936 = vmatpush1.bf16.msra.mxu0 0
      %4937 = vmatprep.subr.bf16.mxu0 0
      %4938 = vmatpush1.bf16.msra.mxu0 0
      %4939 = vmatprep.subr.bf16.mxu0 0
      %4940 = vmatpush1.bf16.msra.mxu0 0
      %4941 = vmatprep.mubr.bf16.mxu0 0
      %4942 = vmatmul.mubr.bf16.gmra.mrb[0].mxu0 %v4853
      %v4943 = vpop.f32.mrb[0].mxu0
      %v4944 = vadd.f32 0.0, %v4943
      %v4945 = vpop.f32.mrb[0].mxu0
      %v4946 = vpop.f32.mrb[0].mxu0
      %v4947 = vadd.f32 0.0, %v4946
      %v4948 = vpop.f32.mrb[0].mxu0
      %4949 = vmatprep.mubr.bf16.mxu0 0
      %4950 = vmatmul.mubr.bf16.gmra.mrb[0].mxu0 %v4856
      %v4951 = vpop.f32.mrb[0].mxu0
      %v4952 = vadd.f32 0.0, %v4951
      %v4953 = vpop.f32.mrb[0].mxu0
      %v4954 = vpop.f32.mrb[0].mxu0
      %v4955 = vadd.f32 0.0, %v4954
      %v4956 = vpop.f32.mrb[0].mxu0
      %4957 = vmatprep.mubr.bf16.mxu0 0
      %4958 = vmatmul.mubr.bf16.gmra.mrb[0].mxu0 %v4859
      %v4959 = vpop.f32.mrb[0].mxu0
      %v4960 = vadd.f32 0.0, %v4959
      %v4961 = vpop.f32.mrb[0].mxu0
      %v4962 = vpop.f32.mrb[0].mxu0
      %v4963 = vadd.f32 0.0, %v4962
      %v4964 = vpop.f32.mrb[0].mxu0
      %4965 = vmatprep.mubr.bf16.mxu0 0
      %4966 = vmatmul.mubr.bf16.gmra.mrb[0].mxu0 %v4862
      %v4967 = vpop.f32.mrb[0].mxu0
      %v4968 = vadd.f32 0.0, %v4967
      %v4969 = vpop.f32.mrb[0].mxu0
      %v4970 = vpop.f32.mrb[0].mxu0
      %v4971 = vadd.f32 0.0, %v4970
      %v4972 = vpop.f32.mrb[0].mxu0
      %4973 = vmatprep.mubr.bf16.mxu0 0
      %4974 = vmatmul.mubr.bf16.gmra.mrb[0].mxu0 %v4865
      %v4975 = vpop.f32.mrb[0].mxu0
      %v4976 = vadd.f32 0.0, %v4975
      %v4977 = vpop.f32.mrb[0].mxu0
      %v4978 = vpop.f32.mrb[0].mxu0
      %v4979 = vadd.f32 0.0, %v4978
      %v4980 = vpop.f32.mrb[0].mxu0
      %4981 = vmatprep.mubr.bf16.mxu0 0
      %4982 = vmatmul.mubr.bf16.gmra.mrb[0].mxu0 %v4868
      %v4983 = vpop.f32.mrb[0].mxu0
      %v4984 = vadd.f32 0.0, %v4983
      %v4985 = vpop.f32.mrb[0].mxu0
      %v4986 = vpop.f32.mrb[0].mxu0
      %v4987 = vadd.f32 0.0, %v4986
      %v4988 = vpop.f32.mrb[0].mxu0
      %4989 = vmatprep.mubr.bf16.mxu0 0
      %4990 = vmatmul.mubr.bf16.gmra.mrb[0].mxu0 %v4871
      %v4991 = vpop.f32.mrb[0].mxu0
      %v4992 = vadd.f32 0.0, %v4991
      %v4993 = vpop.f32.mrb[0].mxu0
      %v4994 = vpop.f32.mrb[0].mxu0
      %v4995 = vadd.f32 0.0, %v4994
      %v4996 = vpop.f32.mrb[0].mxu0
      %4997 = vmatprep.mubr.bf16.mxu0 0
      %4998 = vmatmul.mubr.bf16.gmra.mrb[0].mxu0 %v4874
      %v4999 = vpop.f32.mrb[0].mxu0
      %v5000 = vadd.f32 0.0, %v4999
      %v5001 = vpop.f32.mrb[0].mxu0
      %v5002 = vpop.f32.mrb[0].mxu0
      %v5003 = vadd.f32 0.0, %v5002
      %v5004 = vpop.f32.mrb[0].mxu0
      %5005 = vmatprep.mubr.bf16.mxu0 0
      %5006 = vmatmul.mubr.bf16.gmra.mrb[0].mxu0 %v4877
      %v5007 = vpop.f32.mrb[0].mxu0
      %v5008 = vadd.f32 0.0, %v5007
      %v5009 = vpop.f32.mrb[0].mxu0
      %v5010 = vpop.f32.mrb[0].mxu0
      %v5011 = vadd.f32 0.0, %v5010
      %v5012 = vpop.f32.mrb[0].mxu0
      %5013 = vmatprep.mubr.bf16.mxu0 0
      %5014 = vmatmul.mubr.bf16.gmra.mrb[0].mxu0 %v4880
      %v5015 = vpop.f32.mrb[0].mxu0
      %v5016 = vadd.f32 0.0, %v5015
      %v5017 = vpop.f32.mrb[0].mxu0
      %v5018 = vpop.f32.mrb[0].mxu0
      %v5019 = vadd.f32 0.0, %v5018
      %v5020 = vpop.f32.mrb[0].mxu0
      %5021 = vmatprep.mubr.bf16.mxu0 0
      %5022 = vmatmul.mubr.bf16.gmra.mrb[0].mxu0 %v4883
      %v5023 = vpop.f32.mrb[0].mxu0
      %v5024 = vadd.f32 0.0, %v5023
      %v5025 = vpop.f32.mrb[0].mxu0
      %v5026 = vpop.f32.mrb[0].mxu0
      %v5027 = vadd.f32 0.0, %v5026
      %v5028 = vpop.f32.mrb[0].mxu0
      %5029 = vmatprep.mubr.bf16.mxu0 0
      %5030 = vmatmul.mubr.bf16.gmra.mrb[0].mxu0 %v4886
      %v5031 = vpop.f32.mrb[0].mxu0
      %v5032 = vadd.f32 0.0, %v5031
      %v5033 = vpop.f32.mrb[0].mxu0
      %v5034 = vpop.f32.mrb[0].mxu0
      %v5035 = vadd.f32 0.0, %v5034
      %v5036 = vpop.f32.mrb[0].mxu0
      %5037 = vmatprep.mubr.bf16.mxu0 0
      %5038 = vmatmul.mubr.bf16.gmra.mrb[0].mxu0 %v4889
      %v5039 = vpop.f32.mrb[0].mxu0
      %v5040 = vadd.f32 0.0, %v5039
      %v5041 = vpop.f32.mrb[0].mxu0
      %v5042 = vpop.f32.mrb[0].mxu0
      %v5043 = vadd.f32 0.0, %v5042
      %v5044 = vpop.f32.mrb[0].mxu0
      %5045 = vmatprep.mubr.bf16.mxu0 0
      %5046 = vmatmul.mubr.bf16.gmra.mrb[0].mxu0 %v4892
      %v5047 = vpop.f32.mrb[0].mxu0
      %v5048 = vadd.f32 0.0, %v5047
      %v5049 = vpop.f32.mrb[0].mxu0
      %v5050 = vpop.f32.mrb[0].mxu0
      %v5051 = vadd.f32 0.0, %v5050
      %v5052 = vpop.f32.mrb[0].mxu0
      %5053 = vmatprep.mubr.bf16.mxu0 0
      %5054 = vmatmul.mubr.bf16.gmra.mrb[0].mxu0 %v4895
      %v5055 = vpop.f32.mrb[0].mxu0
      %v5056 = vadd.f32 0.0, %v5055
      %v5057 = vpop.f32.mrb[0].mxu0
      %v5058 = vpop.f32.mrb[0].mxu0
      %v5059 = vadd.f32 0.0, %v5058
      %v5060 = vpop.f32.mrb[0].mxu0
      %5061 = vmatprep.mubr.bf16.mxu0 0
      %5062 = vmatmul.mubr.bf16.gmra.mrb[0].mxu0 %v4898
      %v5063 = vpop.f32.mrb[0].mxu0
      %v5064 = vadd.f32 0.0, %v5063
      %v5065 = vpop.f32.mrb[0].mxu0
      %v5066 = vpop.f32.mrb[0].mxu0
      %v5067 = vadd.f32 0.0, %v5066
      %v5068 = vpop.f32.mrb[0].mxu0
      %5069 = vmatprep.mubr.bf16.mxu0 0
      %5070 = vmatmul.mubr.bf16.gmra.mrb[0].mxu0 %v4901
      %v5071 = vpop.f32.mrb[0].mxu0
      %v5072 = vadd.f32 0.0, %v5071
      %v5073 = vpop.f32.mrb[0].mxu0
      %v5074 = vpop.f32.mrb[0].mxu0
      %v5075 = vadd.f32 0.0, %v5074
      %v5076 = vpop.f32.mrb[0].mxu0
      %5077 = vmatprep.mubr.bf16.mxu0 0
      %5078 = vmatmul.mubr.bf16.gmra.mrb[0].mxu0 %v4904
      %v5079 = vpop.f32.mrb[0].mxu0
      %v5080 = vadd.f32 0.0, %v5079
      %v5081 = vpop.f32.mrb[0].mxu0
      %v5082 = vpop.f32.mrb[0].mxu0
      %v5083 = vadd.f32 0.0, %v5082
      %v5084 = vpop.f32.mrb[0].mxu0
      %5085 = vdwg.mxu0
      %v5086 = vadd.f32 %v4683, %v4944
      %v5087 = vadd.f32 %v4684, %v4947
      %v5088 = vadd.f32 %v4685, %v4952
      %v5089 = vadd.f32 %v4686, %v4955
      %v5090 = vadd.f32 %v4687, %v4960
      %v5091 = vadd.f32 %v4688, %v4963
      %v5092 = vadd.f32 %v4689, %v4968
      %v5093 = vadd.f32 %v4690, %v4971
      %v5094 = vadd.f32 %v4691, %v4976
      %v5095 = vadd.f32 %v4692, %v4979
      %v5096 = vadd.f32 %v4693, %v4984
      %v5097 = vadd.f32 %v4694, %v4987
      %v5098 = vadd.f32 %v4695, %v4992
      %v5099 = vadd.f32 %v4696, %v4995
      %v5100 = vadd.f32 %v4697, %v5000
      %v5101 = vadd.f32 %v4698, %v5003
      %v5102 = vadd.f32 %v4699, %v5008
      %v5103 = vadd.f32 %v4700, %v5011
      %v5104 = vadd.f32 %v4701, %v5016
      %v5105 = vadd.f32 %v4702, %v5019
      %v5106 = vadd.f32 %v4703, %v5024
      %v5107 = vadd.f32 %v4704, %v5027
      %v5108 = vadd.f32 %v4705, %v5032
      %v5109 = vadd.f32 %v4706, %v5035
      %v5110 = vadd.f32 %v4707, %v5040
      %v5111 = vadd.f32 %v4708, %v5043
      %v5112 = vadd.f32 %v4709, %v5048
      %v5113 = vadd.f32 %v4710, %v5051
      %v5114 = vadd.f32 %v4711, %v5056
      %v5115 = vadd.f32 %v4712, %v5059
      %v5116 = vadd.f32 %v4713, %v5064
      %v5117 = vadd.f32 %v4714, %v5067
      %v5118 = vadd.f32 %v4715, %v5072
      %v5119 = vadd.f32 %v4716, %v5075
      %v5120 = vadd.f32 %v4717, %v5080
      %v5121 = vadd.f32 %v4718, %v5083
      %5122 = vst.msk [vmem:[%s170] sm:$0xff] %vm179, %v5086
      %5123 = vst.msk [vmem:[%s170 + $0x8] sm:$0xff] %vm179, %v5087
      %5124 = vst.msk [vmem:[%s170 + $0x10] sm:$0xff] %vm179, %v5088
      %5125 = vst.msk [vmem:[%s170 + $0x18] sm:$0xff] %vm179, %v5089
      %5126 = vst.msk [vmem:[%s170 + $0x20] sm:$0xff] %vm179, %v5090
      %5127 = vst.msk [vmem:[%s170 + $0x28] sm:$0xff] %vm179, %v5091
      %5128 = vst.msk [vmem:[%s170 + $0x30] sm:$0xff] %vm179, %v5092
      %5129 = vst.msk [vmem:[%s170 + $0x38] sm:$0xff] %vm179, %v5093
      %5130 = vst.msk [vmem:[%s170 + $0x40] sm:$0xff] %vm179, %v5094
      %5131 = vst.msk [vmem:[%s170 + $0x48] sm:$0xff] %vm179, %v5095
      %5132 = vst.msk [vmem:[%s170 + $0x50] sm:$0xff] %vm179, %v5096
      %5133 = vst.msk [vmem:[%s170 + $0x58] sm:$0xff] %vm179, %v5097
      %5134 = vst.msk [vmem:[%s170 + $0x60] sm:$0xff] %vm179, %v5098
      %5135 = vst.msk [vmem:[%s170 + $0x68] sm:$0xff] %vm179, %v5099
      %5136 = vst.msk [vmem:[%s170 + $0x70] sm:$0xff] %vm179, %v5100
      %5137 = vst.msk [vmem:[%s170 + $0x78] sm:$0xff] %vm179, %v5101
      %5138 = vst.msk [vmem:[%s170 + $0x80] sm:$0xff] %vm179, %v5102
      %5139 = vst.msk [vmem:[%s170 + $0x88] sm:$0xff] %vm179, %v5103
      %5140 = vst.msk [vmem:[%s170 + $0x90] sm:$0xff] %vm179, %v5104
      %5141 = vst.msk [vmem:[%s170 + $0x98] sm:$0xff] %vm179, %v5105
      %5142 = vst.msk [vmem:[%s170 + $0xa0] sm:$0xff] %vm179, %v5106
      %5143 = vst.msk [vmem:[%s170 + $0xa8] sm:$0xff] %vm179, %v5107
      %5144 = vst.msk [vmem:[%s170 + $0xb0] sm:$0xff] %vm179, %v5108
      %5145 = vst.msk [vmem:[%s170 + $0xb8] sm:$0xff] %vm179, %v5109
      %5146 = vst.msk [vmem:[%s170 + $0xc0] sm:$0xff] %vm179, %v5110
      %5147 = vst.msk [vmem:[%s170 + $0xc8] sm:$0xff] %vm179, %v5111
      %5148 = vst.msk [vmem:[%s170 + $0xd0] sm:$0xff] %vm179, %v5112
      %5149 = vst.msk [vmem:[%s170 + $0xd8] sm:$0xff] %vm179, %v5113
      %5150 = vst.msk [vmem:[%s170 + $0xe0] sm:$0xff] %vm179, %v5114
      %5151 = vst.msk [vmem:[%s170 + $0xe8] sm:$0xff] %vm179, %v5115
      %5152 = vst.msk [vmem:[%s170 + $0xf0] sm:$0xff] %vm179, %v5116
      %5153 = vst.msk [vmem:[%s170 + $0xf8] sm:$0xff] %vm179, %v5117
      %5154 = vst.msk [vmem:[%s170 + $0x100] sm:$0xff] %vm179, %v5118
      %5155 = vst.msk [vmem:[%s170 + $0x108] sm:$0xff] %vm179, %v5119
      %5156 = vst.msk [vmem:[%s170 + $0x110] sm:$0xff] %vm179, %v5120
      %5157 = vst.msk [vmem:[%s170 + $0x118] sm:$0xff] %vm179, %v5121
      %p5158 = scmp.lt.s32.totalorder %s14, 1
      %s5159 = scalar_select %p5158, %s14, 1
      %s5160 = smul.addr %s5159, 36
      %s5161 = smul.addr %s5160, 8
      %s5162 = scalar_lea.vmem %s3, %s5161
      // Predicated region
      $region33: #{tpu_custom_call.1} parent=31 // pred_check
        %p5163 = pneg %p100
      $region34: #{tpu_custom_call.1} parent=31 // pred_check_branch
        %5165 = sbr.rel (%p5163) target = $region36
      $region35: #{tpu_custom_call.1} parent=31 // pred_region
        _
      $region36: #{tpu_custom_call.1} parent=31 // pred_fallthru
        _
    $region32: #{tpu_custom_call.1} parent=5 // pred_fallthru
      _
    %p5166 = scmp.le.s32.totalorder 2, %s9
    // Predicated region
    $region37: #{tpu_custom_call.1} parent=5 // pred_check
      %p5167 = pneg %p5166
    $region38: #{tpu_custom_call.1} parent=5 // pred_check_branch
      %5169 = sbr.rel (%p5167) target = $region40
    $region39: #{tpu_custom_call.1} parent=5 // pred_region
      %s5170 = ssub.s32 %s9, 2
      // Predicated region
      $region41: #{tpu_custom_call.1} parent=39 // pred_check
        %p5171 = pneg %p106
      $region42: #{tpu_custom_call.1} parent=39 // pred_check_branch
        %5173 = sbr.rel (%p5171) target = $region44
      $region43: #{tpu_custom_call.1} parent=39 // pred_region
        %p5174 = scmp.lt.s32.totalorder %s15, 1
        %s5175 = scalar_select %p5174, %s15, 1
        %s5176 = smul.addr %s5175, 36
        %s5177 = smul.addr %s5176, 8
        %s5178 = scalar_lea.vmem %s3, %s5177
      $region44: #{tpu_custom_call.1} parent=39 // pred_fallthru
        _
    $region40: #{tpu_custom_call.1} parent=5 // pred_fallthru
      _
  $region6: #{tpu_custom_call.1} parent=0 // loop_footer
    %s13 = sadd.s32 1, %s9
  $region7: #{tpu_custom_call.1} parent=0 // loop_footer_branch
    %8 = sbr.rel target = $region3
  $region8: #{tpu_custom_call.1} parent=0 // loop_exit
    _

</llo_original>
